<compile_context>
chip_gen: v7x
topology: tpu7x:2x2x1
jax: 0.10.0
libtpu: 0.0.40
codegen_flags: <defaults>
</compile_context>

<pallas_src>
import math

import jax
import jax.numpy as jnp
from jax import lax
from jax.experimental import pallas as pl
from jax.experimental.pallas import tpu as pltpu

# keep f32 matmuls exact on TPU so kernel and reference agree tightly
jax.config.update("jax_default_matmul_precision", "highest")

BETA = 0.9                     # NeuronModel leak
ETA = 0.1                      # plasticity learning rate
TAU_TRACE = 20.0
DECAY_TRACE = math.exp(-1.0 / TAU_TRACE)
READ_GAIN = 0.2                # gain on the associative read (recall=False path)


# ----------------------------------------------------------------------------
# Pallas kernel: one grid step == (one batch element, one chunk of C timesteps).
# ----------------------------------------------------------------------------
def _memory_kernel(ik_ref, iv_ref, vei_ref, vie_ref,            # inputs
                   mem_ref, key_out_ref, val_out_ref,            # outputs
                   key_v, val_v, vinh_v, key_tr, val_tr,         # carried state
                   vinh_buf,                                     # delayed-inhibition ring
                   k_sc, ktr_sc, vtr_sc, base_sc):               # per-chunk work buffers
    ci = pl.program_id(1)                      # time-chunk index (sequential axis)
    C, H = k_sc.shape
    D = vinh_buf.shape[0]

    # ---- init per batch element (start of its chunk sweep) -------------------
    @pl.when(ci == 0)
    def _init():
        mem_ref[...] = jnp.zeros_like(mem_ref)
        key_v[...] = jnp.zeros_like(key_v)
        val_v[...] = jnp.zeros_like(val_v)
        vinh_v[...] = jnp.zeros_like(vinh_v)
        key_tr[...] = jnp.zeros_like(key_tr)
        val_tr[...] = jnp.zeros_like(val_tr)
        vinh_buf[...] = jnp.zeros_like(vinh_buf)

    # ---- phase 1: key pass (cheap O(H)/step recurrence, no mem dependence) ---
    def key_step(s, carry):
        ik_s = ik_ref[pl.ds(s, 1), :]                            # (1, H)
        kv = BETA * key_v[...] + ik_s
        k = jnp.tanh(kv)
        key_v[...] = kv
        ktr = DECAY_TRACE * key_tr[...] + (1.0 - DECAY_TRACE) * k
        key_tr[...] = ktr
        k_sc[pl.ds(s, 1), :] = k
        ktr_sc[pl.ds(s, 1), :] = ktr
        return carry

    lax.fori_loop(0, C, key_step, 0)

    # bulk, lane-dense block store of the whole chunk of keys
    key_out_ref[...] = k_sc[...].astype(key_out_ref.dtype)

    # ---- phase 2: chunk-level MXU precompute ---------------------------------
    # base read against the memory as it stands at chunk start:
    #   base[t, i] = 0.2 * sum_j mem0[i, j] * key_t[j]      ((C,H) @ (H,H)^T on MXU)
    base_sc[...] = READ_GAIN * jnp.einsum(
        'tj,ij->ti', k_sc[...], mem_ref[...],
        preferred_element_type=jnp.float32)
    # val-trace history of this chunk (zeroed so not-yet-written steps contribute 0)
    vtr_sc[...] = jnp.zeros_like(vtr_sc)

    # ---- phase 3: value / inhibition recurrence (truly sequential part) ------
    def val_step(t, carry):
        gt = ci * C + t                                          # global timestep
        slot = gt % D
        vinh_prev = vinh_buf[pl.ds(slot, 1), :]                  # (1, I) delayed read
        vinh_out = jnp.dot(vinh_prev, vie_ref[...],
                           preferred_element_type=jnp.float32)   # (1, H)

        # within-chunk Hebbian correction to the memory read:
        #   corr = sum_{s<t} val_tr_s * (key_tr_s . key_t)   -- O(C*H), not O(H^2)
        key_t = k_sc[pl.ds(t, 1), :]                             # (1, H)
        a = jnp.sum(ktr_sc[...] * key_t, axis=1, keepdims=True)  # (C, 1)
        corr = jnp.sum(vtr_sc[...] * a, axis=0, keepdims=True)   # (1, H)

        drive = (iv_ref[pl.ds(t, 1), :] + base_sc[pl.ds(t, 1), :]
                 + (READ_GAIN * ETA) * corr + vinh_out)

        vv = BETA * val_v[...] + drive
        val = jnp.tanh(vv)
        val_v[...] = vv

        vinh_in = jnp.dot(val, vei_ref[...],
                          preferred_element_type=jnp.float32)    # (1, I)
        vv2 = BETA * vinh_v[...] + vinh_in
        vinh_buf[pl.ds(slot, 1), :] = jnp.tanh(vv2)              # write AFTER the read
        vinh_v[...] = vv2

        vtr = DECAY_TRACE * val_tr[...] + (1.0 - DECAY_TRACE) * val
        val_tr[...] = vtr
        vtr_sc[pl.ds(t, 1), :] = vtr

        val_out_ref[pl.ds(t, 1), :] = val.astype(val_out_ref.dtype)
        return carry

    lax.fori_loop(0, C, val_step, 0)

    # ---- phase 4: apply the whole chunk's Hebbian update with one MXU matmul -
    #   mem += ETA * sum_t outer(val_tr_t, key_tr_t)  ==  ETA * Vtr^T @ Ktr
    mem_ref[...] = mem_ref[...] + ETA * jnp.einsum(
        'ti,tj->ij', vtr_sc[...], ktr_sc[...],
        preferred_element_type=jnp.float32)


# ----------------------------------------------------------------------------
# Wrapper
# ----------------------------------------------------------------------------
def _pick_time_chunk(T, desired):
    # chunk must divide T and (be a multiple of 8 or equal T) so the (C, H) block
    # satisfies the TPU (8, 128)/full-dim tiling rule on its sublane axis.
    cands = [c for c in range(1, T + 1) if T % c == 0 and (c % 8 == 0 or c == T)]
    fitting = [c for c in cands if c <= desired]
    return max(fitting) if fitting else min(cands)


def dual_inhibition_memory_forward(x, W, V_ei, V_ie, feedback_delay, time_chunk=64):
    """x: (B, T, input_size) float32.  Returns (mem, key_seq, val_seq), batch-first."""
    B, T, _in = x.shape
    H = W.shape[0] // 2
    I = V_ei.shape[0]
    dt = x.dtype

    C = _pick_time_chunk(T, time_chunk)
    n_chunks = T // C

    # hoisted input projection: one big MXU matmul per half instead of T tiny ones;
    # outputs stay batch-first so no transposes are needed anywhere.
    ik = jnp.einsum('bti,hi->bth', x, W[:H])                     # (B, T, H)
    iv = jnp.einsum('bti,hi->bth', x, W[H:])                     # (B, T, H)
    # pre-transposed weights: every in-kernel dot is a plain A @ B
    vei_t = V_ei.T                                               # (H, I)
    vie_t = V_ie.T                                               # (I, H)

    # explicit VMEM budget (feedback: re-budget for v7x's 64 MiB)
    f32 = 4
    est = (4 * 2 * C * H            # ik/iv in + key/val out, double-buffered
           + 2 * 2 * H * I          # resident weights (double-buffer worst case)
           + 2 * H * H              # resident per-batch memory block
           + 5 * H + I + feedback_delay * I
           + 4 * C * H) * f32       # chunk work buffers
    vmem_limit = int(min(max(2 * est, 32 * 2**20), 64 * 2**20))

    out_shape = (
        jax.ShapeDtypeStruct((B, H, H), dt),                     # mem
        jax.ShapeDtypeStruct((B, T, H), dt),                     # key sequence
        jax.ShapeDtypeStruct((B, T, H), dt),                     # val sequence
    )

    grid_spec = pltpu.PrefetchScalarGridSpec(
        num_scalar_prefetch=0,
        grid=(B, n_chunks),                                      # (batch, time-chunks)
        in_specs=[
            pl.BlockSpec((None, C, H), lambda b, c: (b, c, 0)),  # ik  (chunk streamed)
            pl.BlockSpec((None, C, H), lambda b, c: (b, c, 0)),  # iv  (chunk streamed)
            pl.BlockSpec((H, I), lambda b, c: (0, 0)),           # V_ei^T resident
            pl.BlockSpec((I, H), lambda b, c: (0, 0)),           # V_ie^T resident
        ],
        out_specs=[
            pl.BlockSpec((None, H, H), lambda b, c: (b, 0, 0)),  # per-batch mem acc
            pl.BlockSpec((None, C, H), lambda b, c: (b, c, 0)),
            pl.BlockSpec((None, C, H), lambda b, c: (b, c, 0)),
        ],
        scratch_shapes=[
            pltpu.VMEM((1, H), jnp.float32),                     # key membrane
            pltpu.VMEM((1, H), jnp.float32),                     # val membrane
            pltpu.VMEM((1, I), jnp.float32),                     # inhibitory membrane
            pltpu.VMEM((1, H), jnp.float32),                     # key trace
            pltpu.VMEM((1, H), jnp.float32),                     # val trace
            pltpu.VMEM((feedback_delay, I), jnp.float32),        # inhib delay ring
            pltpu.VMEM((C, H), jnp.float32),                     # chunk keys
            pltpu.VMEM((C, H), jnp.float32),                     # chunk key traces
            pltpu.VMEM((C, H), jnp.float32),                     # chunk val traces
            pltpu.VMEM((C, H), jnp.float32),                     # chunk base read
        ],
    )

    mem, key_seq, val_seq = pl.pallas_call(
        _memory_kernel,
        out_shape=out_shape,
        grid_spec=grid_spec,
        compiler_params=pltpu.CompilerParams(
            dimension_semantics=("parallel", "arbitrary"),       # batch ||, time serial
            vmem_limit_bytes=vmem_limit),
    )(ik, iv, vei_t, vie_t)

    return mem, key_seq, val_seq


# ----------------------------------------------------------------------------
# Pure-JAX reference (mirrors the PyTorch forward, recall=False)
# ----------------------------------------------------------------------------
def reference_forward(x, W, V_ei, V_ie, feedback_delay):
    B, T, _ = x.shape
    H = W.shape[0] // 2
    I = V_ei.shape[0]
    key_v = jnp.zeros((B, H)); val_v = jnp.zeros((B, H)); vinh_v = jnp.zeros((B, I))
    key_tr = jnp.zeros((B, H)); val_tr = jnp.zeros((B, H))
    buf = jnp.zeros((B, feedback_delay, I))
    mem = jnp.zeros((B, H, H))
    i = x @ W.T
    ik, iv = i[..., :H], i[..., H:]
    keys, vals = [], []
    for t in range(T):
        key_v = BETA * key_v + ik[:, t]
        key = jnp.tanh(key_v)
        ikv = READ_GAIN * jnp.sum(mem * key[:, None, :], axis=2)
        vinh_out = buf[:, t % feedback_delay] @ V_ie.T
        val_v = BETA * val_v + (iv[:, t] + ikv + vinh_out)
        val = jnp.tanh(val_v)
        vinh_v = BETA * vinh_v + val @ V_ei.T
        vinh = jnp.tanh(vinh_v)
        key_tr = DECAY_TRACE * key_tr + (1.0 - DECAY_TRACE) * key
        val_tr = DECAY_TRACE * val_tr + (1.0 - DECAY_TRACE) * val
        mem = mem + ETA * val_tr[:, :, None] * key_tr[:, None, :]
        buf = buf.at[:, t % feedback_delay].set(vinh)
        keys.append(key); vals.append(val)
    return mem, jnp.stack(keys, 1), jnp.stack(vals, 1)


def _xavier_uniform(key, shape, gain):
    fan_out, fan_in = shape
    bound = gain * math.sqrt(6.0 / (fan_in + fan_out))
    return jax.random.uniform(key, shape, jnp.float32, -bound, bound)


if __name__ == "__main__":
    B, T, IN, H, INH, DELAY = 2, 16, 8, 32, 16, 3

    root = jax.random.PRNGKey(0)
    kx, kw, kei, kie = jax.random.split(root, 4)

    x = jax.random.normal(kx, (B, T, IN), jnp.float32)
    W = _xavier_uniform(kw, (2 * H, IN), math.sqrt(2.0))
    V_ei = _xavier_uniform(kei, (INH, H), math.sqrt(2.0))   # value_excitatory_inhibitory
    V_ie = _xavier_uniform(kie, (H, INH), math.sqrt(2.0))   # value_inhibitory_excitatory

    # time_chunk=8 -> two chunks of 8 steps: exercises the cross-chunk state carry,
    # the chunk-level Hebbian accumulation and the batch-parallel grid axis.
    mem, key_seq, val_seq = dual_inhibition_memory_forward(
        x, W, V_ei, V_ie, DELAY, time_chunk=8)
    jax.block_until_ready((mem, key_seq, val_seq))

    mem_ref, key_ref, val_ref = reference_forward(x, W, V_ei, V_ie, DELAY)

    assert mem.shape == (B, H, H)
    assert key_seq.shape == (B, T, H) and val_seq.shape == (B, T, H)
    assert jnp.allclose(mem, mem_ref, atol=1e-4, rtol=1e-4)
    assert jnp.allclose(key_seq, key_ref, atol=1e-4, rtol=1e-4)
    assert jnp.allclose(val_seq, val_ref, atol=1e-4, rtol=1e-4)

    print("KERNEL_OK")
</pallas_src>

<mosaic_0001>
module attributes {stable_mosaic.version = 11 : i64} {
  func.func @_memory_kernel(%arg0: i32, %arg1: i32, %arg2: memref<1x8x32xf32, #tpu.memory_space<vmem>>, %arg3: memref<1x8x32xf32, #tpu.memory_space<vmem>>, %arg4: memref<32x16xf32, #tpu.memory_space<vmem>>, %arg5: memref<16x32xf32, #tpu.memory_space<vmem>>, %arg6: memref<1x32x32xf32, #tpu.memory_space<vmem>>, %arg7: memref<1x8x32xf32, #tpu.memory_space<vmem>>, %arg8: memref<1x8x32xf32, #tpu.memory_space<vmem>>, %arg9: memref<1x32xf32, #tpu.memory_space<vmem>>, %arg10: memref<1x32xf32, #tpu.memory_space<vmem>>, %arg11: memref<1x16xf32, #tpu.memory_space<vmem>>, %arg12: memref<1x32xf32, #tpu.memory_space<vmem>>, %arg13: memref<1x32xf32, #tpu.memory_space<vmem>>, %arg14: memref<3x16xf32, #tpu.memory_space<vmem>>, %arg15: memref<8x32xf32, #tpu.memory_space<vmem>>, %arg16: memref<8x32xf32, #tpu.memory_space<vmem>>, %arg17: memref<8x32xf32, #tpu.memory_space<vmem>>, %arg18: memref<8x32xf32, #tpu.memory_space<vmem>>) attributes {dimension_semantics = [#tpu.dimension_semantics<parallel>, #tpu.dimension_semantics<arbitrary>], iteration_bounds = array<i64: 2, 2>, scalar_prefetch = 0 : i64, scratch_operands = 10 : i64, tpu.core_type = #tpu.core_type<tc>, window_params = [{transform_indices = @transform_0, window_bounds = array<i64: 1, 8, 32>}, {transform_indices = @transform_1, window_bounds = array<i64: 1, 8, 32>}, {pipeline_mode = #tpu.pipeline_mode<synchronous>, transform_indices = @transform_2, window_bounds = array<i64: 32, 16>}, {pipeline_mode = #tpu.pipeline_mode<synchronous>, transform_indices = @transform_3, window_bounds = array<i64: 16, 32>}, {transform_indices = @transform_4, window_bounds = array<i64: 1, 32, 32>}, {transform_indices = @transform_5, window_bounds = array<i64: 1, 8, 32>}, {transform_indices = @transform_6, window_bounds = array<i64: 1, 8, 32>}]} {
    %c0_i32 = arith.constant 0 : i32
    %0 = arith.cmpi eq, %arg1, %c0_i32 : i32
    %1 = arith.extui %0 : i1 to i32
    %c0_i32_0 = arith.constant 0 : i32
    %2 = arith.cmpi ne, %1, %c0_i32_0 : i32
    scf.if %2 {
      %cst_34 = arith.constant 0.000000e+00 : f32
      %29 = vector.broadcast %cst_34 : f32 to vector<32x32xf32>
      %c0_35 = arith.constant 0 : index
      %c0_36 = arith.constant 0 : index
      %c0_37 = arith.constant 0 : index
      %30 = vector.load %arg6[%c0_35, %c0_36, %c0_37] : memref<1x32x32xf32, #tpu.memory_space<vmem>>, vector<1x32x32xf32>
      %31 = vector.shape_cast %30 : vector<1x32x32xf32> to vector<32x32xf32>
      %32 = vector.shape_cast %29 : vector<32x32xf32> to vector<1x32x32xf32>
      tpu.vector_store %arg6[%c0_35, %c0_36, %c0_37], %32 {strides = array<i32>} : memref<1x32x32xf32, #tpu.memory_space<vmem>>, vector<1x32x32xf32>,
      %cst_38 = arith.constant 0.000000e+00 : f32
      %33 = vector.broadcast %cst_38 : f32 to vector<1x32xf32>
      %c0_39 = arith.constant 0 : index
      %c0_40 = arith.constant 0 : index
      %34 = vector.load %arg9[%c0_39, %c0_40] : memref<1x32xf32, #tpu.memory_space<vmem>>, vector<1x32xf32>
      tpu.vector_store %arg9[%c0_39, %c0_40], %33 {strides = array<i32>} : memref<1x32xf32, #tpu.memory_space<vmem>>, vector<1x32xf32>,
      %cst_41 = arith.constant 0.000000e+00 : f32
      %35 = vector.broadcast %cst_41 : f32 to vector<1x32xf32>
      %c0_42 = arith.constant 0 : index
      %c0_43 = arith.constant 0 : index
      %36 = vector.load %arg10[%c0_42, %c0_43] : memref<1x32xf32, #tpu.memory_space<vmem>>, vector<1x32xf32>
      tpu.vector_store %arg10[%c0_42, %c0_43], %35 {strides = array<i32>} : memref<1x32xf32, #tpu.memory_space<vmem>>, vector<1x32xf32>,
      %cst_44 = arith.constant 0.000000e+00 : f32
      %37 = vector.broadcast %cst_44 : f32 to vector<1x16xf32>
      %c0_45 = arith.constant 0 : index
      %c0_46 = arith.constant 0 : index
      %38 = vector.load %arg11[%c0_45, %c0_46] : memref<1x16xf32, #tpu.memory_space<vmem>>, vector<1x16xf32>
      tpu.vector_store %arg11[%c0_45, %c0_46], %37 {strides = array<i32>} : memref<1x16xf32, #tpu.memory_space<vmem>>, vector<1x16xf32>,
      %cst_47 = arith.constant 0.000000e+00 : f32
      %39 = vector.broadcast %cst_47 : f32 to vector<1x32xf32>
      %c0_48 = arith.constant 0 : index
      %c0_49 = arith.constant 0 : index
      %40 = vector.load %arg12[%c0_48, %c0_49] : memref<1x32xf32, #tpu.memory_space<vmem>>, vector<1x32xf32>
      tpu.vector_store %arg12[%c0_48, %c0_49], %39 {strides = array<i32>} : memref<1x32xf32, #tpu.memory_space<vmem>>, vector<1x32xf32>,
      %cst_50 = arith.constant 0.000000e+00 : f32
      %41 = vector.broadcast %cst_50 : f32 to vector<1x32xf32>
      %c0_51 = arith.constant 0 : index
      %c0_52 = arith.constant 0 : index
      %42 = vector.load %arg13[%c0_51, %c0_52] : memref<1x32xf32, #tpu.memory_space<vmem>>, vector<1x32xf32>
      tpu.vector_store %arg13[%c0_51, %c0_52], %41 {strides = array<i32>} : memref<1x32xf32, #tpu.memory_space<vmem>>, vector<1x32xf32>,
      %cst_53 = arith.constant 0.000000e+00 : f32
      %43 = vector.broadcast %cst_53 : f32 to vector<3x16xf32>
      %c0_54 = arith.constant 0 : index
      %c0_55 = arith.constant 0 : index
      %44 = vector.load %arg14[%c0_54, %c0_55] : memref<3x16xf32, #tpu.memory_space<vmem>>, vector<3x16xf32>
      tpu.vector_store %arg14[%c0_54, %c0_55], %43 {strides = array<i32>} : memref<3x16xf32, #tpu.memory_space<vmem>>, vector<3x16xf32>,
    } else {
    }
    %c0_i32_1 = arith.constant 0 : i32
    %c8_i32 = arith.constant 8 : i32
    %3 = arith.addi %c0_i32_1, %c8_i32 : i32
    %c1_i32 = arith.constant 1 : i32
    scf.for %arg19 = %c0_i32_1 to %3 step %c1_i32  : i32 {
      %c0_34 = arith.constant 0 : index
      %29 = arith.index_cast %arg19 : i32 to index
      %c0_35 = arith.constant 0 : index
      %30 = vector.load %arg2[%c0_34, %29, %c0_35] : memref<1x8x32xf32, #tpu.memory_space<vmem>>, vector<1x1x32xf32>
      %31 = vector.shape_cast %30 : vector<1x1x32xf32> to vector<1x32xf32>
      %c0_36 = arith.constant 0 : index
      %c0_37 = arith.constant 0 : index
      %32 = vector.load %arg9[%c0_36, %c0_37] : memref<1x32xf32, #tpu.memory_space<vmem>>, vector<1x32xf32>
      %cst_38 = arith.constant 0.899999976 : f32
      %33 = vector.broadcast %cst_38 : f32 to vector<1x32xf32>
      %34 = arith.mulf %33, %32 : vector<1x32xf32>
      %35 = arith.addf %34, %31 : vector<1x32xf32>
      %36 = math.tanh %35 : vector<1x32xf32>
      %c0_39 = arith.constant 0 : index
      %c0_40 = arith.constant 0 : index
      %37 = vector.load %arg9[%c0_39, %c0_40] : memref<1x32xf32, #tpu.memory_space<vmem>>, vector<1x32xf32>
      tpu.vector_store %arg9[%c0_39, %c0_40], %35 {strides = array<i32>} : memref<1x32xf32, #tpu.memory_space<vmem>>, vector<1x32xf32>,
      %c0_41 = arith.constant 0 : index
      %c0_42 = arith.constant 0 : index
      %38 = vector.load %arg12[%c0_41, %c0_42] : memref<1x32xf32, #tpu.memory_space<vmem>>, vector<1x32xf32>
      %cst_43 = arith.constant 0.951229453 : f32
      %39 = vector.broadcast %cst_43 : f32 to vector<1x32xf32>
      %40 = arith.mulf %39, %38 : vector<1x32xf32>
      %cst_44 = arith.constant 0.0487705767 : f32
      %41 = vector.broadcast %cst_44 : f32 to vector<1x32xf32>
      %42 = arith.mulf %41, %36 : vector<1x32xf32>
      %43 = arith.addf %40, %42 : vector<1x32xf32>
      %c0_45 = arith.constant 0 : index
      %c0_46 = arith.constant 0 : index
      %44 = vector.load %arg12[%c0_45, %c0_46] : memref<1x32xf32, #tpu.memory_space<vmem>>, vector<1x32xf32>
      tpu.vector_store %arg12[%c0_45, %c0_46], %43 {strides = array<i32>} : memref<1x32xf32, #tpu.memory_space<vmem>>, vector<1x32xf32>,
      %45 = arith.index_cast %arg19 : i32 to index
      %c0_47 = arith.constant 0 : index
      %46 = vector.load %arg15[%45, %c0_47] : memref<8x32xf32, #tpu.memory_space<vmem>>, vector<1x32xf32>
      tpu.vector_store %arg15[%45, %c0_47], %36 {strides = array<i32>} : memref<8x32xf32, #tpu.memory_space<vmem>>, vector<1x32xf32>,
      %47 = arith.index_cast %arg19 : i32 to index
      %c0_48 = arith.constant 0 : index
      %48 = vector.load %arg16[%47, %c0_48] : memref<8x32xf32, #tpu.memory_space<vmem>>, vector<1x32xf32>
      tpu.vector_store %arg16[%47, %c0_48], %43 {strides = array<i32>} : memref<8x32xf32, #tpu.memory_space<vmem>>, vector<1x32xf32>,
    }
    %c8_i32_2 = arith.constant 8 : i32
    %c0 = arith.constant 0 : index
    %c0_3 = arith.constant 0 : index
    %4 = vector.load %arg15[%c0, %c0_3] : memref<8x32xf32, #tpu.memory_space<vmem>>, vector<8x32xf32>
    %c0_4 = arith.constant 0 : index
    %c0_5 = arith.constant 0 : index
    %c0_6 = arith.constant 0 : index
    %5 = vector.load %arg7[%c0_4, %c0_5, %c0_6] : memref<1x8x32xf32, #tpu.memory_space<vmem>>, vector<1x8x32xf32>
    %6 = vector.shape_cast %5 : vector<1x8x32xf32> to vector<8x32xf32>
    %7 = vector.shape_cast %4 : vector<8x32xf32> to vector<1x8x32xf32>
    tpu.vector_store %arg7[%c0_4, %c0_5, %c0_6], %7 {strides = array<i32>} : memref<1x8x32xf32, #tpu.memory_space<vmem>>, vector<1x8x32xf32>,
    %c0_7 = arith.constant 0 : index
    %c0_8 = arith.constant 0 : index
    %8 = vector.load %arg15[%c0_7, %c0_8] : memref<8x32xf32, #tpu.memory_space<vmem>>, vector<8x32xf32>
    %c0_9 = arith.constant 0 : index
    %c0_10 = arith.constant 0 : index
    %c0_11 = arith.constant 0 : index
    %9 = vector.load %arg6[%c0_9, %c0_10, %c0_11] : memref<1x32x32xf32, #tpu.memory_space<vmem>>, vector<1x32x32xf32>
    %10 = vector.shape_cast %9 : vector<1x32x32xf32> to vector<32x32xf32>
    "tpu.trace_start"() <{level = 10 : i32, message = "tj,ij->ti"}> : () -> ()
    %cst = arith.constant dense<0.000000e+00> : vector<8x32xf32>
    %11 = tpu.matmul %8, %10, %cst {dimension_numbers = #tpu.dot_dimension_numbers<[1], [1], [0], [0], [0, 0, 1, 0], [], []>, precision = #tpu.contract_precision<fp32>} : vector<8x32xf32>, vector<32x32xf32>, vector<8x32xf32> -> vector<8x32xf32>
    "tpu.trace_stop"() : () -> ()
    %cst_12 = arith.constant 2.000000e-01 : f32
    %12 = vector.broadcast %cst_12 : f32 to vector<8x32xf32>
    %13 = arith.mulf %12, %11 : vector<8x32xf32>
    %c0_13 = arith.constant 0 : index
    %c0_14 = arith.constant 0 : index
    %14 = vector.load %arg18[%c0_13, %c0_14] : memref<8x32xf32, #tpu.memory_space<vmem>>, vector<8x32xf32>
    tpu.vector_store %arg18[%c0_13, %c0_14], %13 {strides = array<i32>} : memref<8x32xf32, #tpu.memory_space<vmem>>, vector<8x32xf32>,
    %cst_15 = arith.constant 0.000000e+00 : f32
    %15 = vector.broadcast %cst_15 : f32 to vector<8x32xf32>
    %c0_16 = arith.constant 0 : index
    %c0_17 = arith.constant 0 : index
    %16 = vector.load %arg17[%c0_16, %c0_17] : memref<8x32xf32, #tpu.memory_space<vmem>>, vector<8x32xf32>
    tpu.vector_store %arg17[%c0_16, %c0_17], %15 {strides = array<i32>} : memref<8x32xf32, #tpu.memory_space<vmem>>, vector<8x32xf32>,
    %c0_i32_18 = arith.constant 0 : i32
    %c8_i32_19 = arith.constant 8 : i32
    %17 = arith.addi %c0_i32_18, %c8_i32_19 : i32
    %c1_i32_20 = arith.constant 1 : i32
    scf.for %arg19 = %c0_i32_18 to %17 step %c1_i32_20  : i32 {
      %c8_i32_34 = arith.constant 8 : i32
      %29 = arith.muli %arg1, %c8_i32_34 : i32
      %30 = arith.addi %29, %arg19 : i32
      %c3_i32 = arith.constant 3 : i32
      %c0_i32_35 = arith.constant 0 : i32
      %31 = arith.cmpi eq, %c3_i32, %c0_i32_35 : i32
      %c1_i32_36 = arith.constant 1 : i32
      %32 = arith.select %31, %c1_i32_36, %c3_i32 : i32
      %33 = arith.remsi %30, %32 : i32
      %c0_i32_37 = arith.constant 0 : i32
      %34 = arith.cmpi ne, %33, %c0_i32_37 : i32
      %c0_i32_38 = arith.constant 0 : i32
      %35 = arith.cmpi slt, %33, %c0_i32_38 : i32
      %c0_i32_39 = arith.constant 0 : i32
      %36 = arith.cmpi slt, %32, %c0_i32_39 : i32
      %37 = arith.xori %35, %36 : i1
      %38 = arith.andi %37, %34 : i1
      %39 = arith.addi %33, %32 : i32
      %40 = arith.select %38, %39, %33 : i32
      %41 = arith.index_cast %40 : i32 to index
      %c0_40 = arith.constant 0 : index
      %42 = vector.load %arg14[%41, %c0_40] : memref<3x16xf32, #tpu.memory_space<vmem>>, vector<1x16xf32>
      %c0_41 = arith.constant 0 : index
      %c0_42 = arith.constant 0 : index
      %43 = vector.load %arg5[%c0_41, %c0_42] : memref<16x32xf32, #tpu.memory_space<vmem>>, vector<16x32xf32>
      %cst_43 = arith.constant dense<0.000000e+00> : vector<1x32xf32>
      %44 = tpu.matmul %42, %43, %cst_43 {dimension_numbers = #tpu.dot_dimension_numbers<[1], [0], [0], [1], [0, 0, 1, 1], [], []>, precision = #tpu.contract_precision<fp32>} : vector<1x16xf32>, vector<16x32xf32>, vector<1x32xf32> -> vector<1x32xf32>
      %45 = arith.index_cast %arg19 : i32 to index
      %c0_44 = arith.constant 0 : index
      %46 = vector.load %arg15[%45, %c0_44] : memref<8x32xf32, #tpu.memory_space<vmem>>, vector<1x32xf32>
      %c0_45 = arith.constant 0 : index
      %c0_46 = arith.constant 0 : index
      %47 = vector.load %arg16[%c0_45, %c0_46] : memref<8x32xf32, #tpu.memory_space<vmem>>, vector<8x32xf32>
      %48 = vector.broadcast %46 : vector<1x32xf32> to vector<8x32xf32>
      %49 = arith.mulf %47, %48 : vector<8x32xf32>
      %cst_47 = arith.constant dense<0.000000e+00> : vector<8xf32>
      %50 = vector.multi_reduction <add>, %49, %cst_47 [1] : vector<8x32xf32> to vector<8xf32>
      %51 = vector.shape_cast %50 : vector<8xf32> to vector<8x1xf32>
      %c0_48 = arith.constant 0 : index
      %c0_49 = arith.constant 0 : index
      %52 = vector.load %arg17[%c0_48, %c0_49] : memref<8x32xf32, #tpu.memory_space<vmem>>, vector<8x32xf32>
      %53 = vector.broadcast %51 : vector<8x1xf32> to vector<8x32xf32>
      %54 = arith.mulf %52, %53 : vector<8x32xf32>
      %cst_50 = arith.constant dense<0.000000e+00> : vector<32xf32>
      %55 = vector.multi_reduction <add>, %54, %cst_50 [0] : vector<8x32xf32> to vector<32xf32>
      %56 = vector.shape_cast %55 : vector<32xf32> to vector<1x32xf32>
      %c0_51 = arith.constant 0 : index
      %57 = arith.index_cast %arg19 : i32 to index
      %c0_52 = arith.constant 0 : index
      %58 = vector.load %arg3[%c0_51, %57, %c0_52] : memref<1x8x32xf32, #tpu.memory_space<vmem>>, vector<1x1x32xf32>
      %59 = vector.shape_cast %58 : vector<1x1x32xf32> to vector<1x32xf32>
      %60 = arith.index_cast %arg19 : i32 to index
      %c0_53 = arith.constant 0 : index
      %61 = vector.load %arg18[%60, %c0_53] : memref<8x32xf32, #tpu.memory_space<vmem>>, vector<1x32xf32>
      %62 = arith.addf %59, %61 : vector<1x32xf32>
      %cst_54 = arith.constant 2.000000e-02 : f32
      %63 = vector.broadcast %cst_54 : f32 to vector<1x32xf32>
      %64 = arith.mulf %63, %56 : vector<1x32xf32>
      %65 = arith.addf %62, %64 : vector<1x32xf32>
      %66 = arith.addf %65, %44 : vector<1x32xf32>
      %c0_55 = arith.constant 0 : index
      %c0_56 = arith.constant 0 : index
      %67 = vector.load %arg10[%c0_55, %c0_56] : memref<1x32xf32, #tpu.memory_space<vmem>>, vector<1x32xf32>
      %cst_57 = arith.constant 0.899999976 : f32
      %68 = vector.broadcast %cst_57 : f32 to vector<1x32xf32>
      %69 = arith.mulf %68, %67 : vector<1x32xf32>
      %70 = arith.addf %69, %66 : vector<1x32xf32>
      %71 = math.tanh %70 : vector<1x32xf32>
      %c0_58 = arith.constant 0 : index
      %c0_59 = arith.constant 0 : index
      %72 = vector.load %arg10[%c0_58, %c0_59] : memref<1x32xf32, #tpu.memory_space<vmem>>, vector<1x32xf32>
      tpu.vector_store %arg10[%c0_58, %c0_59], %70 {strides = array<i32>} : memref<1x32xf32, #tpu.memory_space<vmem>>, vector<1x32xf32>,
      %c0_60 = arith.constant 0 : index
      %c0_61 = arith.constant 0 : index
      %73 = vector.load %arg4[%c0_60, %c0_61] : memref<32x16xf32, #tpu.memory_space<vmem>>, vector<32x16xf32>
      %cst_62 = arith.constant dense<0.000000e+00> : vector<1x16xf32>
      %74 = tpu.matmul %71, %73, %cst_62 {dimension_numbers = #tpu.dot_dimension_numbers<[1], [0], [0], [1], [0, 0, 1, 1], [], []>, precision = #tpu.contract_precision<fp32>} : vector<1x32xf32>, vector<32x16xf32>, vector<1x16xf32> -> vector<1x16xf32>
      %c0_63 = arith.constant 0 : index
      %c0_64 = arith.constant 0 : index
      %75 = vector.load %arg11[%c0_63, %c0_64] : memref<1x16xf32, #tpu.memory_space<vmem>>, vector<1x16xf32>
      %cst_65 = arith.constant 0.899999976 : f32
      %76 = vector.broadcast %cst_65 : f32 to vector<1x16xf32>
      %77 = arith.mulf %76, %75 : vector<1x16xf32>
      %78 = arith.addf %77, %74 : vector<1x16xf32>
      %79 = math.tanh %78 : vector<1x16xf32>
      %80 = arith.index_cast %40 : i32 to index
      %c0_66 = arith.constant 0 : index
      %81 = vector.load %arg14[%80, %c0_66] : memref<3x16xf32, #tpu.memory_space<vmem>>, vector<1x16xf32>
      tpu.vector_store %arg14[%80, %c0_66], %79 {strides = array<i32>} : memref<3x16xf32, #tpu.memory_space<vmem>>, vector<1x16xf32>,
      %c0_67 = arith.constant 0 : index
      %c0_68 = arith.constant 0 : index
      %82 = vector.load %arg11[%c0_67, %c0_68] : memref<1x16xf32, #tpu.memory_space<vmem>>, vector<1x16xf32>
      tpu.vector_store %arg11[%c0_67, %c0_68], %78 {strides = array<i32>} : memref<1x16xf32, #tpu.memory_space<vmem>>, vector<1x16xf32>,
      %c0_69 = arith.constant 0 : index
      %c0_70 = arith.constant 0 : index
      %83 = vector.load %arg13[%c0_69, %c0_70] : memref<1x32xf32, #tpu.memory_space<vmem>>, vector<1x32xf32>
      %cst_71 = arith.constant 0.951229453 : f32
      %84 = vector.broadcast %cst_71 : f32 to vector<1x32xf32>
      %85 = arith.mulf %84, %83 : vector<1x32xf32>
      %cst_72 = arith.constant 0.0487705767 : f32
      %86 = vector.broadcast %cst_72 : f32 to vector<1x32xf32>
      %87 = arith.mulf %86, %71 : vector<1x32xf32>
      %88 = arith.addf %85, %87 : vector<1x32xf32>
      %c0_73 = arith.constant 0 : index
      %c0_74 = arith.constant 0 : index
      %89 = vector.load %arg13[%c0_73, %c0_74] : memref<1x32xf32, #tpu.memory_space<vmem>>, vector<1x32xf32>
      tpu.vector_store %arg13[%c0_73, %c0_74], %88 {strides = array<i32>} : memref<1x32xf32, #tpu.memory_space<vmem>>, vector<1x32xf32>,
      %90 = arith.index_cast %arg19 : i32 to index
      %c0_75 = arith.constant 0 : index
      %91 = vector.load %arg17[%90, %c0_75] : memref<8x32xf32, #tpu.memory_space<vmem>>, vector<1x32xf32>
      tpu.vector_store %arg17[%90, %c0_75], %88 {strides = array<i32>} : memref<8x32xf32, #tpu.memory_space<vmem>>, vector<1x32xf32>,
      %c0_76 = arith.constant 0 : index
      %92 = arith.index_cast %arg19 : i32 to index
      %c0_77 = arith.constant 0 : index
      %93 = vector.load %arg8[%c0_76, %92, %c0_77] : memref<1x8x32xf32, #tpu.memory_space<vmem>>, vector<1x1x32xf32>
      %94 = vector.shape_cast %93 : vector<1x1x32xf32> to vector<1x32xf32>
      %95 = vector.shape_cast %71 : vector<1x32xf32> to vector<1x1x32xf32>
      tpu.vector_store %arg8[%c0_76, %92, %c0_77], %95 {strides = array<i32>} : memref<1x8x32xf32, #tpu.memory_space<vmem>>, vector<1x1x32xf32>,
    }
    %c8_i32_21 = arith.constant 8 : i32
    %c0_22 = arith.constant 0 : index
    %c0_23 = arith.constant 0 : index
    %c0_24 = arith.constant 0 : index
    %18 = vector.load %arg6[%c0_22, %c0_23, %c0_24] : memref<1x32x32xf32, #tpu.memory_space<vmem>>, vector<1x32x32xf32>
    %19 = vector.shape_cast %18 : vector<1x32x32xf32> to vector<32x32xf32>
    %c0_25 = arith.constant 0 : index
    %c0_26 = arith.constant 0 : index
    %20 = vector.load %arg17[%c0_25, %c0_26] : memref<8x32xf32, #tpu.memory_space<vmem>>, vector<8x32xf32>
    %c0_27 = arith.constant 0 : index
    %c0_28 = arith.constant 0 : index
    %21 = vector.load %arg16[%c0_27, %c0_28] : memref<8x32xf32, #tpu.memory_space<vmem>>, vector<8x32xf32>
    "tpu.trace_start"() <{level = 10 : i32, message = "ti,tj->ij"}> : () -> ()
    %cst_29 = arith.constant dense<0.000000e+00> : vector<32x32xf32>
    %22 = tpu.matmul %20, %21, %cst_29 {dimension_numbers = #tpu.dot_dimension_numbers<[0], [0], [1], [1], [0, 1, 1, 1], [], []>, precision = #tpu.contract_precision<fp32>} : vector<8x32xf32>, vector<8x32xf32>, vector<32x32xf32> -> vector<32x32xf32>
    "tpu.trace_stop"() : () -> ()
    %cst_30 = arith.constant 1.000000e-01 : f32
    %23 = vector.broadcast %cst_30 : f32 to vector<32x32xf32>
    %24 = arith.mulf %23, %22 : vector<32x32xf32>
    %25 = arith.addf %19, %24 : vector<32x32xf32>
    %c0_31 = arith.constant 0 : index
    %c0_32 = arith.constant 0 : index
    %c0_33 = arith.constant 0 : index
    %26 = vector.load %arg6[%c0_31, %c0_32, %c0_33] : memref<1x32x32xf32, #tpu.memory_space<vmem>>, vector<1x32x32xf32>
    %27 = vector.shape_cast %26 : vector<1x32x32xf32> to vector<32x32xf32>
    %28 = vector.shape_cast %25 : vector<32x32xf32> to vector<1x32x32xf32>
    tpu.vector_store %arg6[%c0_31, %c0_32, %c0_33], %28 {strides = array<i32>} : memref<1x32x32xf32, #tpu.memory_space<vmem>>, vector<1x32x32xf32>,
    return
  }
  func.func @transform_0(%arg0: i32, %arg1: i32) -> (i32, i32, i32) {
    %c0_i32 = arith.constant 0 : i32
    %c0_i32_0 = arith.constant 0 : i32
    return %arg0, %arg1, %c0_i32 : i32, i32, i32
  }
  func.func @transform_1(%arg0: i32, %arg1: i32) -> (i32, i32, i32) {
    %c0_i32 = arith.constant 0 : i32
    %c0_i32_0 = arith.constant 0 : i32
    return %arg0, %arg1, %c0_i32 : i32, i32, i32
  }
  func.func @transform_2(%arg0: i32, %arg1: i32) -> (i32, i32) {
    %c0_i32 = arith.constant 0 : i32
    %c0_i32_0 = arith.constant 0 : i32
    %c0_i32_1 = arith.constant 0 : i32
    return %c0_i32, %c0_i32_0 : i32, i32
  }
  func.func @transform_3(%arg0: i32, %arg1: i32) -> (i32, i32) {
    %c0_i32 = arith.constant 0 : i32
    %c0_i32_0 = arith.constant 0 : i32
    %c0_i32_1 = arith.constant 0 : i32
    return %c0_i32, %c0_i32_0 : i32, i32
  }
  func.func @transform_4(%arg0: i32, %arg1: i32) -> (i32, i32, i32) {
    %c0_i32 = arith.constant 0 : i32
    %c0_i32_0 = arith.constant 0 : i32
    %c0_i32_1 = arith.constant 0 : i32
    return %arg0, %c0_i32, %c0_i32_0 : i32, i32, i32
  }
  func.func @transform_5(%arg0: i32, %arg1: i32) -> (i32, i32, i32) {
    %c0_i32 = arith.constant 0 : i32
    %c0_i32_0 = arith.constant 0 : i32
    return %arg0, %arg1, %c0_i32 : i32, i32, i32
  }
  func.func @transform_6(%arg0: i32, %arg1: i32) -> (i32, i32, i32) {
    %c0_i32 = arith.constant 0 : i32
    %c0_i32_0 = arith.constant 0 : i32
    return %arg0, %arg1, %c0_i32 : i32, i32, i32
  }
}

</mosaic_0001>

<llo_original>
// kernel: tpu_custom_call.1
$region0: #{tpu_custom_call.1}
  #allocation0 [shape = 'u32[]', space=smem, size = 0x4, offset = 0x4, fixed_abs, tag = 'smem constant byte address 0x4 - core index']
  #allocation1 [shape = 'u32[144,128]{1,0:T(1,128)}', space=vmem, size = 0x12000, scoped, tag = 'internal scratch']
  #allocation2 [shape = 'f32[1,32]{1,0:T(1,128)}', space=vmem, size = 0x200, scoped, tag = 'scratch operand']
  #allocation3 [shape = 'f32[1,32]{1,0:T(1,128)}', space=vmem, size = 0x200, scoped, tag = 'scratch operand']
  #allocation4 [shape = 'f32[1,16]{1,0:T(1,128)}', space=vmem, size = 0x200, scoped, tag = 'scratch operand']
  #allocation5 [shape = 'f32[1,32]{1,0:T(1,128)}', space=vmem, size = 0x200, scoped, tag = 'scratch operand']
  #allocation6 [shape = 'f32[1,32]{1,0:T(1,128)}', space=vmem, size = 0x200, scoped, tag = 'scratch operand']
  #allocation7 [shape = 'f32[3,16]{1,0:T(4,128)}', space=vmem, size = 0x800, scoped, tag = 'scratch operand']
  #allocation8 [shape = 'f32[8,32]{1,0:T(8,128)}', space=vmem, size = 0x1000, scoped, tag = 'scratch operand']
  #allocation9 [shape = 'f32[8,32]{1,0:T(8,128)}', space=vmem, size = 0x1000, scoped, tag = 'scratch operand']
  #allocation10 [shape = 'f32[8,32]{1,0:T(8,128)}', space=vmem, size = 0x1000, scoped, tag = 'scratch operand']
  #allocation11 [shape = 'f32[8,32]{1,0:T(8,128)}', space=vmem, size = 0x1000, scoped, tag = 'scratch operand']
  %s0 = inlined_call_operand.vmem [shape: f32[2,16,32], index: 0, kind: input, shape index: {}]
  %s1 = inlined_call_operand.hbm [shape: f32[2,16,32], index: 1, kind: input, shape index: {}]
  %s2 = inlined_call_operand.vmem [shape: f32[32,16], index: 2, kind: input, shape index: {}]
  %s3 = inlined_call_operand.vmem [shape: f32[16,32], index: 3, kind: input, shape index: {}]
  %s4 = inlined_call_operand.hbm [shape: f32[2,32,32], index: 4, kind: output, shape index: {0}]
  %s5 = inlined_call_operand.hbm [shape: f32[2,16,32], index: 5, kind: output, shape index: {1}]
  %s6 = inlined_call_operand.hbm [shape: f32[2,16,32], index: 6, kind: output, shape index: {2}]
  %7 = xla_tuple %s4, %s5, %s6
  %s8 = sld [smem:[#allocation0]]
  $region87: #{tpu_custom_call.1} parent=0
    _
  %s10 = ssub.s32 1, %s8
  %s11 = scalar_select 0, %s10, %s8
  $region1: #{tpu_custom_call.1} parent=0
    #allocation12 [shape = 'u8[8192]{0}', space=vmem, size = 0x2000, scoped, tag = 'input window, operand 1']
    #allocation13 [shape = 's32[2]{0}', space=sflag, size = 0x8, scoped, tag = 'scoped memory for tpu_custom_call.1']
    #allocation14 [shape = 's32[2]{0}', space=sflag, size = 0x8, scoped, tag = 'scoped memory for tpu_custom_call.1']
    #allocation15 [shape = 'u8[32768]{0}', space=vmem, size = 0x8000, scoped, tag = 'output window, operand 0']
    #allocation16 [shape = 'u8[8192]{0}', space=vmem, size = 0x2000, scoped, tag = 'output window, operand 1']
    #allocation17 [shape = 's32[2]{0}', space=sflag, size = 0x8, scoped, tag = 'scoped memory for tpu_custom_call.1']
    #allocation18 [shape = 'u8[8192]{0}', space=vmem, size = 0x2000, scoped, tag = 'output window, operand 2']
    %12 = vsyncpa [#allocation13], 0
    %s13 = scalar_lea.sflag [#allocation13], 1
    %14 = vsyncpa %s13, 0
    %15 = vsyncpa [#allocation14], 0
    %s16 = scalar_lea.sflag [#allocation14], 1
    %17 = vsyncpa %s16, 0
    %18 = vsyncpa [#allocation17], 0
    %s19 = scalar_lea.sflag [#allocation17], 1
    %20 = vsyncpa %s19, 0
    loop: start=0, step=1, limit=6
    $region2: #{tpu_custom_call.1} parent=1 // loop_pre_header
      _
    $region3: #{tpu_custom_call.1} parent=1 // loop_header
      %s22 = sphi 0, %s26
      %p23 = scmp.ge.s32.totalorder %s22, 6
      %s29 = sphi 0, %s41
      %s30 = sphi 0, %s37
      %s31 = sphi 0, %s29
      %s32 = sphi 0, %s30
      %s33 = sphi 0, %s31
      %s34 = sphi 0, %s32
      %s46 = sphi 0, %s48
      %s49 = sphi 0, %s46
      %s50 = sphi 0, %s49
      %s66 = sphi 0, %s50
      %s74 = sphi 0, %s76
      %s77 = sphi 0, %s74
      %s78 = sphi 0, %s77
      %s94 = sphi 0, %s78
      %s98 = sphi 0, %s98
      %s100 = sphi 0, %s98
      %s101 = sphi 0, %s100
      %s115 = sphi 0, %s101
      %s119 = sphi 0, %s119
      %s121 = sphi 0, %s119
      %s122 = sphi 0, %s121
      %s136 = sphi 0, %s122
      %s142 = sphi 0, %s144
      %s145 = sphi 0, %s142
      %s146 = sphi 0, %s145
      %s162 = sphi 0, %s146
      %s170 = sphi 0, %s172
      %s173 = sphi 0, %s170
      %s174 = sphi 0, %s173
      %s190 = sphi 0, %s174
      %s198 = sphi 0, %s200
      %s201 = sphi 0, %s198
      %s202 = sphi 0, %s201
      %s218 = sphi 0, %s202
    $region4: #{tpu_custom_call.1} parent=1 // loop_header_branch
      %25 = sbr.rel (%p23) target = $region8
    $region5: #{tpu_custom_call.1} parent=1 // loop_body
      %s27 = ssub.s32 %s22, 1
      %s28 = ssub.s32 %s22, 2
      %s35 = sadd.s32 1, %s30
      %p36 = scmp.ge.s32.totalorder %s35, 2
      %s37 = scalar_select %p36, 0, %s35
      %s38 = sadd.s32 1, %s29
      %s39 = scalar_select %p36, %s38, %s29
      %p40 = scmp.ge.s32.totalorder %s39, 2
      %s41 = scalar_select %p40, 0, %s39
      %s42 = ssub.s32 %s29, %s41
      %s43 = ssub.s32 %s30, %s37
      %s44 = sor.u32 %s42, %s43
      %p45 = scmp.eq.s32.totalorder %s44, 0
      %s47 = sadd.s32 %s46, 1
      %s48 = scalar_select %p45, %s46, %s47
      %p51 = pneg %p45
      %p52 = scmp.eq.s32.totalorder %s22, 3
      %p53 = por %p51, %p52
      %p54 = scmp.ne.s32.totalorder %s46, %s49
      %p55 = scmp.eq.s32.totalorder %s22, 0
      %p56 = por %p54, %p55
      %p57 = scmp.ne.s32.totalorder %s46, %s49
      %p58 = scmp.eq.s32.totalorder %s27, 3
      %p59 = por %p57, %p58
      %p60 = scmp.ne.s32.totalorder %s49, %s50
      %p61 = scmp.eq.s32.totalorder %s27, 0
      %p62 = por %p60, %p61
      %p63 = scmp.ne.s32.totalorder %s49, %s50
      %p64 = scmp.eq.s32.totalorder %s28, 3
      %p65 = por %p63, %p64
      %p67 = scmp.ne.s32.totalorder %s50, %s66
      %p68 = scmp.eq.s32.totalorder %s28, 0
      %p69 = por %p67, %p68
      %s70 = ssub.s32 %s29, %s41
      %s71 = ssub.s32 %s30, %s37
      %s72 = sor.u32 %s70, %s71
      %p73 = scmp.eq.s32.totalorder %s72, 0
      %s75 = sadd.s32 %s74, 1
      %s76 = scalar_select %p73, %s74, %s75
      %p79 = pneg %p73
      %p80 = scmp.eq.s32.totalorder %s22, 3
      %p81 = por %p79, %p80
      %p82 = scmp.ne.s32.totalorder %s74, %s77
      %p83 = scmp.eq.s32.totalorder %s22, 0
      %p84 = por %p82, %p83
      %p85 = scmp.ne.s32.totalorder %s74, %s77
      %p86 = scmp.eq.s32.totalorder %s27, 3
      %p87 = por %p85, %p86
      %p88 = scmp.ne.s32.totalorder %s77, %s78
      %p89 = scmp.eq.s32.totalorder %s27, 0
      %p90 = por %p88, %p89
      %p91 = scmp.ne.s32.totalorder %s77, %s78
      %p92 = scmp.eq.s32.totalorder %s28, 3
      %p93 = por %p91, %p92
      %p95 = scmp.ne.s32.totalorder %s78, %s94
      %p96 = scmp.eq.s32.totalorder %s28, 0
      %p97 = por %p95, %p96
      %s99 = sadd.s32 %s98, 1
      %p102 = scmp.eq.s32.totalorder %s22, 3
      %p103 = scmp.ne.s32.totalorder %s98, %s100
      %p104 = scmp.eq.s32.totalorder %s22, 0
      %p105 = por %p103, %p104
      %p106 = scmp.ne.s32.totalorder %s98, %s100
      %p107 = scmp.eq.s32.totalorder %s27, 3
      %p108 = por %p106, %p107
      %p109 = scmp.ne.s32.totalorder %s100, %s101
      %p110 = scmp.eq.s32.totalorder %s27, 0
      %p111 = por %p109, %p110
      %p112 = scmp.ne.s32.totalorder %s100, %s101
      %p113 = scmp.eq.s32.totalorder %s28, 3
      %p114 = por %p112, %p113
      %p116 = scmp.ne.s32.totalorder %s101, %s115
      %p117 = scmp.eq.s32.totalorder %s28, 0
      %p118 = por %p116, %p117
      %s120 = sadd.s32 %s119, 1
      %p123 = scmp.eq.s32.totalorder %s22, 3
      %p124 = scmp.ne.s32.totalorder %s119, %s121
      %p125 = scmp.eq.s32.totalorder %s22, 0
      %p126 = por %p124, %p125
      %p127 = scmp.ne.s32.totalorder %s119, %s121
      %p128 = scmp.eq.s32.totalorder %s27, 3
      %p129 = por %p127, %p128
      %p130 = scmp.ne.s32.totalorder %s121, %s122
      %p131 = scmp.eq.s32.totalorder %s27, 0
      %p132 = por %p130, %p131
      %p133 = scmp.ne.s32.totalorder %s121, %s122
      %p134 = scmp.eq.s32.totalorder %s28, 3
      %p135 = por %p133, %p134
      %p137 = scmp.ne.s32.totalorder %s122, %s136
      %p138 = scmp.eq.s32.totalorder %s28, 0
      %p139 = por %p137, %p138
      %s140 = ssub.s32 %s29, %s41
      %p141 = scmp.eq.s32.totalorder %s140, 0
      %s143 = sadd.s32 %s142, 1
      %s144 = scalar_select %p141, %s142, %s143
      %p147 = pneg %p141
      %p148 = scmp.eq.s32.totalorder %s22, 3
      %p149 = por %p147, %p148
      %p150 = scmp.ne.s32.totalorder %s142, %s145
      %p151 = scmp.eq.s32.totalorder %s22, 0
      %p152 = por %p150, %p151
      %p153 = scmp.ne.s32.totalorder %s142, %s145
      %p154 = scmp.eq.s32.totalorder %s27, 3
      %p155 = por %p153, %p154
      %p156 = scmp.ne.s32.totalorder %s145, %s146
      %p157 = scmp.eq.s32.totalorder %s27, 0
      %p158 = por %p156, %p157
      %p159 = scmp.ne.s32.totalorder %s145, %s146
      %p160 = scmp.eq.s32.totalorder %s28, 3
      %p161 = por %p159, %p160
      %p163 = scmp.ne.s32.totalorder %s146, %s162
      %p164 = scmp.eq.s32.totalorder %s28, 0
      %p165 = por %p163, %p164
      %s166 = ssub.s32 %s29, %s41
      %s167 = ssub.s32 %s30, %s37
      %s168 = sor.u32 %s166, %s167
      %p169 = scmp.eq.s32.totalorder %s168, 0
      %s171 = sadd.s32 %s170, 1
      %s172 = scalar_select %p169, %s170, %s171
      %p175 = pneg %p169
      %p176 = scmp.eq.s32.totalorder %s22, 3
      %p177 = por %p175, %p176
      %p178 = scmp.ne.s32.totalorder %s170, %s173
      %p179 = scmp.eq.s32.totalorder %s22, 0
      %p180 = por %p178, %p179
      %p181 = scmp.ne.s32.totalorder %s170, %s173
      %p182 = scmp.eq.s32.totalorder %s27, 3
      %p183 = por %p181, %p182
      %p184 = scmp.ne.s32.totalorder %s173, %s174
      %p185 = scmp.eq.s32.totalorder %s27, 0
      %p186 = por %p184, %p185
      %p187 = scmp.ne.s32.totalorder %s173, %s174
      %p188 = scmp.eq.s32.totalorder %s28, 3
      %p189 = por %p187, %p188
      %p191 = scmp.ne.s32.totalorder %s174, %s190
      %p192 = scmp.eq.s32.totalorder %s28, 0
      %p193 = por %p191, %p192
      %s194 = ssub.s32 %s29, %s41
      %s195 = ssub.s32 %s30, %s37
      %s196 = sor.u32 %s194, %s195
      %p197 = scmp.eq.s32.totalorder %s196, 0
      %s199 = sadd.s32 %s198, 1
      %s200 = scalar_select %p197, %s198, %s199
      %p203 = pneg %p197
      %p204 = scmp.eq.s32.totalorder %s22, 3
      %p205 = por %p203, %p204
      %p206 = scmp.ne.s32.totalorder %s198, %s201
      %p207 = scmp.eq.s32.totalorder %s22, 0
      %p208 = por %p206, %p207
      %p209 = scmp.ne.s32.totalorder %s198, %s201
      %p210 = scmp.eq.s32.totalorder %s27, 3
      %p211 = por %p209, %p210
      %p212 = scmp.ne.s32.totalorder %s201, %s202
      %p213 = scmp.eq.s32.totalorder %s27, 0
      %p214 = por %p212, %p213
      %p215 = scmp.ne.s32.totalorder %s201, %s202
      %p216 = scmp.eq.s32.totalorder %s28, 3
      %p217 = por %p215, %p216
      %p219 = scmp.ne.s32.totalorder %s202, %s218
      %p220 = scmp.eq.s32.totalorder %s28, 0
      %p221 = por %p219, %p220
      %p222 = scmp.le.s32.totalorder 1, %s22
      %p223 = scmp.lt.s32.totalorder %s22, 5
      %p224 = pnand %p222, %p223
      %p225 = pneg %p224
      // Predicated region
      $region9: #{tpu_custom_call.1} parent=5 // pred_check
        _
      $region10: #{tpu_custom_call.1} parent=5 // pred_check_branch
        %227 = sbr.rel (%p224) target = $region12
      $region11: #{tpu_custom_call.1} parent=5 // pred_region
        %s228 = ssub.s32 %s22, 1
        // Predicated region
        $region13: #{tpu_custom_call.1} parent=11 // pred_check
          %p229 = pneg %p111
        $region14: #{tpu_custom_call.1} parent=11 // pred_check_branch
          %231 = sbr.rel (%p229) target = $region16
        $region15: #{tpu_custom_call.1} parent=11 // pred_region
          _
        $region16: #{tpu_custom_call.1} parent=11 // pred_fallthru
          _
        // Predicated region
        $region17: #{tpu_custom_call.1} parent=11 // pred_check
          %p232 = pneg %p132
        $region18: #{tpu_custom_call.1} parent=11 // pred_check_branch
          %234 = sbr.rel (%p232) target = $region20
        $region19: #{tpu_custom_call.1} parent=11 // pred_region
          _
        $region20: #{tpu_custom_call.1} parent=11 // pred_fallthru
          _
      $region12: #{tpu_custom_call.1} parent=5 // pred_fallthru
        _
      %p235 = scmp.lt.s32.totalorder %s22, 4
      // Predicated region
      $region21: #{tpu_custom_call.1} parent=5 // pred_check
        %p236 = pneg %p235
      $region22: #{tpu_custom_call.1} parent=5 // pred_check_branch
        %238 = sbr.rel (%p236) target = $region24
      $region23: #{tpu_custom_call.1} parent=5 // pred_region
        // Predicated region
        $region25: #{tpu_custom_call.1} parent=23 // pred_check
          %p239 = pneg %p56
        $region26: #{tpu_custom_call.1} parent=23 // pred_check_branch
          %241 = sbr.rel (%p239) target = $region28
        $region27: #{tpu_custom_call.1} parent=23 // pred_region
          %p242 = scmp.lt.s32.totalorder %s29, 1
          %s243 = scalar_select %p242, %s29, 1
          %p244 = scmp.lt.s32.totalorder %s30, 1
          %s245 = scalar_select %p244, %s30, 1
          %s246 = smul.addr %s243, 2
          %s247 = sadd.s32 %s245, %s246
          %s248 = smul.addr %s247, 8
          %s249 = scalar_lea.vmem %s0, %s248
        $region28: #{tpu_custom_call.1} parent=23 // pred_fallthru
          _
        // Predicated region
        $region29: #{tpu_custom_call.1} parent=23 // pred_check
          %p250 = pneg %p84
        $region30: #{tpu_custom_call.1} parent=23 // pred_check_branch
          %252 = sbr.rel (%p250) target = $region32
        $region31: #{tpu_custom_call.1} parent=23 // pred_region
          %s253 = sand.u32 %s74, 1
          %s254 = scalar_lea.sflag [#allocation13], %s253
          %s255 = sand.u32 %s74, 1
          %s256 = smul.addr %s255, 8
          %s257 = scalar_lea.vmem [#allocation12], %s256
          %s259 = ssub.s32 128, 128
          %260 = vsyncadd %s254, %s259
          %s261 = smul.addr %s29, 2
          %s262 = sadd.s32 %s30, %s261
          %s263 = smul.addr %s262, 128
          %s264 = scalar_lea.hbm %s1, %s263
          %s266 = sshll.u32 %s257, 4
          %s267 = int_to_ptr.vmem [resolvable:$true] %s266
          %269 = dma.hbm_to_vmem [thread:$0]  %s264, 128, %s267, %s254
        $region32: #{tpu_custom_call.1} parent=23 // pred_fallthru
          _
      $region24: #{tpu_custom_call.1} parent=5 // pred_fallthru
        _
      %p270 = scmp.le.s32.totalorder 1, %s22
      %p271 = scmp.lt.s32.totalorder %s22, 5
      %p272 = pnand %p270, %p271
      %p273 = pneg %p272
      // Predicated region
      $region33: #{tpu_custom_call.1} parent=5 // pred_check
        _
      $region34: #{tpu_custom_call.1} parent=5 // pred_check_branch
        %275 = sbr.rel (%p272) target = $region36
      $region35: #{tpu_custom_call.1} parent=5 // pred_region
        %s276 = ssub.s32 %s22, 1
        %s277 = sand.u32 %s77, 1
        %s278 = scalar_lea.sflag [#allocation13], %s277
        %s279 = sand.u32 %s77, 1
        %s280 = smul.addr %s279, 8
        %s281 = scalar_lea.vmem [#allocation12], %s280
        // Predicated region
        $region37: #{tpu_custom_call.1} parent=35 // pred_check
          %p282 = pneg %p90
        $region38: #{tpu_custom_call.1} parent=35 // pred_check_branch
          %284 = sbr.rel (%p282) target = $region40
        $region39: #{tpu_custom_call.1} parent=35 // pred_region
          %285 = dma.done %s278, 128
        $region40: #{tpu_custom_call.1} parent=35 // pred_fallthru
          _
        %p286 = scmp.lt.s32.totalorder %s31, 1
        %s287 = scalar_select %p286, %s31, 1
        %p288 = scmp.lt.s32.totalorder %s32, 1
        %s289 = scalar_select %p288, %s32, 1
        %s290 = smul.addr %s287, 2
        %s291 = sadd.s32 %s289, %s290
        %s292 = smul.addr %s291, 8
        %s293 = scalar_lea.vmem %s0, %s292
        %p294 = pneg %p62
        %p295 = pneg %p59
        %s296 = sand.u32 %s77, 1
        %s297 = scalar_lea.sflag [#allocation13], %s296
        %s298 = sand.u32 %s77, 1
        %s299 = smul.addr %s298, 8
        %s300 = scalar_lea.vmem [#allocation12], %s299
        %p301 = pneg %p90
        %p302 = pneg %p87
        %p303 = pneg %p111
        %p304 = pneg %p108
        %p305 = pneg %p132
        %p306 = pneg %p129
        %p307 = pneg %p158
        %p308 = pneg %p155
        %s309 = sand.u32 %s145, 1
        %s310 = scalar_lea.sflag [#allocation14], %s309
        %s311 = sand.u32 %s145, 1
        %s312 = smul.addr %s311, 32
        %s313 = scalar_lea.vmem [#allocation15], %s312
        %p314 = pneg %p186
        %p315 = pneg %p183
        %s316 = sand.u32 %s27, 1
        %s317 = scalar_lea.sflag [#allocation17], %s316
        %s318 = sand.u32 %s173, 1
        %s319 = smul.addr %s318, 8
        %s320 = scalar_lea.vmem [#allocation16], %s319
        %p321 = pneg %p214
        %p322 = pneg %p211
        %s323 = sand.u32 %s27, 1
        %s324 = scalar_lea.sflag [#allocation17], %s323
        %s325 = sand.u32 %s201, 1
        %s326 = smul.addr %s325, 8
        %s327 = scalar_lea.vmem [#allocation18], %s326
        %p328 = scmp.lt.s32.totalorder %s31, 1
        %s329 = scalar_select %p328, %s31, 1
        %p330 = scmp.lt.s32.totalorder %s32, 1
        %s331 = scalar_select %p330, %s32, 1
        %s332 = smul.addr %s329, 2
        %s333 = sadd.s32 %s331, %s332
        %s334 = smul.addr %s333, 8
        %s335 = scalar_lea.vmem %s0, %s334
        %p336 = scmp.eq.s32.totalorder %s32, 0
        // Predicated region
        $region41: #{tpu_custom_call.1} parent=35 // pred_check
          %p337 = pneg %p336
        $region42: #{tpu_custom_call.1} parent=35 // pred_check_branch
          %339 = sbr.rel (%p337) target = $region44
        $region43: #{tpu_custom_call.1} parent=35 // pred_region
          %vm340 = vcmask 261120
          %341 = vst.msk [vmem:[%s313] sm:$0xff] %vm340, 0.0
          %342 = vst.msk [vmem:[%s313 + $0x8] sm:$0xff] %vm340, 0.0
          %343 = vst.msk [vmem:[%s313 + $0x10] sm:$0xff] %vm340, 0.0
          %344 = vst.msk [vmem:[%s313 + $0x18] sm:$0xff] %vm340, 0.0
          %vm345 = vcmask 253952
          %346 = vst.msk [vmem:[#allocation2] sm:$0x1] %vm345, 0.0
          %347 = vst.msk [vmem:[#allocation3] sm:$0x1] %vm345, 0.0
          %vm348 = vcmask 122880
          %349 = vst.msk [vmem:[#allocation4] sm:$0x1] %vm348, 0.0
          %350 = vst.msk [vmem:[#allocation5] sm:$0x1] %vm345, 0.0
          %351 = vst.msk [vmem:[#allocation6] sm:$0x1] %vm345, 0.0
          %vm352 = vcmask 124928
          %353 = vst.msk [vmem:[#allocation7] sm:$0x7] %vm352, 0.0
        $region44: #{tpu_custom_call.1} parent=35 // pred_fallthru
          _
        loop: start=0, step=1, limit=8
        $region45: #{tpu_custom_call.1} parent=35 // loop_pre_header
          _
        $region46: #{tpu_custom_call.1} parent=35 // loop_header
          %s355 = sphi 0, %s359
          %p356 = scmp.ge.s32.totalorder %s355, 8
        $region47: #{tpu_custom_call.1} parent=35 // loop_header_branch
          %358 = sbr.rel (%p356) target = $region51
        $region48: #{tpu_custom_call.1} parent=35 // loop_body
          %s360 = scalar_lea.vmem %s335, %s355
          %v361 = vld [vmem:[%s360] sm:$0x1]
          %v362 = vld [vmem:[#allocation2] sm:$0x1]
          %v363 = vmul.f32 %v362, 0.9
          %v364 = vadd.f32 %v363, %v361
          %v365 = vtanh.pop %v364
          %vm366 = vcmask 253952
          %367 = vst.msk [vmem:[#allocation2] sm:$0x1] %vm366, %v364
          %v368 = vld [vmem:[#allocation5] sm:$0x1]
          %v369 = vmul.f32 %v368, 0.95122945
          %v370 = vmul.f32 %v365, 0.048770577
          %v371 = vadd.f32 %v369, %v370
          %372 = vst.msk [vmem:[#allocation5] sm:$0x1] %vm366, %v371
          %s373 = scalar_lea.vmem [#allocation8], %s355
          %374 = vst.msk [vmem:[%s373] sm:$0x1] %vm366, %v365
          %s375 = scalar_lea.vmem [#allocation9], %s355
          %376 = vst.msk [vmem:[%s375] sm:$0x1] %vm366, %v371
        $region49: #{tpu_custom_call.1} parent=35 // loop_footer
          %s359 = sadd.s32 1, %s355
        $region50: #{tpu_custom_call.1} parent=35 // loop_footer_branch
          %354 = sbr.rel target = $region46
        $region51: #{tpu_custom_call.1} parent=35 // loop_exit
          _
        %v377 = vld [vmem:[#allocation8] sm:$0xff]
        %vm378 = vcmask 261120
        %379 = vst.msk [vmem:[%s320] sm:$0xff] %vm378, %v377
        %v380 = vld [vmem:[#allocation8] sm:$0xff]
        %v381 = vld [vmem:[%s313] sm:$0xff]
        %v382 = vld [vmem:[%s313 + $0x8] sm:$0xff]
        %v383 = vld [vmem:[%s313 + $0x10] sm:$0xff]
        %v384 = vld [vmem:[%s313 + $0x18] sm:$0xff]
        %v386 = vsel %vm378, %v380, 0
        %v389 = vsel %vm378, %v381, 0
        %v392 = vsel %vm378, %v382, 0
        %v395 = vsel %vm378, %v383, 0
        %v398 = vsel %vm378, %v384, 0
        %400 = vmatprep.subr.mxu0 0.0
        %v401 = vand.u32 %v389, 4294901760
        %402 = vmatpush1.xpose.msra.mxu0 %v401
        %403 = vmatprep.subr.mxu0 0.0
        %v404 = vand.u32 %v392, 4294901760
        %405 = vmatpush1.xpose.msra.mxu0 %v404
        %406 = vmatprep.subr.mxu0 0.0
        %v407 = vand.u32 %v395, 4294901760
        %408 = vmatpush1.xpose.msra.mxu0 %v407
        %409 = vmatprep.subr.mxu0 0.0
        %v410 = vand.u32 %v398, 4294901760
        %411 = vmatpush1.xpose.msra.mxu0 %v410
        %412 = vmatprep.subr.mxu0 0.0
        %413 = vmatpush1.xpose.msra.mxu0 0.0
        %414 = vmatprep.subr.mxu0 0.0
        %415 = vmatpush1.xpose.msra.mxu0 0.0
        %416 = vmatprep.subr.mxu0 0.0
        %417 = vmatpush1.xpose.msra.mxu0 0.0
        %418 = vmatprep.subr.mxu0 0.0
        %419 = vmatpush1.xpose.msra.mxu0 0.0
        %420 = vmatprep.subr.mxu0 0.0
        %421 = vmatpush1.xpose.msra.mxu0 0.0
        %422 = vmatprep.subr.mxu0 0.0
        %423 = vmatpush1.xpose.msra.mxu0 0.0
        %424 = vmatprep.subr.mxu0 0.0
        %425 = vmatpush1.xpose.msra.mxu0 0.0
        %426 = vmatprep.subr.mxu0 0.0
        %427 = vmatpush1.xpose.msra.mxu0 0.0
        %428 = vmatprep.subr.mxu0 0.0
        %429 = vmatpush1.xpose.msra.mxu0 0.0
        %430 = vmatprep.subr.mxu0 0.0
        %431 = vmatpush1.xpose.msra.mxu0 0.0
        %432 = vmatprep.subr.mxu0 0.0
        %433 = vmatpush1.xpose.msra.mxu0 0.0
        %434 = vmatprep.subr.mxu0 0.0
        %435 = vmatpush1.xpose.msra.mxu0 0.0
        %436 = vmatprep.subr.mxu0 0.0
        %437 = vmatpush1.xpose.msra.mxu0 0.0
        %438 = vmatprep.subr.mxu0 0.0
        %439 = vmatpush1.xpose.msra.mxu0 0.0
        %440 = vmatprep.subr.mxu0 0.0
        %441 = vmatpush1.xpose.msra.mxu0 0.0
        %442 = vmatprep.subr.mxu0 0.0
        %443 = vmatpush1.xpose.msra.mxu0 0.0
        %444 = vmatprep.subr.mxu0 0.0
        %445 = vmatpush1.xpose.msra.mxu0 0.0
        %446 = vmatprep.subr.mxu0 0.0
        %447 = vmatpush1.xpose.msra.mxu0 0.0
        %448 = vmatprep.subr.mxu0 0.0
        %449 = vmatpush1.xpose.msra.mxu0 0.0
        %450 = vmatprep.subr.mxu0 0.0
        %451 = vmatpush1.xpose.msra.mxu0 0.0
        %452 = vmatprep.subr.mxu0 0.0
        %453 = vmatpush1.xpose.msra.mxu0 0.0
        %454 = vmatprep.subr.mxu0 0.0
        %455 = vmatpush1.xpose.msra.mxu0 0.0
        %456 = vmatprep.subr.mxu0 0.0
        %457 = vmatpush1.xpose.msra.mxu0 0.0
        %458 = vmatprep.subr.mxu0 0.0
        %459 = vmatpush1.xpose.msra.mxu0 0.0
        %460 = vmatprep.subr.mxu0 0.0
        %461 = vmatpush1.xpose.msra.mxu0 0.0
        %462 = vmatprep.subr.mxu0 0.0
        %463 = vmatpush1.xpose.msra.mxu0 0.0
        %464 = vmatprep.subr.mxu0 0.0
        %465 = vmatpush1.xpose.msra.mxu0 0.0
        %466 = vmatprep.subr.mxu0 0.0
        %467 = vmatpush1.xpose.msra.mxu0 0.0
        %468 = vmatprep.mubr.f32.mxu0 0.0
        %v469 = vand.u32 %v386, 4294901760
        %v470 = vsub.f32 %v386, %v469
        %v471 = vand.u32 %v470, 4294901760
        %v472 = vsub.f32 %v470, %v471
        %v473 = vand.u32 %v472, 4294901760
        %474 = vmatmul.mubr.f32.gmra.mrb[0].mxu0 %v473
        %v475 = vpop.f32.mrb[0].mxu0
        %v476 = vadd.f32 0.0, %v475
        %v477 = vpop.f32.mrb[0].mxu0
        %478 = vdwg.mxu0
        %479 = vmatprep.subr.mxu0 0.0
        %v480 = vand.u32 %v389, 4294901760
        %v481 = vsub.f32 %v389, %v480
        %v482 = vand.u32 %v481, 4294901760
        %v483 = vsub.f32 %v481, %v482
        %v484 = vand.u32 %v483, 4294901760
        %485 = vmatpush1.xpose.msra.mxu0 %v484
        %486 = vmatprep.subr.mxu0 0.0
        %v487 = vand.u32 %v392, 4294901760
        %v488 = vsub.f32 %v392, %v487
        %v489 = vand.u32 %v488, 4294901760
        %v490 = vsub.f32 %v488, %v489
        %v491 = vand.u32 %v490, 4294901760
        %492 = vmatpush1.xpose.msra.mxu0 %v491
        %493 = vmatprep.subr.mxu0 0.0
        %v494 = vand.u32 %v395, 4294901760
        %v495 = vsub.f32 %v395, %v494
        %v496 = vand.u32 %v495, 4294901760
        %v497 = vsub.f32 %v495, %v496
        %v498 = vand.u32 %v497, 4294901760
        %499 = vmatpush1.xpose.msra.mxu0 %v498
        %500 = vmatprep.subr.mxu0 0.0
        %v501 = vand.u32 %v398, 4294901760
        %v502 = vsub.f32 %v398, %v501
        %v503 = vand.u32 %v502, 4294901760
        %v504 = vsub.f32 %v502, %v503
        %v505 = vand.u32 %v504, 4294901760
        %506 = vmatpush1.xpose.msra.mxu0 %v505
        %507 = vmatprep.subr.mxu0 0.0
        %508 = vmatpush1.xpose.msra.mxu0 0.0
        %509 = vmatprep.subr.mxu0 0.0
        %510 = vmatpush1.xpose.msra.mxu0 0.0
        %511 = vmatprep.subr.mxu0 0.0
        %512 = vmatpush1.xpose.msra.mxu0 0.0
        %513 = vmatprep.subr.mxu0 0.0
        %514 = vmatpush1.xpose.msra.mxu0 0.0
        %515 = vmatprep.subr.mxu0 0.0
        %516 = vmatpush1.xpose.msra.mxu0 0.0
        %517 = vmatprep.subr.mxu0 0.0
        %518 = vmatpush1.xpose.msra.mxu0 0.0
        %519 = vmatprep.subr.mxu0 0.0
        %520 = vmatpush1.xpose.msra.mxu0 0.0
        %521 = vmatprep.subr.mxu0 0.0
        %522 = vmatpush1.xpose.msra.mxu0 0.0
        %523 = vmatprep.subr.mxu0 0.0
        %524 = vmatpush1.xpose.msra.mxu0 0.0
        %525 = vmatprep.subr.mxu0 0.0
        %526 = vmatpush1.xpose.msra.mxu0 0.0
        %527 = vmatprep.subr.mxu0 0.0
        %528 = vmatpush1.xpose.msra.mxu0 0.0
        %529 = vmatprep.subr.mxu0 0.0
        %530 = vmatpush1.xpose.msra.mxu0 0.0
        %531 = vmatprep.subr.mxu0 0.0
        %532 = vmatpush1.xpose.msra.mxu0 0.0
        %533 = vmatprep.subr.mxu0 0.0
        %534 = vmatpush1.xpose.msra.mxu0 0.0
        %535 = vmatprep.subr.mxu0 0.0
        %536 = vmatpush1.xpose.msra.mxu0 0.0
        %537 = vmatprep.subr.mxu0 0.0
        %538 = vmatpush1.xpose.msra.mxu0 0.0
        %539 = vmatprep.subr.mxu0 0.0
        %540 = vmatpush1.xpose.msra.mxu0 0.0
        %541 = vmatprep.subr.mxu0 0.0
        %542 = vmatpush1.xpose.msra.mxu0 0.0
        %543 = vmatprep.subr.mxu0 0.0
        %544 = vmatpush1.xpose.msra.mxu0 0.0
        %545 = vmatprep.subr.mxu0 0.0
        %546 = vmatpush1.xpose.msra.mxu0 0.0
        %547 = vmatprep.subr.mxu0 0.0
        %548 = vmatpush1.xpose.msra.mxu0 0.0
        %549 = vmatprep.subr.mxu0 0.0
        %550 = vmatpush1.xpose.msra.mxu0 0.0
        %551 = vmatprep.subr.mxu0 0.0
        %552 = vmatpush1.xpose.msra.mxu0 0.0
        %553 = vmatprep.subr.mxu0 0.0
        %554 = vmatpush1.xpose.msra.mxu0 0.0
        %555 = vmatprep.subr.mxu0 0.0
        %556 = vmatpush1.xpose.msra.mxu0 0.0
        %557 = vmatprep.subr.mxu0 0.0
        %558 = vmatpush1.xpose.msra.mxu0 0.0
        %559 = vmatprep.subr.mxu0 0.0
        %560 = vmatpush1.xpose.msra.mxu0 0.0
        %561 = vmatprep.subr.mxu0 0.0
        %562 = vmatpush1.xpose.msra.mxu0 0.0
        %563 = vmatprep.mubr.f32.mxu0 0.0
        %v564 = vand.u32 %v386, 4294901760
        %565 = vmatmul.mubr.f32.gmra.mrb[0].mxu0 %v564
        %v566 = vpop.f32.mrb[0].mxu0
        %v567 = vadd.f32 %v476, %v566
        %v568 = vpop.f32.mrb[0].mxu0
        %569 = vdwg.mxu0
        %570 = vmatprep.subr.mxu0 0.0
        %v571 = vand.u32 %v389, 4294901760
        %v572 = vsub.f32 %v389, %v571
        %573 = vmatpush1.xpose.msra.mxu0 %v572
        %574 = vmatprep.subr.mxu0 0.0
        %v575 = vand.u32 %v392, 4294901760
        %v576 = vsub.f32 %v392, %v575
        %577 = vmatpush1.xpose.msra.mxu0 %v576
        %578 = vmatprep.subr.mxu0 0.0
        %v579 = vand.u32 %v395, 4294901760
        %v580 = vsub.f32 %v395, %v579
        %581 = vmatpush1.xpose.msra.mxu0 %v580
        %582 = vmatprep.subr.mxu0 0.0
        %v583 = vand.u32 %v398, 4294901760
        %v584 = vsub.f32 %v398, %v583
        %585 = vmatpush1.xpose.msra.mxu0 %v584
        %586 = vmatprep.subr.mxu0 0.0
        %587 = vmatpush1.xpose.msra.mxu0 0.0
        %588 = vmatprep.subr.mxu0 0.0
        %589 = vmatpush1.xpose.msra.mxu0 0.0
        %590 = vmatprep.subr.mxu0 0.0
        %591 = vmatpush1.xpose.msra.mxu0 0.0
        %592 = vmatprep.subr.mxu0 0.0
        %593 = vmatpush1.xpose.msra.mxu0 0.0
        %594 = vmatprep.subr.mxu0 0.0
        %595 = vmatpush1.xpose.msra.mxu0 0.0
        %596 = vmatprep.subr.mxu0 0.0
        %597 = vmatpush1.xpose.msra.mxu0 0.0
        %598 = vmatprep.subr.mxu0 0.0
        %599 = vmatpush1.xpose.msra.mxu0 0.0
        %600 = vmatprep.subr.mxu0 0.0
        %601 = vmatpush1.xpose.msra.mxu0 0.0
        %602 = vmatprep.subr.mxu0 0.0
        %603 = vmatpush1.xpose.msra.mxu0 0.0
        %604 = vmatprep.subr.mxu0 0.0
        %605 = vmatpush1.xpose.msra.mxu0 0.0
        %606 = vmatprep.subr.mxu0 0.0
        %607 = vmatpush1.xpose.msra.mxu0 0.0
        %608 = vmatprep.subr.mxu0 0.0
        %609 = vmatpush1.xpose.msra.mxu0 0.0
        %610 = vmatprep.subr.mxu0 0.0
        %611 = vmatpush1.xpose.msra.mxu0 0.0
        %612 = vmatprep.subr.mxu0 0.0
        %613 = vmatpush1.xpose.msra.mxu0 0.0
        %614 = vmatprep.subr.mxu0 0.0
        %615 = vmatpush1.xpose.msra.mxu0 0.0
        %616 = vmatprep.subr.mxu0 0.0
        %617 = vmatpush1.xpose.msra.mxu0 0.0
        %618 = vmatprep.subr.mxu0 0.0
        %619 = vmatpush1.xpose.msra.mxu0 0.0
        %620 = vmatprep.subr.mxu0 0.0
        %621 = vmatpush1.xpose.msra.mxu0 0.0
        %622 = vmatprep.subr.mxu0 0.0
        %623 = vmatpush1.xpose.msra.mxu0 0.0
        %624 = vmatprep.subr.mxu0 0.0
        %625 = vmatpush1.xpose.msra.mxu0 0.0
        %626 = vmatprep.subr.mxu0 0.0
        %627 = vmatpush1.xpose.msra.mxu0 0.0
        %628 = vmatprep.subr.mxu0 0.0
        %629 = vmatpush1.xpose.msra.mxu0 0.0
        %630 = vmatprep.subr.mxu0 0.0
        %631 = vmatpush1.xpose.msra.mxu0 0.0
        %632 = vmatprep.subr.mxu0 0.0
        %633 = vmatpush1.xpose.msra.mxu0 0.0
        %634 = vmatprep.subr.mxu0 0.0
        %635 = vmatpush1.xpose.msra.mxu0 0.0
        %636 = vmatprep.subr.mxu0 0.0
        %637 = vmatpush1.xpose.msra.mxu0 0.0
        %638 = vmatprep.subr.mxu0 0.0
        %639 = vmatpush1.xpose.msra.mxu0 0.0
        %640 = vmatprep.subr.mxu0 0.0
        %641 = vmatpush1.xpose.msra.mxu0 0.0
        %642 = vmatprep.mubr.f32.mxu0 0.0
        %v643 = vand.u32 %v386, 4294901760
        %v644 = vsub.f32 %v386, %v643
        %645 = vmatmul.mubr.f32.gmra.mrb[0].mxu0 %v644
        %v646 = vpop.f32.mrb[0].mxu0
        %v647 = vadd.f32 %v567, %v646
        %v648 = vpop.f32.mrb[0].mxu0
        %649 = vdwg.mxu0
        %650 = vmatprep.subr.mxu0 0.0
        %v651 = vand.u32 %v389, 4294901760
        %652 = vmatpush1.xpose.msra.mxu0 %v651
        %653 = vmatprep.subr.mxu0 0.0
        %v654 = vand.u32 %v392, 4294901760
        %655 = vmatpush1.xpose.msra.mxu0 %v654
        %656 = vmatprep.subr.mxu0 0.0
        %v657 = vand.u32 %v395, 4294901760
        %658 = vmatpush1.xpose.msra.mxu0 %v657
        %659 = vmatprep.subr.mxu0 0.0
        %v660 = vand.u32 %v398, 4294901760
        %661 = vmatpush1.xpose.msra.mxu0 %v660
        %662 = vmatprep.subr.mxu0 0.0
        %663 = vmatpush1.xpose.msra.mxu0 0.0
        %664 = vmatprep.subr.mxu0 0.0
        %665 = vmatpush1.xpose.msra.mxu0 0.0
        %666 = vmatprep.subr.mxu0 0.0
        %667 = vmatpush1.xpose.msra.mxu0 0.0
        %668 = vmatprep.subr.mxu0 0.0
        %669 = vmatpush1.xpose.msra.mxu0 0.0
        %670 = vmatprep.subr.mxu0 0.0
        %671 = vmatpush1.xpose.msra.mxu0 0.0
        %672 = vmatprep.subr.mxu0 0.0
        %673 = vmatpush1.xpose.msra.mxu0 0.0
        %674 = vmatprep.subr.mxu0 0.0
        %675 = vmatpush1.xpose.msra.mxu0 0.0
        %676 = vmatprep.subr.mxu0 0.0
        %677 = vmatpush1.xpose.msra.mxu0 0.0
        %678 = vmatprep.subr.mxu0 0.0
        %679 = vmatpush1.xpose.msra.mxu0 0.0
        %680 = vmatprep.subr.mxu0 0.0
        %681 = vmatpush1.xpose.msra.mxu0 0.0
        %682 = vmatprep.subr.mxu0 0.0
        %683 = vmatpush1.xpose.msra.mxu0 0.0
        %684 = vmatprep.subr.mxu0 0.0
        %685 = vmatpush1.xpose.msra.mxu0 0.0
        %686 = vmatprep.subr.mxu0 0.0
        %687 = vmatpush1.xpose.msra.mxu0 0.0
        %688 = vmatprep.subr.mxu0 0.0
        %689 = vmatpush1.xpose.msra.mxu0 0.0
        %690 = vmatprep.subr.mxu0 0.0
        %691 = vmatpush1.xpose.msra.mxu0 0.0
        %692 = vmatprep.subr.mxu0 0.0
        %693 = vmatpush1.xpose.msra.mxu0 0.0
        %694 = vmatprep.subr.mxu0 0.0
        %695 = vmatpush1.xpose.msra.mxu0 0.0
        %696 = vmatprep.subr.mxu0 0.0
        %697 = vmatpush1.xpose.msra.mxu0 0.0
        %698 = vmatprep.subr.mxu0 0.0
        %699 = vmatpush1.xpose.msra.mxu0 0.0
        %700 = vmatprep.subr.mxu0 0.0
        %701 = vmatpush1.xpose.msra.mxu0 0.0
        %702 = vmatprep.subr.mxu0 0.0
        %703 = vmatpush1.xpose.msra.mxu0 0.0
        %704 = vmatprep.subr.mxu0 0.0
        %705 = vmatpush1.xpose.msra.mxu0 0.0
        %706 = vmatprep.subr.mxu0 0.0
        %707 = vmatpush1.xpose.msra.mxu0 0.0
        %708 = vmatprep.subr.mxu0 0.0
        %709 = vmatpush1.xpose.msra.mxu0 0.0
        %710 = vmatprep.subr.mxu0 0.0
        %711 = vmatpush1.xpose.msra.mxu0 0.0
        %712 = vmatprep.subr.mxu0 0.0
        %713 = vmatpush1.xpose.msra.mxu0 0.0
        %714 = vmatprep.subr.mxu0 0.0
        %715 = vmatpush1.xpose.msra.mxu0 0.0
        %716 = vmatprep.subr.mxu0 0.0
        %717 = vmatpush1.xpose.msra.mxu0 0.0
        %718 = vmatprep.mubr.f32.mxu0 0.0
        %v719 = vand.u32 %v386, 4294901760
        %v720 = vsub.f32 %v386, %v719
        %v721 = vand.u32 %v720, 4294901760
        %722 = vmatmul.mubr.f32.gmra.mrb[0].mxu0 %v721
        %v723 = vpop.f32.mrb[0].mxu0
        %v724 = vadd.f32 %v647, %v723
        %v725 = vpop.f32.mrb[0].mxu0
        %726 = vdwg.mxu0
        %727 = vmatprep.subr.mxu0 0.0
        %v728 = vand.u32 %v389, 4294901760
        %v729 = vsub.f32 %v389, %v728
        %v730 = vand.u32 %v729, 4294901760
        %731 = vmatpush1.xpose.msra.mxu0 %v730
        %732 = vmatprep.subr.mxu0 0.0
        %v733 = vand.u32 %v392, 4294901760
        %v734 = vsub.f32 %v392, %v733
        %v735 = vand.u32 %v734, 4294901760
        %736 = vmatpush1.xpose.msra.mxu0 %v735
        %737 = vmatprep.subr.mxu0 0.0
        %v738 = vand.u32 %v395, 4294901760
        %v739 = vsub.f32 %v395, %v738
        %v740 = vand.u32 %v739, 4294901760
        %741 = vmatpush1.xpose.msra.mxu0 %v740
        %742 = vmatprep.subr.mxu0 0.0
        %v743 = vand.u32 %v398, 4294901760
        %v744 = vsub.f32 %v398, %v743
        %v745 = vand.u32 %v744, 4294901760
        %746 = vmatpush1.xpose.msra.mxu0 %v745
        %747 = vmatprep.subr.mxu0 0.0
        %748 = vmatpush1.xpose.msra.mxu0 0.0
        %749 = vmatprep.subr.mxu0 0.0
        %750 = vmatpush1.xpose.msra.mxu0 0.0
        %751 = vmatprep.subr.mxu0 0.0
        %752 = vmatpush1.xpose.msra.mxu0 0.0
        %753 = vmatprep.subr.mxu0 0.0
        %754 = vmatpush1.xpose.msra.mxu0 0.0
        %755 = vmatprep.subr.mxu0 0.0
        %756 = vmatpush1.xpose.msra.mxu0 0.0
        %757 = vmatprep.subr.mxu0 0.0
        %758 = vmatpush1.xpose.msra.mxu0 0.0
        %759 = vmatprep.subr.mxu0 0.0
        %760 = vmatpush1.xpose.msra.mxu0 0.0
        %761 = vmatprep.subr.mxu0 0.0
        %762 = vmatpush1.xpose.msra.mxu0 0.0
        %763 = vmatprep.subr.mxu0 0.0
        %764 = vmatpush1.xpose.msra.mxu0 0.0
        %765 = vmatprep.subr.mxu0 0.0
        %766 = vmatpush1.xpose.msra.mxu0 0.0
        %767 = vmatprep.subr.mxu0 0.0
        %768 = vmatpush1.xpose.msra.mxu0 0.0
        %769 = vmatprep.subr.mxu0 0.0
        %770 = vmatpush1.xpose.msra.mxu0 0.0
        %771 = vmatprep.subr.mxu0 0.0
        %772 = vmatpush1.xpose.msra.mxu0 0.0
        %773 = vmatprep.subr.mxu0 0.0
        %774 = vmatpush1.xpose.msra.mxu0 0.0
        %775 = vmatprep.subr.mxu0 0.0
        %776 = vmatpush1.xpose.msra.mxu0 0.0
        %777 = vmatprep.subr.mxu0 0.0
        %778 = vmatpush1.xpose.msra.mxu0 0.0
        %779 = vmatprep.subr.mxu0 0.0
        %780 = vmatpush1.xpose.msra.mxu0 0.0
        %781 = vmatprep.subr.mxu0 0.0
        %782 = vmatpush1.xpose.msra.mxu0 0.0
        %783 = vmatprep.subr.mxu0 0.0
        %784 = vmatpush1.xpose.msra.mxu0 0.0
        %785 = vmatprep.subr.mxu0 0.0
        %786 = vmatpush1.xpose.msra.mxu0 0.0
        %787 = vmatprep.subr.mxu0 0.0
        %788 = vmatpush1.xpose.msra.mxu0 0.0
        %789 = vmatprep.subr.mxu0 0.0
        %790 = vmatpush1.xpose.msra.mxu0 0.0
        %791 = vmatprep.subr.mxu0 0.0
        %792 = vmatpush1.xpose.msra.mxu0 0.0
        %793 = vmatprep.subr.mxu0 0.0
        %794 = vmatpush1.xpose.msra.mxu0 0.0
        %795 = vmatprep.subr.mxu0 0.0
        %796 = vmatpush1.xpose.msra.mxu0 0.0
        %797 = vmatprep.subr.mxu0 0.0
        %798 = vmatpush1.xpose.msra.mxu0 0.0
        %799 = vmatprep.subr.mxu0 0.0
        %800 = vmatpush1.xpose.msra.mxu0 0.0
        %801 = vmatprep.subr.mxu0 0.0
        %802 = vmatpush1.xpose.msra.mxu0 0.0
        %803 = vmatprep.mubr.f32.mxu0 0.0
        %v804 = vand.u32 %v386, 4294901760
        %805 = vmatmul.mubr.f32.gmra.mrb[0].mxu0 %v804
        %v806 = vpop.f32.mrb[0].mxu0
        %v807 = vadd.f32 %v724, %v806
        %v808 = vpop.f32.mrb[0].mxu0
        %809 = vdwg.mxu0
        %810 = vmatprep.subr.mxu0 0.0
        %v811 = vand.u32 %v389, 4294901760
        %812 = vmatpush1.xpose.msra.mxu0 %v811
        %813 = vmatprep.subr.mxu0 0.0
        %v814 = vand.u32 %v392, 4294901760
        %815 = vmatpush1.xpose.msra.mxu0 %v814
        %816 = vmatprep.subr.mxu0 0.0
        %v817 = vand.u32 %v395, 4294901760
        %818 = vmatpush1.xpose.msra.mxu0 %v817
        %819 = vmatprep.subr.mxu0 0.0
        %v820 = vand.u32 %v398, 4294901760
        %821 = vmatpush1.xpose.msra.mxu0 %v820
        %822 = vmatprep.subr.mxu0 0.0
        %823 = vmatpush1.xpose.msra.mxu0 0.0
        %824 = vmatprep.subr.mxu0 0.0
        %825 = vmatpush1.xpose.msra.mxu0 0.0
        %826 = vmatprep.subr.mxu0 0.0
        %827 = vmatpush1.xpose.msra.mxu0 0.0
        %828 = vmatprep.subr.mxu0 0.0
        %829 = vmatpush1.xpose.msra.mxu0 0.0
        %830 = vmatprep.subr.mxu0 0.0
        %831 = vmatpush1.xpose.msra.mxu0 0.0
        %832 = vmatprep.subr.mxu0 0.0
        %833 = vmatpush1.xpose.msra.mxu0 0.0
        %834 = vmatprep.subr.mxu0 0.0
        %835 = vmatpush1.xpose.msra.mxu0 0.0
        %836 = vmatprep.subr.mxu0 0.0
        %837 = vmatpush1.xpose.msra.mxu0 0.0
        %838 = vmatprep.subr.mxu0 0.0
        %839 = vmatpush1.xpose.msra.mxu0 0.0
        %840 = vmatprep.subr.mxu0 0.0
        %841 = vmatpush1.xpose.msra.mxu0 0.0
        %842 = vmatprep.subr.mxu0 0.0
        %843 = vmatpush1.xpose.msra.mxu0 0.0
        %844 = vmatprep.subr.mxu0 0.0
        %845 = vmatpush1.xpose.msra.mxu0 0.0
        %846 = vmatprep.subr.mxu0 0.0
        %847 = vmatpush1.xpose.msra.mxu0 0.0
        %848 = vmatprep.subr.mxu0 0.0
        %849 = vmatpush1.xpose.msra.mxu0 0.0
        %850 = vmatprep.subr.mxu0 0.0
        %851 = vmatpush1.xpose.msra.mxu0 0.0
        %852 = vmatprep.subr.mxu0 0.0
        %853 = vmatpush1.xpose.msra.mxu0 0.0
        %854 = vmatprep.subr.mxu0 0.0
        %855 = vmatpush1.xpose.msra.mxu0 0.0
        %856 = vmatprep.subr.mxu0 0.0
        %857 = vmatpush1.xpose.msra.mxu0 0.0
        %858 = vmatprep.subr.mxu0 0.0
        %859 = vmatpush1.xpose.msra.mxu0 0.0
        %860 = vmatprep.subr.mxu0 0.0
        %861 = vmatpush1.xpose.msra.mxu0 0.0
        %862 = vmatprep.subr.mxu0 0.0
        %863 = vmatpush1.xpose.msra.mxu0 0.0
        %864 = vmatprep.subr.mxu0 0.0
        %865 = vmatpush1.xpose.msra.mxu0 0.0
        %866 = vmatprep.subr.mxu0 0.0
        %867 = vmatpush1.xpose.msra.mxu0 0.0
        %868 = vmatprep.subr.mxu0 0.0
        %869 = vmatpush1.xpose.msra.mxu0 0.0
        %870 = vmatprep.subr.mxu0 0.0
        %871 = vmatpush1.xpose.msra.mxu0 0.0
        %872 = vmatprep.subr.mxu0 0.0
        %873 = vmatpush1.xpose.msra.mxu0 0.0
        %874 = vmatprep.subr.mxu0 0.0
        %875 = vmatpush1.xpose.msra.mxu0 0.0
        %876 = vmatprep.subr.mxu0 0.0
        %877 = vmatpush1.xpose.msra.mxu0 0.0
        %878 = vmatprep.mubr.f32.mxu0 0.0
        %v879 = vand.u32 %v386, 4294901760
        %880 = vmatmul.mubr.f32.gmra.mrb[0].mxu0 %v879
        %v881 = vpop.f32.mrb[0].mxu0
        %v882 = vadd.f32 %v807, %v881
        %v883 = vpop.f32.mrb[0].mxu0
        %884 = vdwg.mxu0
        %v885 = vmul.f32 %v882, 0.2
        %886 = vst.msk [vmem:[#allocation11] sm:$0xff] %vm378, %v885
        %887 = vst.msk [vmem:[#allocation10] sm:$0xff] %vm378, 0.0
        loop: start=0, step=1, limit=8
        $region52: #{tpu_custom_call.1} parent=35 // loop_pre_header
          _
        $region53: #{tpu_custom_call.1} parent=35 // loop_header
          %s889 = sphi 0, %s893
          %p890 = scmp.ge.s32.totalorder %s889, 8
        $region54: #{tpu_custom_call.1} parent=35 // loop_header_branch
          %892 = sbr.rel (%p890) target = $region58
        $region55: #{tpu_custom_call.1} parent=35 // loop_body
          %s894 = smul.u32 %s32, 8
          %s895 = sadd.s32 %s894, %s889
          %p896 = scmp.lt.s32.totalorder %s895, 0
          %s897 = ssub.s32 0, %s895
          %s898 = scalar_select %p896, %s897, %s895
          %s899 = sdiv.u32.pop %s898, 3
          %s900 = srem.u32.pop %s898, 3
          %s901 = ssub.s32 0, %s900
          %s902 = scalar_select %p896, %s901, %s900
          %p903 = scmp.ne.s32.totalorder %s902, 0
          %p904 = scmp.lt.s32.totalorder %s902, 0
          %p905 = pnand %p904, %p903
          %p906 = pneg %p905
          %s907 = sadd.s32 %s902, 3
          %s908 = scalar_select %p906, %s907, %s902
          %s909 = scalar_lea.vmem [#allocation7], %s908
          %v910 = vld [vmem:[%s909] sm:$0x1]
          %v911 = vld [vmem:[%s3] sm:$0xff]
          %v912 = vld [vmem:[%s3 + $0x8] sm:$0xff]
          %vm913 = vcmask 130048
          %v915 = vsel %vm913, %v910, 0
          %917 = vmatprep.subr.mxu0 0.0
          %v918 = vand.u32 %v911, 4294901760
          %919 = vmatpush1.msra.mxu0 %v918
          %920 = vmatprep.subr.mxu0 0.0
          %v921 = vand.u32 %v912, 4294901760
          %922 = vmatpush1.msra.mxu0 %v921
          %923 = vmatprep.subr.mxu0 0.0
          %924 = vmatpush1.msra.mxu0 0.0
          %925 = vmatprep.subr.mxu0 0.0
          %926 = vmatpush1.msra.mxu0 0.0
          %927 = vmatprep.subr.mxu0 0.0
          %928 = vmatpush1.msra.mxu0 0.0
          %929 = vmatprep.subr.mxu0 0.0
          %930 = vmatpush1.msra.mxu0 0.0
          %931 = vmatprep.subr.mxu0 0.0
          %932 = vmatpush1.msra.mxu0 0.0
          %933 = vmatprep.subr.mxu0 0.0
          %934 = vmatpush1.msra.mxu0 0.0
          %935 = vmatprep.subr.mxu0 0.0
          %936 = vmatpush1.msra.mxu0 0.0
          %937 = vmatprep.subr.mxu0 0.0
          %938 = vmatpush1.msra.mxu0 0.0
          %939 = vmatprep.subr.mxu0 0.0
          %940 = vmatpush1.msra.mxu0 0.0
          %941 = vmatprep.subr.mxu0 0.0
          %942 = vmatpush1.msra.mxu0 0.0
          %943 = vmatprep.subr.mxu0 0.0
          %944 = vmatpush1.msra.mxu0 0.0
          %945 = vmatprep.subr.mxu0 0.0
          %946 = vmatpush1.msra.mxu0 0.0
          %947 = vmatprep.subr.mxu0 0.0
          %948 = vmatpush1.msra.mxu0 0.0
          %949 = vmatprep.subr.mxu0 0.0
          %950 = vmatpush1.msra.mxu0 0.0
          %951 = vmatprep.subr.mxu0 0.0
          %952 = vmatpush1.msra.mxu0 0.0
          %953 = vmatprep.subr.mxu0 0.0
          %954 = vmatpush1.msra.mxu0 0.0
          %955 = vmatprep.subr.mxu0 0.0
          %956 = vmatpush1.msra.mxu0 0.0
          %957 = vmatprep.subr.mxu0 0.0
          %958 = vmatpush1.msra.mxu0 0.0
          %959 = vmatprep.subr.mxu0 0.0
          %960 = vmatpush1.msra.mxu0 0.0
          %961 = vmatprep.subr.mxu0 0.0
          %962 = vmatpush1.msra.mxu0 0.0
          %963 = vmatprep.subr.mxu0 0.0
          %964 = vmatpush1.msra.mxu0 0.0
          %965 = vmatprep.subr.mxu0 0.0
          %966 = vmatpush1.msra.mxu0 0.0
          %967 = vmatprep.subr.mxu0 0.0
          %968 = vmatpush1.msra.mxu0 0.0
          %969 = vmatprep.subr.mxu0 0.0
          %970 = vmatpush1.msra.mxu0 0.0
          %971 = vmatprep.subr.mxu0 0.0
          %972 = vmatpush1.msra.mxu0 0.0
          %973 = vmatprep.subr.mxu0 0.0
          %974 = vmatpush1.msra.mxu0 0.0
          %975 = vmatprep.subr.mxu0 0.0
          %976 = vmatpush1.msra.mxu0 0.0
          %977 = vmatprep.subr.mxu0 0.0
          %978 = vmatpush1.msra.mxu0 0.0
          %979 = vmatprep.subr.mxu0 0.0
          %980 = vmatpush1.msra.mxu0 0.0
          %981 = vmatprep.subr.mxu0 0.0
          %982 = vmatpush1.msra.mxu0 0.0
          %983 = vmatprep.mubr.f32.mxu0 0.0
          %v984 = vand.u32 %v915, 4294901760
          %v985 = vsub.f32 %v915, %v984
          %v986 = vand.u32 %v985, 4294901760
          %v987 = vsub.f32 %v985, %v986
          %v988 = vand.u32 %v987, 4294901760
          %989 = vmatmul.mubr.f32.gmra.mrb[0].mxu0 %v988
          %v990 = vpop.f32.mrb[0].mxu0
          %v991 = vadd.f32 0.0, %v990
          %v992 = vpop.f32.mrb[0].mxu0
          %993 = vdwg.mxu0
          %994 = vmatprep.subr.mxu0 0.0
          %v995 = vand.u32 %v911, 4294901760
          %v996 = vsub.f32 %v911, %v995
          %v997 = vand.u32 %v996, 4294901760
          %v998 = vsub.f32 %v996, %v997
          %v999 = vand.u32 %v998, 4294901760
          %1000 = vmatpush1.msra.mxu0 %v999
          %1001 = vmatprep.subr.mxu0 0.0
          %v1002 = vand.u32 %v912, 4294901760
          %v1003 = vsub.f32 %v912, %v1002
          %v1004 = vand.u32 %v1003, 4294901760
          %v1005 = vsub.f32 %v1003, %v1004
          %v1006 = vand.u32 %v1005, 4294901760
          %1007 = vmatpush1.msra.mxu0 %v1006
          %1008 = vmatprep.subr.mxu0 0.0
          %1009 = vmatpush1.msra.mxu0 0.0
          %1010 = vmatprep.subr.mxu0 0.0
          %1011 = vmatpush1.msra.mxu0 0.0
          %1012 = vmatprep.subr.mxu0 0.0
          %1013 = vmatpush1.msra.mxu0 0.0
          %1014 = vmatprep.subr.mxu0 0.0
          %1015 = vmatpush1.msra.mxu0 0.0
          %1016 = vmatprep.subr.mxu0 0.0
          %1017 = vmatpush1.msra.mxu0 0.0
          %1018 = vmatprep.subr.mxu0 0.0
          %1019 = vmatpush1.msra.mxu0 0.0
          %1020 = vmatprep.subr.mxu0 0.0
          %1021 = vmatpush1.msra.mxu0 0.0
          %1022 = vmatprep.subr.mxu0 0.0
          %1023 = vmatpush1.msra.mxu0 0.0
          %1024 = vmatprep.subr.mxu0 0.0
          %1025 = vmatpush1.msra.mxu0 0.0
          %1026 = vmatprep.subr.mxu0 0.0
          %1027 = vmatpush1.msra.mxu0 0.0
          %1028 = vmatprep.subr.mxu0 0.0
          %1029 = vmatpush1.msra.mxu0 0.0
          %1030 = vmatprep.subr.mxu0 0.0
          %1031 = vmatpush1.msra.mxu0 0.0
          %1032 = vmatprep.subr.mxu0 0.0
          %1033 = vmatpush1.msra.mxu0 0.0
          %1034 = vmatprep.subr.mxu0 0.0
          %1035 = vmatpush1.msra.mxu0 0.0
          %1036 = vmatprep.subr.mxu0 0.0
          %1037 = vmatpush1.msra.mxu0 0.0
          %1038 = vmatprep.subr.mxu0 0.0
          %1039 = vmatpush1.msra.mxu0 0.0
          %1040 = vmatprep.subr.mxu0 0.0
          %1041 = vmatpush1.msra.mxu0 0.0
          %1042 = vmatprep.subr.mxu0 0.0
          %1043 = vmatpush1.msra.mxu0 0.0
          %1044 = vmatprep.subr.mxu0 0.0
          %1045 = vmatpush1.msra.mxu0 0.0
          %1046 = vmatprep.subr.mxu0 0.0
          %1047 = vmatpush1.msra.mxu0 0.0
          %1048 = vmatprep.subr.mxu0 0.0
          %1049 = vmatpush1.msra.mxu0 0.0
          %1050 = vmatprep.subr.mxu0 0.0
          %1051 = vmatpush1.msra.mxu0 0.0
          %1052 = vmatprep.subr.mxu0 0.0
          %1053 = vmatpush1.msra.mxu0 0.0
          %1054 = vmatprep.subr.mxu0 0.0
          %1055 = vmatpush1.msra.mxu0 0.0
          %1056 = vmatprep.subr.mxu0 0.0
          %1057 = vmatpush1.msra.mxu0 0.0
          %1058 = vmatprep.subr.mxu0 0.0
          %1059 = vmatpush1.msra.mxu0 0.0
          %1060 = vmatprep.subr.mxu0 0.0
          %1061 = vmatpush1.msra.mxu0 0.0
          %1062 = vmatprep.subr.mxu0 0.0
          %1063 = vmatpush1.msra.mxu0 0.0
          %1064 = vmatprep.subr.mxu0 0.0
          %1065 = vmatpush1.msra.mxu0 0.0
          %1066 = vmatprep.subr.mxu0 0.0
          %1067 = vmatpush1.msra.mxu0 0.0
          %1068 = vmatprep.mubr.f32.mxu0 0.0
          %v1069 = vand.u32 %v915, 4294901760
          %1070 = vmatmul.mubr.f32.gmra.mrb[0].mxu0 %v1069
          %v1071 = vpop.f32.mrb[0].mxu0
          %v1072 = vadd.f32 %v991, %v1071
          %v1073 = vpop.f32.mrb[0].mxu0
          %1074 = vdwg.mxu0
          %1075 = vmatprep.subr.mxu0 0.0
          %v1076 = vand.u32 %v911, 4294901760
          %v1077 = vsub.f32 %v911, %v1076
          %1078 = vmatpush1.msra.mxu0 %v1077
          %1079 = vmatprep.subr.mxu0 0.0
          %v1080 = vand.u32 %v912, 4294901760
          %v1081 = vsub.f32 %v912, %v1080
          %1082 = vmatpush1.msra.mxu0 %v1081
          %1083 = vmatprep.subr.mxu0 0.0
          %1084 = vmatpush1.msra.mxu0 0.0
          %1085 = vmatprep.subr.mxu0 0.0
          %1086 = vmatpush1.msra.mxu0 0.0
          %1087 = vmatprep.subr.mxu0 0.0
          %1088 = vmatpush1.msra.mxu0 0.0
          %1089 = vmatprep.subr.mxu0 0.0
          %1090 = vmatpush1.msra.mxu0 0.0
          %1091 = vmatprep.subr.mxu0 0.0
          %1092 = vmatpush1.msra.mxu0 0.0
          %1093 = vmatprep.subr.mxu0 0.0
          %1094 = vmatpush1.msra.mxu0 0.0
          %1095 = vmatprep.subr.mxu0 0.0
          %1096 = vmatpush1.msra.mxu0 0.0
          %1097 = vmatprep.subr.mxu0 0.0
          %1098 = vmatpush1.msra.mxu0 0.0
          %1099 = vmatprep.subr.mxu0 0.0
          %1100 = vmatpush1.msra.mxu0 0.0
          %1101 = vmatprep.subr.mxu0 0.0
          %1102 = vmatpush1.msra.mxu0 0.0
          %1103 = vmatprep.subr.mxu0 0.0
          %1104 = vmatpush1.msra.mxu0 0.0
          %1105 = vmatprep.subr.mxu0 0.0
          %1106 = vmatpush1.msra.mxu0 0.0
          %1107 = vmatprep.subr.mxu0 0.0
          %1108 = vmatpush1.msra.mxu0 0.0
          %1109 = vmatprep.subr.mxu0 0.0
          %1110 = vmatpush1.msra.mxu0 0.0
          %1111 = vmatprep.subr.mxu0 0.0
          %1112 = vmatpush1.msra.mxu0 0.0
          %1113 = vmatprep.subr.mxu0 0.0
          %1114 = vmatpush1.msra.mxu0 0.0
          %1115 = vmatprep.subr.mxu0 0.0
          %1116 = vmatpush1.msra.mxu0 0.0
          %1117 = vmatprep.subr.mxu0 0.0
          %1118 = vmatpush1.msra.mxu0 0.0
          %1119 = vmatprep.subr.mxu0 0.0
          %1120 = vmatpush1.msra.mxu0 0.0
          %1121 = vmatprep.subr.mxu0 0.0
          %1122 = vmatpush1.msra.mxu0 0.0
          %1123 = vmatprep.subr.mxu0 0.0
          %1124 = vmatpush1.msra.mxu0 0.0
          %1125 = vmatprep.subr.mxu0 0.0
          %1126 = vmatpush1.msra.mxu0 0.0
          %1127 = vmatprep.subr.mxu0 0.0
          %1128 = vmatpush1.msra.mxu0 0.0
          %1129 = vmatprep.subr.mxu0 0.0
          %1130 = vmatpush1.msra.mxu0 0.0
          %1131 = vmatprep.subr.mxu0 0.0
          %1132 = vmatpush1.msra.mxu0 0.0
          %1133 = vmatprep.subr.mxu0 0.0
          %1134 = vmatpush1.msra.mxu0 0.0
          %1135 = vmatprep.subr.mxu0 0.0
          %1136 = vmatpush1.msra.mxu0 0.0
          %1137 = vmatprep.subr.mxu0 0.0
          %1138 = vmatpush1.msra.mxu0 0.0
          %1139 = vmatprep.subr.mxu0 0.0
          %1140 = vmatpush1.msra.mxu0 0.0
          %1141 = vmatprep.subr.mxu0 0.0
          %1142 = vmatpush1.msra.mxu0 0.0
          %1143 = vmatprep.mubr.f32.mxu0 0.0
          %v1144 = vand.u32 %v915, 4294901760
          %v1145 = vsub.f32 %v915, %v1144
          %1146 = vmatmul.mubr.f32.gmra.mrb[0].mxu0 %v1145
          %v1147 = vpop.f32.mrb[0].mxu0
          %v1148 = vadd.f32 %v1072, %v1147
          %v1149 = vpop.f32.mrb[0].mxu0
          %1150 = vdwg.mxu0
          %1151 = vmatprep.subr.mxu0 0.0
          %v1152 = vand.u32 %v911, 4294901760
          %1153 = vmatpush1.msra.mxu0 %v1152
          %1154 = vmatprep.subr.mxu0 0.0
          %v1155 = vand.u32 %v912, 4294901760
          %1156 = vmatpush1.msra.mxu0 %v1155
          %1157 = vmatprep.subr.mxu0 0.0
          %1158 = vmatpush1.msra.mxu0 0.0
          %1159 = vmatprep.subr.mxu0 0.0
          %1160 = vmatpush1.msra.mxu0 0.0
          %1161 = vmatprep.subr.mxu0 0.0
          %1162 = vmatpush1.msra.mxu0 0.0
          %1163 = vmatprep.subr.mxu0 0.0
          %1164 = vmatpush1.msra.mxu0 0.0
          %1165 = vmatprep.subr.mxu0 0.0
          %1166 = vmatpush1.msra.mxu0 0.0
          %1167 = vmatprep.subr.mxu0 0.0
          %1168 = vmatpush1.msra.mxu0 0.0
          %1169 = vmatprep.subr.mxu0 0.0
          %1170 = vmatpush1.msra.mxu0 0.0
          %1171 = vmatprep.subr.mxu0 0.0
          %1172 = vmatpush1.msra.mxu0 0.0
          %1173 = vmatprep.subr.mxu0 0.0
          %1174 = vmatpush1.msra.mxu0 0.0
          %1175 = vmatprep.subr.mxu0 0.0
          %1176 = vmatpush1.msra.mxu0 0.0
          %1177 = vmatprep.subr.mxu0 0.0
          %1178 = vmatpush1.msra.mxu0 0.0
          %1179 = vmatprep.subr.mxu0 0.0
          %1180 = vmatpush1.msra.mxu0 0.0
          %1181 = vmatprep.subr.mxu0 0.0
          %1182 = vmatpush1.msra.mxu0 0.0
          %1183 = vmatprep.subr.mxu0 0.0
          %1184 = vmatpush1.msra.mxu0 0.0
          %1185 = vmatprep.subr.mxu0 0.0
          %1186 = vmatpush1.msra.mxu0 0.0
          %1187 = vmatprep.subr.mxu0 0.0
          %1188 = vmatpush1.msra.mxu0 0.0
          %1189 = vmatprep.subr.mxu0 0.0
          %1190 = vmatpush1.msra.mxu0 0.0
          %1191 = vmatprep.subr.mxu0 0.0
          %1192 = vmatpush1.msra.mxu0 0.0
          %1193 = vmatprep.subr.mxu0 0.0
          %1194 = vmatpush1.msra.mxu0 0.0
          %1195 = vmatprep.subr.mxu0 0.0
          %1196 = vmatpush1.msra.mxu0 0.0
          %1197 = vmatprep.subr.mxu0 0.0
          %1198 = vmatpush1.msra.mxu0 0.0
          %1199 = vmatprep.subr.mxu0 0.0
          %1200 = vmatpush1.msra.mxu0 0.0
          %1201 = vmatprep.subr.mxu0 0.0
          %1202 = vmatpush1.msra.mxu0 0.0
          %1203 = vmatprep.subr.mxu0 0.0
          %1204 = vmatpush1.msra.mxu0 0.0
          %1205 = vmatprep.subr.mxu0 0.0
          %1206 = vmatpush1.msra.mxu0 0.0
          %1207 = vmatprep.subr.mxu0 0.0
          %1208 = vmatpush1.msra.mxu0 0.0
          %1209 = vmatprep.subr.mxu0 0.0
          %1210 = vmatpush1.msra.mxu0 0.0
          %1211 = vmatprep.subr.mxu0 0.0
          %1212 = vmatpush1.msra.mxu0 0.0
          %1213 = vmatprep.subr.mxu0 0.0
          %1214 = vmatpush1.msra.mxu0 0.0
          %1215 = vmatprep.subr.mxu0 0.0
          %1216 = vmatpush1.msra.mxu0 0.0
          %1217 = vmatprep.mubr.f32.mxu0 0.0
          %v1218 = vand.u32 %v915, 4294901760
          %v1219 = vsub.f32 %v915, %v1218
          %v1220 = vand.u32 %v1219, 4294901760
          %1221 = vmatmul.mubr.f32.gmra.mrb[0].mxu0 %v1220
          %v1222 = vpop.f32.mrb[0].mxu0
          %v1223 = vadd.f32 %v1148, %v1222
          %v1224 = vpop.f32.mrb[0].mxu0
          %1225 = vdwg.mxu0
          %1226 = vmatprep.subr.mxu0 0.0
          %v1227 = vand.u32 %v911, 4294901760
          %v1228 = vsub.f32 %v911, %v1227
          %v1229 = vand.u32 %v1228, 4294901760
          %1230 = vmatpush1.msra.mxu0 %v1229
          %1231 = vmatprep.subr.mxu0 0.0
          %v1232 = vand.u32 %v912, 4294901760
          %v1233 = vsub.f32 %v912, %v1232
          %v1234 = vand.u32 %v1233, 4294901760
          %1235 = vmatpush1.msra.mxu0 %v1234
          %1236 = vmatprep.subr.mxu0 0.0
          %1237 = vmatpush1.msra.mxu0 0.0
          %1238 = vmatprep.subr.mxu0 0.0
          %1239 = vmatpush1.msra.mxu0 0.0
          %1240 = vmatprep.subr.mxu0 0.0
          %1241 = vmatpush1.msra.mxu0 0.0
          %1242 = vmatprep.subr.mxu0 0.0
          %1243 = vmatpush1.msra.mxu0 0.0
          %1244 = vmatprep.subr.mxu0 0.0
          %1245 = vmatpush1.msra.mxu0 0.0
          %1246 = vmatprep.subr.mxu0 0.0
          %1247 = vmatpush1.msra.mxu0 0.0
          %1248 = vmatprep.subr.mxu0 0.0
          %1249 = vmatpush1.msra.mxu0 0.0
          %1250 = vmatprep.subr.mxu0 0.0
          %1251 = vmatpush1.msra.mxu0 0.0
          %1252 = vmatprep.subr.mxu0 0.0
          %1253 = vmatpush1.msra.mxu0 0.0
          %1254 = vmatprep.subr.mxu0 0.0
          %1255 = vmatpush1.msra.mxu0 0.0
          %1256 = vmatprep.subr.mxu0 0.0
          %1257 = vmatpush1.msra.mxu0 0.0
          %1258 = vmatprep.subr.mxu0 0.0
          %1259 = vmatpush1.msra.mxu0 0.0
          %1260 = vmatprep.subr.mxu0 0.0
          %1261 = vmatpush1.msra.mxu0 0.0
          %1262 = vmatprep.subr.mxu0 0.0
          %1263 = vmatpush1.msra.mxu0 0.0
          %1264 = vmatprep.subr.mxu0 0.0
          %1265 = vmatpush1.msra.mxu0 0.0
          %1266 = vmatprep.subr.mxu0 0.0
          %1267 = vmatpush1.msra.mxu0 0.0
          %1268 = vmatprep.subr.mxu0 0.0
          %1269 = vmatpush1.msra.mxu0 0.0
          %1270 = vmatprep.subr.mxu0 0.0
          %1271 = vmatpush1.msra.mxu0 0.0
          %1272 = vmatprep.subr.mxu0 0.0
          %1273 = vmatpush1.msra.mxu0 0.0
          %1274 = vmatprep.subr.mxu0 0.0
          %1275 = vmatpush1.msra.mxu0 0.0
          %1276 = vmatprep.subr.mxu0 0.0
          %1277 = vmatpush1.msra.mxu0 0.0
          %1278 = vmatprep.subr.mxu0 0.0
          %1279 = vmatpush1.msra.mxu0 0.0
          %1280 = vmatprep.subr.mxu0 0.0
          %1281 = vmatpush1.msra.mxu0 0.0
          %1282 = vmatprep.subr.mxu0 0.0
          %1283 = vmatpush1.msra.mxu0 0.0
          %1284 = vmatprep.subr.mxu0 0.0
          %1285 = vmatpush1.msra.mxu0 0.0
          %1286 = vmatprep.subr.mxu0 0.0
          %1287 = vmatpush1.msra.mxu0 0.0
          %1288 = vmatprep.subr.mxu0 0.0
          %1289 = vmatpush1.msra.mxu0 0.0
          %1290 = vmatprep.subr.mxu0 0.0
          %1291 = vmatpush1.msra.mxu0 0.0
          %1292 = vmatprep.subr.mxu0 0.0
          %1293 = vmatpush1.msra.mxu0 0.0
          %1294 = vmatprep.subr.mxu0 0.0
          %1295 = vmatpush1.msra.mxu0 0.0
          %1296 = vmatprep.mubr.f32.mxu0 0.0
          %v1297 = vand.u32 %v915, 4294901760
          %1298 = vmatmul.mubr.f32.gmra.mrb[0].mxu0 %v1297
          %v1299 = vpop.f32.mrb[0].mxu0
          %v1300 = vadd.f32 %v1223, %v1299
          %v1301 = vpop.f32.mrb[0].mxu0
          %1302 = vdwg.mxu0
          %1303 = vmatprep.subr.mxu0 0.0
          %v1304 = vand.u32 %v911, 4294901760
          %1305 = vmatpush1.msra.mxu0 %v1304
          %1306 = vmatprep.subr.mxu0 0.0
          %v1307 = vand.u32 %v912, 4294901760
          %1308 = vmatpush1.msra.mxu0 %v1307
          %1309 = vmatprep.subr.mxu0 0.0
          %1310 = vmatpush1.msra.mxu0 0.0
          %1311 = vmatprep.subr.mxu0 0.0
          %1312 = vmatpush1.msra.mxu0 0.0
          %1313 = vmatprep.subr.mxu0 0.0
          %1314 = vmatpush1.msra.mxu0 0.0
          %1315 = vmatprep.subr.mxu0 0.0
          %1316 = vmatpush1.msra.mxu0 0.0
          %1317 = vmatprep.subr.mxu0 0.0
          %1318 = vmatpush1.msra.mxu0 0.0
          %1319 = vmatprep.subr.mxu0 0.0
          %1320 = vmatpush1.msra.mxu0 0.0
          %1321 = vmatprep.subr.mxu0 0.0
          %1322 = vmatpush1.msra.mxu0 0.0
          %1323 = vmatprep.subr.mxu0 0.0
          %1324 = vmatpush1.msra.mxu0 0.0
          %1325 = vmatprep.subr.mxu0 0.0
          %1326 = vmatpush1.msra.mxu0 0.0
          %1327 = vmatprep.subr.mxu0 0.0
          %1328 = vmatpush1.msra.mxu0 0.0
          %1329 = vmatprep.subr.mxu0 0.0
          %1330 = vmatpush1.msra.mxu0 0.0
          %1331 = vmatprep.subr.mxu0 0.0
          %1332 = vmatpush1.msra.mxu0 0.0
          %1333 = vmatprep.subr.mxu0 0.0
          %1334 = vmatpush1.msra.mxu0 0.0
          %1335 = vmatprep.subr.mxu0 0.0
          %1336 = vmatpush1.msra.mxu0 0.0
          %1337 = vmatprep.subr.mxu0 0.0
          %1338 = vmatpush1.msra.mxu0 0.0
          %1339 = vmatprep.subr.mxu0 0.0
          %1340 = vmatpush1.msra.mxu0 0.0
          %1341 = vmatprep.subr.mxu0 0.0
          %1342 = vmatpush1.msra.mxu0 0.0
          %1343 = vmatprep.subr.mxu0 0.0
          %1344 = vmatpush1.msra.mxu0 0.0
          %1345 = vmatprep.subr.mxu0 0.0
          %1346 = vmatpush1.msra.mxu0 0.0
          %1347 = vmatprep.subr.mxu0 0.0
          %1348 = vmatpush1.msra.mxu0 0.0
          %1349 = vmatprep.subr.mxu0 0.0
          %1350 = vmatpush1.msra.mxu0 0.0
          %1351 = vmatprep.subr.mxu0 0.0
          %1352 = vmatpush1.msra.mxu0 0.0
          %1353 = vmatprep.subr.mxu0 0.0
          %1354 = vmatpush1.msra.mxu0 0.0
          %1355 = vmatprep.subr.mxu0 0.0
          %1356 = vmatpush1.msra.mxu0 0.0
          %1357 = vmatprep.subr.mxu0 0.0
          %1358 = vmatpush1.msra.mxu0 0.0
          %1359 = vmatprep.subr.mxu0 0.0
          %1360 = vmatpush1.msra.mxu0 0.0
          %1361 = vmatprep.subr.mxu0 0.0
          %1362 = vmatpush1.msra.mxu0 0.0
          %1363 = vmatprep.subr.mxu0 0.0
          %1364 = vmatpush1.msra.mxu0 0.0
          %1365 = vmatprep.subr.mxu0 0.0
          %1366 = vmatpush1.msra.mxu0 0.0
          %1367 = vmatprep.subr.mxu0 0.0
          %1368 = vmatpush1.msra.mxu0 0.0
          %1369 = vmatprep.mubr.f32.mxu0 0.0
          %v1370 = vand.u32 %v915, 4294901760
          %1371 = vmatmul.mubr.f32.gmra.mrb[0].mxu0 %v1370
          %v1372 = vpop.f32.mrb[0].mxu0
          %v1373 = vadd.f32 %v1300, %v1372
          %v1374 = vpop.f32.mrb[0].mxu0
          %1375 = vdwg.mxu0
          %s1376 = scalar_lea.vmem [#allocation8], %s889
          %v1377 = vld [vmem:[%s1376] sm:$0x1]
          %v1378 = vld [vmem:[#allocation9] sm:$0xff]
          %v1379 = vlaneseq
          %v1380 = vshrl.u32 %v1379, 7
          %v1381 = vsub.s32 0, %v1380
          %v1382 = vrot.slane %v1377, %v1381
          %v1383 = vmul.f32 %v1378, %v1382
          %v1384 = vsel %vm378, %v1383, 0.0
          %1385 = vadd.xlane.f32.xlu0 %v1384
          %v1386 = vpop.xlane.xlu0 %1385
          %v1387 = vld [vmem:[#allocation10] sm:$0xff]
          %v1388 = vmul.f32 %v1387, %v1386
          %v1389 = vsel %vm378, %v1388, 0.0
          %v1390 = vrot.slane %v1389, 4
          %v1391 = vadd.f32 %v1389, %v1390
          %v1392 = vrot.slane %v1391, 2
          %v1393 = vadd.f32 %v1391, %v1392
          %v1394 = vrot.slane %v1393, 1
          %v1395 = vadd.f32 %v1393, %v1394
          %s1396 = scalar_lea.vmem %s281, %s889 [#allocation12]
          %v1397 = vld [vmem:[%s1396] sm:$0x1]
          %s1398 = scalar_lea.vmem [#allocation11], %s889
          %v1399 = vld [vmem:[%s1398] sm:$0x1]
          %v1400 = vadd.f32 %v1397, %v1399
          %v1401 = vmul.f32 %v1395, 0.02
          %v1402 = vadd.f32 %v1400, %v1401
          %v1403 = vadd.f32 %v1402, %v1373
          %v1404 = vld [vmem:[#allocation3] sm:$0x1]
          %v1405 = vmul.f32 %v1404, 0.9
          %v1406 = vadd.f32 %v1405, %v1403
          %v1407 = vtanh.pop %v1406
          %vm1408 = vcmask 253952
          %1409 = vst.msk [vmem:[#allocation3] sm:$0x1] %vm1408, %v1406
          %v1410 = vld [vmem:[%s2] sm:$0xff]
          %v1411 = vld [vmem:[%s2 + $0x8] sm:$0xff]
          %v1412 = vld [vmem:[%s2 + $0x10] sm:$0xff]
          %v1413 = vld [vmem:[%s2 + $0x18] sm:$0xff]
          %v1415 = vsel %vm378, %v1407, 0
          %1417 = vmatprep.subr.mxu0 0.0
          %v1418 = vand.u32 %v1410, 4294901760
          %1419 = vmatpush1.msra.mxu0 %v1418
          %1420 = vmatprep.subr.mxu0 0.0
          %v1421 = vand.u32 %v1411, 4294901760
          %1422 = vmatpush1.msra.mxu0 %v1421
          %1423 = vmatprep.subr.mxu0 0.0
          %v1424 = vand.u32 %v1412, 4294901760
          %1425 = vmatpush1.msra.mxu0 %v1424
          %1426 = vmatprep.subr.mxu0 0.0
          %v1427 = vand.u32 %v1413, 4294901760
          %1428 = vmatpush1.msra.mxu0 %v1427
          %1429 = vmatprep.subr.mxu0 0.0
          %1430 = vmatpush1.msra.mxu0 0.0
          %1431 = vmatprep.subr.mxu0 0.0
          %1432 = vmatpush1.msra.mxu0 0.0
          %1433 = vmatprep.subr.mxu0 0.0
          %1434 = vmatpush1.msra.mxu0 0.0
          %1435 = vmatprep.subr.mxu0 0.0
          %1436 = vmatpush1.msra.mxu0 0.0
          %1437 = vmatprep.subr.mxu0 0.0
          %1438 = vmatpush1.msra.mxu0 0.0
          %1439 = vmatprep.subr.mxu0 0.0
          %1440 = vmatpush1.msra.mxu0 0.0
          %1441 = vmatprep.subr.mxu0 0.0
          %1442 = vmatpush1.msra.mxu0 0.0
          %1443 = vmatprep.subr.mxu0 0.0
          %1444 = vmatpush1.msra.mxu0 0.0
          %1445 = vmatprep.subr.mxu0 0.0
          %1446 = vmatpush1.msra.mxu0 0.0
          %1447 = vmatprep.subr.mxu0 0.0
          %1448 = vmatpush1.msra.mxu0 0.0
          %1449 = vmatprep.subr.mxu0 0.0
          %1450 = vmatpush1.msra.mxu0 0.0
          %1451 = vmatprep.subr.mxu0 0.0
          %1452 = vmatpush1.msra.mxu0 0.0
          %1453 = vmatprep.subr.mxu0 0.0
          %1454 = vmatpush1.msra.mxu0 0.0
          %1455 = vmatprep.subr.mxu0 0.0
          %1456 = vmatpush1.msra.mxu0 0.0
          %1457 = vmatprep.subr.mxu0 0.0
          %1458 = vmatpush1.msra.mxu0 0.0
          %1459 = vmatprep.subr.mxu0 0.0
          %1460 = vmatpush1.msra.mxu0 0.0
          %1461 = vmatprep.subr.mxu0 0.0
          %1462 = vmatpush1.msra.mxu0 0.0
          %1463 = vmatprep.subr.mxu0 0.0
          %1464 = vmatpush1.msra.mxu0 0.0
          %1465 = vmatprep.subr.mxu0 0.0
          %1466 = vmatpush1.msra.mxu0 0.0
          %1467 = vmatprep.subr.mxu0 0.0
          %1468 = vmatpush1.msra.mxu0 0.0
          %1469 = vmatprep.subr.mxu0 0.0
          %1470 = vmatpush1.msra.mxu0 0.0
          %1471 = vmatprep.subr.mxu0 0.0
          %1472 = vmatpush1.msra.mxu0 0.0
          %1473 = vmatprep.subr.mxu0 0.0
          %1474 = vmatpush1.msra.mxu0 0.0
          %1475 = vmatprep.subr.mxu0 0.0
          %1476 = vmatpush1.msra.mxu0 0.0
          %1477 = vmatprep.subr.mxu0 0.0
          %1478 = vmatpush1.msra.mxu0 0.0
          %1479 = vmatprep.subr.mxu0 0.0
          %1480 = vmatpush1.msra.mxu0 0.0
          %1481 = vmatprep.subr.mxu0 0.0
          %1482 = vmatpush1.msra.mxu0 0.0
          %1483 = vmatprep.subr.mxu0 0.0
          %1484 = vmatpush1.msra.mxu0 0.0
          %1485 = vmatprep.mubr.f32.mxu0 0.0
          %v1486 = vand.u32 %v1415, 4294901760
          %v1487 = vsub.f32 %v1415, %v1486
          %v1488 = vand.u32 %v1487, 4294901760
          %v1489 = vsub.f32 %v1487, %v1488
          %v1490 = vand.u32 %v1489, 4294901760
          %1491 = vmatmul.mubr.f32.gmra.mrb[0].mxu0 %v1490
          %v1492 = vpop.f32.mrb[0].mxu0
          %v1493 = vadd.f32 0.0, %v1492
          %v1494 = vpop.f32.mrb[0].mxu0
          %1495 = vdwg.mxu0
          %1496 = vmatprep.subr.mxu0 0.0
          %v1497 = vand.u32 %v1410, 4294901760
          %v1498 = vsub.f32 %v1410, %v1497
          %v1499 = vand.u32 %v1498, 4294901760
          %v1500 = vsub.f32 %v1498, %v1499
          %v1501 = vand.u32 %v1500, 4294901760
          %1502 = vmatpush1.msra.mxu0 %v1501
          %1503 = vmatprep.subr.mxu0 0.0
          %v1504 = vand.u32 %v1411, 4294901760
          %v1505 = vsub.f32 %v1411, %v1504
          %v1506 = vand.u32 %v1505, 4294901760
          %v1507 = vsub.f32 %v1505, %v1506
          %v1508 = vand.u32 %v1507, 4294901760
          %1509 = vmatpush1.msra.mxu0 %v1508
          %1510 = vmatprep.subr.mxu0 0.0
          %v1511 = vand.u32 %v1412, 4294901760
          %v1512 = vsub.f32 %v1412, %v1511
          %v1513 = vand.u32 %v1512, 4294901760
          %v1514 = vsub.f32 %v1512, %v1513
          %v1515 = vand.u32 %v1514, 4294901760
          %1516 = vmatpush1.msra.mxu0 %v1515
          %1517 = vmatprep.subr.mxu0 0.0
          %v1518 = vand.u32 %v1413, 4294901760
          %v1519 = vsub.f32 %v1413, %v1518
          %v1520 = vand.u32 %v1519, 4294901760
          %v1521 = vsub.f32 %v1519, %v1520
          %v1522 = vand.u32 %v1521, 4294901760
          %1523 = vmatpush1.msra.mxu0 %v1522
          %1524 = vmatprep.subr.mxu0 0.0
          %1525 = vmatpush1.msra.mxu0 0.0
          %1526 = vmatprep.subr.mxu0 0.0
          %1527 = vmatpush1.msra.mxu0 0.0
          %1528 = vmatprep.subr.mxu0 0.0
          %1529 = vmatpush1.msra.mxu0 0.0
          %1530 = vmatprep.subr.mxu0 0.0
          %1531 = vmatpush1.msra.mxu0 0.0
          %1532 = vmatprep.subr.mxu0 0.0
          %1533 = vmatpush1.msra.mxu0 0.0
          %1534 = vmatprep.subr.mxu0 0.0
          %1535 = vmatpush1.msra.mxu0 0.0
          %1536 = vmatprep.subr.mxu0 0.0
          %1537 = vmatpush1.msra.mxu0 0.0
          %1538 = vmatprep.subr.mxu0 0.0
          %1539 = vmatpush1.msra.mxu0 0.0
          %1540 = vmatprep.subr.mxu0 0.0
          %1541 = vmatpush1.msra.mxu0 0.0
          %1542 = vmatprep.subr.mxu0 0.0
          %1543 = vmatpush1.msra.mxu0 0.0
          %1544 = vmatprep.subr.mxu0 0.0
          %1545 = vmatpush1.msra.mxu0 0.0
          %1546 = vmatprep.subr.mxu0 0.0
          %1547 = vmatpush1.msra.mxu0 0.0
          %1548 = vmatprep.subr.mxu0 0.0
          %1549 = vmatpush1.msra.mxu0 0.0
          %1550 = vmatprep.subr.mxu0 0.0
          %1551 = vmatpush1.msra.mxu0 0.0
          %1552 = vmatprep.subr.mxu0 0.0
          %1553 = vmatpush1.msra.mxu0 0.0
          %1554 = vmatprep.subr.mxu0 0.0
          %1555 = vmatpush1.msra.mxu0 0.0
          %1556 = vmatprep.subr.mxu0 0.0
          %1557 = vmatpush1.msra.mxu0 0.0
          %1558 = vmatprep.subr.mxu0 0.0
          %1559 = vmatpush1.msra.mxu0 0.0
          %1560 = vmatprep.subr.mxu0 0.0
          %1561 = vmatpush1.msra.mxu0 0.0
          %1562 = vmatprep.subr.mxu0 0.0
          %1563 = vmatpush1.msra.mxu0 0.0
          %1564 = vmatprep.subr.mxu0 0.0
          %1565 = vmatpush1.msra.mxu0 0.0
          %1566 = vmatprep.subr.mxu0 0.0
          %1567 = vmatpush1.msra.mxu0 0.0
          %1568 = vmatprep.subr.mxu0 0.0
          %1569 = vmatpush1.msra.mxu0 0.0
          %1570 = vmatprep.subr.mxu0 0.0
          %1571 = vmatpush1.msra.mxu0 0.0
          %1572 = vmatprep.subr.mxu0 0.0
          %1573 = vmatpush1.msra.mxu0 0.0
          %1574 = vmatprep.subr.mxu0 0.0
          %1575 = vmatpush1.msra.mxu0 0.0
          %1576 = vmatprep.subr.mxu0 0.0
          %1577 = vmatpush1.msra.mxu0 0.0
          %1578 = vmatprep.subr.mxu0 0.0
          %1579 = vmatpush1.msra.mxu0 0.0
          %1580 = vmatprep.mubr.f32.mxu0 0.0
          %v1581 = vand.u32 %v1415, 4294901760
          %1582 = vmatmul.mubr.f32.gmra.mrb[0].mxu0 %v1581
          %v1583 = vpop.f32.mrb[0].mxu0
          %v1584 = vadd.f32 %v1493, %v1583
          %v1585 = vpop.f32.mrb[0].mxu0
          %1586 = vdwg.mxu0
          %1587 = vmatprep.subr.mxu0 0.0
          %v1588 = vand.u32 %v1410, 4294901760
          %v1589 = vsub.f32 %v1410, %v1588
          %1590 = vmatpush1.msra.mxu0 %v1589
          %1591 = vmatprep.subr.mxu0 0.0
          %v1592 = vand.u32 %v1411, 4294901760
          %v1593 = vsub.f32 %v1411, %v1592
          %1594 = vmatpush1.msra.mxu0 %v1593
          %1595 = vmatprep.subr.mxu0 0.0
          %v1596 = vand.u32 %v1412, 4294901760
          %v1597 = vsub.f32 %v1412, %v1596
          %1598 = vmatpush1.msra.mxu0 %v1597
          %1599 = vmatprep.subr.mxu0 0.0
          %v1600 = vand.u32 %v1413, 4294901760
          %v1601 = vsub.f32 %v1413, %v1600
          %1602 = vmatpush1.msra.mxu0 %v1601
          %1603 = vmatprep.subr.mxu0 0.0
          %1604 = vmatpush1.msra.mxu0 0.0
          %1605 = vmatprep.subr.mxu0 0.0
          %1606 = vmatpush1.msra.mxu0 0.0
          %1607 = vmatprep.subr.mxu0 0.0
          %1608 = vmatpush1.msra.mxu0 0.0
          %1609 = vmatprep.subr.mxu0 0.0
          %1610 = vmatpush1.msra.mxu0 0.0
          %1611 = vmatprep.subr.mxu0 0.0
          %1612 = vmatpush1.msra.mxu0 0.0
          %1613 = vmatprep.subr.mxu0 0.0
          %1614 = vmatpush1.msra.mxu0 0.0
          %1615 = vmatprep.subr.mxu0 0.0
          %1616 = vmatpush1.msra.mxu0 0.0
          %1617 = vmatprep.subr.mxu0 0.0
          %1618 = vmatpush1.msra.mxu0 0.0
          %1619 = vmatprep.subr.mxu0 0.0
          %1620 = vmatpush1.msra.mxu0 0.0
          %1621 = vmatprep.subr.mxu0 0.0
          %1622 = vmatpush1.msra.mxu0 0.0
          %1623 = vmatprep.subr.mxu0 0.0
          %1624 = vmatpush1.msra.mxu0 0.0
          %1625 = vmatprep.subr.mxu0 0.0
          %1626 = vmatpush1.msra.mxu0 0.0
          %1627 = vmatprep.subr.mxu0 0.0
          %1628 = vmatpush1.msra.mxu0 0.0
          %1629 = vmatprep.subr.mxu0 0.0
          %1630 = vmatpush1.msra.mxu0 0.0
          %1631 = vmatprep.subr.mxu0 0.0
          %1632 = vmatpush1.msra.mxu0 0.0
          %1633 = vmatprep.subr.mxu0 0.0
          %1634 = vmatpush1.msra.mxu0 0.0
          %1635 = vmatprep.subr.mxu0 0.0
          %1636 = vmatpush1.msra.mxu0 0.0
          %1637 = vmatprep.subr.mxu0 0.0
          %1638 = vmatpush1.msra.mxu0 0.0
          %1639 = vmatprep.subr.mxu0 0.0
          %1640 = vmatpush1.msra.mxu0 0.0
          %1641 = vmatprep.subr.mxu0 0.0
          %1642 = vmatpush1.msra.mxu0 0.0
          %1643 = vmatprep.subr.mxu0 0.0
          %1644 = vmatpush1.msra.mxu0 0.0
          %1645 = vmatprep.subr.mxu0 0.0
          %1646 = vmatpush1.msra.mxu0 0.0
          %1647 = vmatprep.subr.mxu0 0.0
          %1648 = vmatpush1.msra.mxu0 0.0
          %1649 = vmatprep.subr.mxu0 0.0
          %1650 = vmatpush1.msra.mxu0 0.0
          %1651 = vmatprep.subr.mxu0 0.0
          %1652 = vmatpush1.msra.mxu0 0.0
          %1653 = vmatprep.subr.mxu0 0.0
          %1654 = vmatpush1.msra.mxu0 0.0
          %1655 = vmatprep.subr.mxu0 0.0
          %1656 = vmatpush1.msra.mxu0 0.0
          %1657 = vmatprep.subr.mxu0 0.0
          %1658 = vmatpush1.msra.mxu0 0.0
          %1659 = vmatprep.mubr.f32.mxu0 0.0
          %v1660 = vand.u32 %v1415, 4294901760
          %v1661 = vsub.f32 %v1415, %v1660
          %1662 = vmatmul.mubr.f32.gmra.mrb[0].mxu0 %v1661
          %v1663 = vpop.f32.mrb[0].mxu0
          %v1664 = vadd.f32 %v1584, %v1663
          %v1665 = vpop.f32.mrb[0].mxu0
          %1666 = vdwg.mxu0
          %1667 = vmatprep.subr.mxu0 0.0
          %v1668 = vand.u32 %v1410, 4294901760
          %1669 = vmatpush1.msra.mxu0 %v1668
          %1670 = vmatprep.subr.mxu0 0.0
          %v1671 = vand.u32 %v1411, 4294901760
          %1672 = vmatpush1.msra.mxu0 %v1671
          %1673 = vmatprep.subr.mxu0 0.0
          %v1674 = vand.u32 %v1412, 4294901760
          %1675 = vmatpush1.msra.mxu0 %v1674
          %1676 = vmatprep.subr.mxu0 0.0
          %v1677 = vand.u32 %v1413, 4294901760
          %1678 = vmatpush1.msra.mxu0 %v1677
          %1679 = vmatprep.subr.mxu0 0.0
          %1680 = vmatpush1.msra.mxu0 0.0
          %1681 = vmatprep.subr.mxu0 0.0
          %1682 = vmatpush1.msra.mxu0 0.0
          %1683 = vmatprep.subr.mxu0 0.0
          %1684 = vmatpush1.msra.mxu0 0.0
          %1685 = vmatprep.subr.mxu0 0.0
          %1686 = vmatpush1.msra.mxu0 0.0
          %1687 = vmatprep.subr.mxu0 0.0
          %1688 = vmatpush1.msra.mxu0 0.0
          %1689 = vmatprep.subr.mxu0 0.0
          %1690 = vmatpush1.msra.mxu0 0.0
          %1691 = vmatprep.subr.mxu0 0.0
          %1692 = vmatpush1.msra.mxu0 0.0
          %1693 = vmatprep.subr.mxu0 0.0
          %1694 = vmatpush1.msra.mxu0 0.0
          %1695 = vmatprep.subr.mxu0 0.0
          %1696 = vmatpush1.msra.mxu0 0.0
          %1697 = vmatprep.subr.mxu0 0.0
          %1698 = vmatpush1.msra.mxu0 0.0
          %1699 = vmatprep.subr.mxu0 0.0
          %1700 = vmatpush1.msra.mxu0 0.0
          %1701 = vmatprep.subr.mxu0 0.0
          %1702 = vmatpush1.msra.mxu0 0.0
          %1703 = vmatprep.subr.mxu0 0.0
          %1704 = vmatpush1.msra.mxu0 0.0
          %1705 = vmatprep.subr.mxu0 0.0
          %1706 = vmatpush1.msra.mxu0 0.0
          %1707 = vmatprep.subr.mxu0 0.0
          %1708 = vmatpush1.msra.mxu0 0.0
          %1709 = vmatprep.subr.mxu0 0.0
          %1710 = vmatpush1.msra.mxu0 0.0
          %1711 = vmatprep.subr.mxu0 0.0
          %1712 = vmatpush1.msra.mxu0 0.0
          %1713 = vmatprep.subr.mxu0 0.0
          %1714 = vmatpush1.msra.mxu0 0.0
          %1715 = vmatprep.subr.mxu0 0.0
          %1716 = vmatpush1.msra.mxu0 0.0
          %1717 = vmatprep.subr.mxu0 0.0
          %1718 = vmatpush1.msra.mxu0 0.0
          %1719 = vmatprep.subr.mxu0 0.0
          %1720 = vmatpush1.msra.mxu0 0.0
          %1721 = vmatprep.subr.mxu0 0.0
          %1722 = vmatpush1.msra.mxu0 0.0
          %1723 = vmatprep.subr.mxu0 0.0
          %1724 = vmatpush1.msra.mxu0 0.0
          %1725 = vmatprep.subr.mxu0 0.0
          %1726 = vmatpush1.msra.mxu0 0.0
          %1727 = vmatprep.subr.mxu0 0.0
          %1728 = vmatpush1.msra.mxu0 0.0
          %1729 = vmatprep.subr.mxu0 0.0
          %1730 = vmatpush1.msra.mxu0 0.0
          %1731 = vmatprep.subr.mxu0 0.0
          %1732 = vmatpush1.msra.mxu0 0.0
          %1733 = vmatprep.subr.mxu0 0.0
          %1734 = vmatpush1.msra.mxu0 0.0
          %1735 = vmatprep.mubr.f32.mxu0 0.0
          %v1736 = vand.u32 %v1415, 4294901760
          %v1737 = vsub.f32 %v1415, %v1736
          %v1738 = vand.u32 %v1737, 4294901760
          %1739 = vmatmul.mubr.f32.gmra.mrb[0].mxu0 %v1738
          %v1740 = vpop.f32.mrb[0].mxu0
          %v1741 = vadd.f32 %v1664, %v1740
          %v1742 = vpop.f32.mrb[0].mxu0
          %1743 = vdwg.mxu0
          %1744 = vmatprep.subr.mxu0 0.0
          %v1745 = vand.u32 %v1410, 4294901760
          %v1746 = vsub.f32 %v1410, %v1745
          %v1747 = vand.u32 %v1746, 4294901760
          %1748 = vmatpush1.msra.mxu0 %v1747
          %1749 = vmatprep.subr.mxu0 0.0
          %v1750 = vand.u32 %v1411, 4294901760
          %v1751 = vsub.f32 %v1411, %v1750
          %v1752 = vand.u32 %v1751, 4294901760
          %1753 = vmatpush1.msra.mxu0 %v1752
          %1754 = vmatprep.subr.mxu0 0.0
          %v1755 = vand.u32 %v1412, 4294901760
          %v1756 = vsub.f32 %v1412, %v1755
          %v1757 = vand.u32 %v1756, 4294901760
          %1758 = vmatpush1.msra.mxu0 %v1757
          %1759 = vmatprep.subr.mxu0 0.0
          %v1760 = vand.u32 %v1413, 4294901760
          %v1761 = vsub.f32 %v1413, %v1760
          %v1762 = vand.u32 %v1761, 4294901760
          %1763 = vmatpush1.msra.mxu0 %v1762
          %1764 = vmatprep.subr.mxu0 0.0
          %1765 = vmatpush1.msra.mxu0 0.0
          %1766 = vmatprep.subr.mxu0 0.0
          %1767 = vmatpush1.msra.mxu0 0.0
          %1768 = vmatprep.subr.mxu0 0.0
          %1769 = vmatpush1.msra.mxu0 0.0
          %1770 = vmatprep.subr.mxu0 0.0
          %1771 = vmatpush1.msra.mxu0 0.0
          %1772 = vmatprep.subr.mxu0 0.0
          %1773 = vmatpush1.msra.mxu0 0.0
          %1774 = vmatprep.subr.mxu0 0.0
          %1775 = vmatpush1.msra.mxu0 0.0
          %1776 = vmatprep.subr.mxu0 0.0
          %1777 = vmatpush1.msra.mxu0 0.0
          %1778 = vmatprep.subr.mxu0 0.0
          %1779 = vmatpush1.msra.mxu0 0.0
          %1780 = vmatprep.subr.mxu0 0.0
          %1781 = vmatpush1.msra.mxu0 0.0
          %1782 = vmatprep.subr.mxu0 0.0
          %1783 = vmatpush1.msra.mxu0 0.0
          %1784 = vmatprep.subr.mxu0 0.0
          %1785 = vmatpush1.msra.mxu0 0.0
          %1786 = vmatprep.subr.mxu0 0.0
          %1787 = vmatpush1.msra.mxu0 0.0
          %1788 = vmatprep.subr.mxu0 0.0
          %1789 = vmatpush1.msra.mxu0 0.0
          %1790 = vmatprep.subr.mxu0 0.0
          %1791 = vmatpush1.msra.mxu0 0.0
          %1792 = vmatprep.subr.mxu0 0.0
          %1793 = vmatpush1.msra.mxu0 0.0
          %1794 = vmatprep.subr.mxu0 0.0
          %1795 = vmatpush1.msra.mxu0 0.0
          %1796 = vmatprep.subr.mxu0 0.0
          %1797 = vmatpush1.msra.mxu0 0.0
          %1798 = vmatprep.subr.mxu0 0.0
          %1799 = vmatpush1.msra.mxu0 0.0
          %1800 = vmatprep.subr.mxu0 0.0
          %1801 = vmatpush1.msra.mxu0 0.0
          %1802 = vmatprep.subr.mxu0 0.0
          %1803 = vmatpush1.msra.mxu0 0.0
          %1804 = vmatprep.subr.mxu0 0.0
          %1805 = vmatpush1.msra.mxu0 0.0
          %1806 = vmatprep.subr.mxu0 0.0
          %1807 = vmatpush1.msra.mxu0 0.0
          %1808 = vmatprep.subr.mxu0 0.0
          %1809 = vmatpush1.msra.mxu0 0.0
          %1810 = vmatprep.subr.mxu0 0.0
          %1811 = vmatpush1.msra.mxu0 0.0
          %1812 = vmatprep.subr.mxu0 0.0
          %1813 = vmatpush1.msra.mxu0 0.0
          %1814 = vmatprep.subr.mxu0 0.0
          %1815 = vmatpush1.msra.mxu0 0.0
          %1816 = vmatprep.subr.mxu0 0.0
          %1817 = vmatpush1.msra.mxu0 0.0
          %1818 = vmatprep.subr.mxu0 0.0
          %1819 = vmatpush1.msra.mxu0 0.0
          %1820 = vmatprep.mubr.f32.mxu0 0.0
          %v1821 = vand.u32 %v1415, 4294901760
          %1822 = vmatmul.mubr.f32.gmra.mrb[0].mxu0 %v1821
          %v1823 = vpop.f32.mrb[0].mxu0
          %v1824 = vadd.f32 %v1741, %v1823
          %v1825 = vpop.f32.mrb[0].mxu0
          %1826 = vdwg.mxu0
          %1827 = vmatprep.subr.mxu0 0.0
          %v1828 = vand.u32 %v1410, 4294901760
          %1829 = vmatpush1.msra.mxu0 %v1828
          %1830 = vmatprep.subr.mxu0 0.0
          %v1831 = vand.u32 %v1411, 4294901760
          %1832 = vmatpush1.msra.mxu0 %v1831
          %1833 = vmatprep.subr.mxu0 0.0
          %v1834 = vand.u32 %v1412, 4294901760
          %1835 = vmatpush1.msra.mxu0 %v1834
          %1836 = vmatprep.subr.mxu0 0.0
          %v1837 = vand.u32 %v1413, 4294901760
          %1838 = vmatpush1.msra.mxu0 %v1837
          %1839 = vmatprep.subr.mxu0 0.0
          %1840 = vmatpush1.msra.mxu0 0.0
          %1841 = vmatprep.subr.mxu0 0.0
          %1842 = vmatpush1.msra.mxu0 0.0
          %1843 = vmatprep.subr.mxu0 0.0
          %1844 = vmatpush1.msra.mxu0 0.0
          %1845 = vmatprep.subr.mxu0 0.0
          %1846 = vmatpush1.msra.mxu0 0.0
          %1847 = vmatprep.subr.mxu0 0.0
          %1848 = vmatpush1.msra.mxu0 0.0
          %1849 = vmatprep.subr.mxu0 0.0
          %1850 = vmatpush1.msra.mxu0 0.0
          %1851 = vmatprep.subr.mxu0 0.0
          %1852 = vmatpush1.msra.mxu0 0.0
          %1853 = vmatprep.subr.mxu0 0.0
          %1854 = vmatpush1.msra.mxu0 0.0
          %1855 = vmatprep.subr.mxu0 0.0
          %1856 = vmatpush1.msra.mxu0 0.0
          %1857 = vmatprep.subr.mxu0 0.0
          %1858 = vmatpush1.msra.mxu0 0.0
          %1859 = vmatprep.subr.mxu0 0.0
          %1860 = vmatpush1.msra.mxu0 0.0
          %1861 = vmatprep.subr.mxu0 0.0
          %1862 = vmatpush1.msra.mxu0 0.0
          %1863 = vmatprep.subr.mxu0 0.0
          %1864 = vmatpush1.msra.mxu0 0.0
          %1865 = vmatprep.subr.mxu0 0.0
          %1866 = vmatpush1.msra.mxu0 0.0
          %1867 = vmatprep.subr.mxu0 0.0
          %1868 = vmatpush1.msra.mxu0 0.0
          %1869 = vmatprep.subr.mxu0 0.0
          %1870 = vmatpush1.msra.mxu0 0.0
          %1871 = vmatprep.subr.mxu0 0.0
          %1872 = vmatpush1.msra.mxu0 0.0
          %1873 = vmatprep.subr.mxu0 0.0
          %1874 = vmatpush1.msra.mxu0 0.0
          %1875 = vmatprep.subr.mxu0 0.0
          %1876 = vmatpush1.msra.mxu0 0.0
          %1877 = vmatprep.subr.mxu0 0.0
          %1878 = vmatpush1.msra.mxu0 0.0
          %1879 = vmatprep.subr.mxu0 0.0
          %1880 = vmatpush1.msra.mxu0 0.0
          %1881 = vmatprep.subr.mxu0 0.0
          %1882 = vmatpush1.msra.mxu0 0.0
          %1883 = vmatprep.subr.mxu0 0.0
          %1884 = vmatpush1.msra.mxu0 0.0
          %1885 = vmatprep.subr.mxu0 0.0
          %1886 = vmatpush1.msra.mxu0 0.0
          %1887 = vmatprep.subr.mxu0 0.0
          %1888 = vmatpush1.msra.mxu0 0.0
          %1889 = vmatprep.subr.mxu0 0.0
          %1890 = vmatpush1.msra.mxu0 0.0
          %1891 = vmatprep.subr.mxu0 0.0
          %1892 = vmatpush1.msra.mxu0 0.0
          %1893 = vmatprep.subr.mxu0 0.0
          %1894 = vmatpush1.msra.mxu0 0.0
          %1895 = vmatprep.mubr.f32.mxu0 0.0
          %v1896 = vand.u32 %v1415, 4294901760
          %1897 = vmatmul.mubr.f32.gmra.mrb[0].mxu0 %v1896
          %v1898 = vpop.f32.mrb[0].mxu0
          %v1899 = vadd.f32 %v1824, %v1898
          %v1900 = vpop.f32.mrb[0].mxu0
          %1901 = vdwg.mxu0
          %v1902 = vld [vmem:[#allocation4] sm:$0x1]
          %v1903 = vmul.f32 %v1902, 0.9
          %v1904 = vadd.f32 %v1903, %v1899
          %v1905 = vtanh.pop %v1904
          %vm1906 = vcmask 122880
          %1907 = vst.msk [vmem:[%s909] sm:$0x1] %vm1906, %v1905
          %1908 = vst.msk [vmem:[#allocation4] sm:$0x1] %vm1906, %v1904
          %v1909 = vld [vmem:[#allocation6] sm:$0x1]
          %v1910 = vmul.f32 %v1909, 0.95122945
          %v1911 = vmul.f32 %v1407, 0.048770577
          %v1912 = vadd.f32 %v1910, %v1911
          %1913 = vst.msk [vmem:[#allocation6] sm:$0x1] %vm1408, %v1912
          %s1914 = scalar_lea.vmem [#allocation10], %s889
          %1915 = vst.msk [vmem:[%s1914] sm:$0x1] %vm1408, %v1912
          %s1916 = scalar_lea.vmem %s327, %s889 [#allocation18]
          %1917 = vst.msk [vmem:[%s1916] sm:$0x1] %vm1408, %v1407
        $region56: #{tpu_custom_call.1} parent=35 // loop_footer
          %s893 = sadd.s32 1, %s889
        $region57: #{tpu_custom_call.1} parent=35 // loop_footer_branch
          %888 = sbr.rel target = $region53
        $region58: #{tpu_custom_call.1} parent=35 // loop_exit
          _
        %v1918 = vld [vmem:[%s313] sm:$0xff]
        %v1919 = vld [vmem:[%s313 + $0x8] sm:$0xff]
        %v1920 = vld [vmem:[%s313 + $0x10] sm:$0xff]
        %v1921 = vld [vmem:[%s313 + $0x18] sm:$0xff]
        %v1922 = vld [vmem:[#allocation10] sm:$0xff]
        %v1923 = vld [vmem:[#allocation9] sm:$0xff]
        %1924 = vxpose.xlu0.b32.start [1/16] %v1922, 128
        %1925 = vxpose.xlu0.b32.cont [2/16] 0.0, 128
        %1926 = vxpose.xlu0.b32.cont [3/16] 0.0, 128
        %1927 = vxpose.xlu0.b32.cont [4/16] 0.0, 128
        %1928 = vxpose.xlu0.b32.cont [5/16] 0.0, 128
        %1929 = vxpose.xlu0.b32.cont [6/16] 0.0, 128
        %1930 = vxpose.xlu0.b32.cont [7/16] 0.0, 128
        %1931 = vxpose.xlu0.b32.cont [8/16] 0.0, 128
        %1932 = vxpose.xlu0.b32.cont [9/16] 0.0, 128
        %1933 = vxpose.xlu0.b32.cont [10/16] 0.0, 128
        %1934 = vxpose.xlu0.b32.cont [11/16] 0.0, 128
        %1935 = vxpose.xlu0.b32.cont [12/16] 0.0, 128
        %1936 = vxpose.xlu0.b32.cont [13/16] 0.0, 128
        %1937 = vxpose.xlu0.b32.cont [14/16] 0.0, 128
        %1938 = vxpose.xlu0.b32.cont [15/16] 0.0, 128
        %1939 = vxpose.xlu0.b32.end [16/16] 0.0, 128
        %v1940 = vpop.trf.xlu0
        %v1941 = vpop.trf.xlu0
        %v1942 = vpop.trf.xlu0
        %v1943 = vpop.trf.xlu0
        %v1944 = vpop.trf.xlu0
        %v1945 = vpop.trf.xlu0
        %v1946 = vpop.trf.xlu0
        %v1947 = vpop.trf.xlu0
        %v1948 = vpop.trf.xlu0
        %v1949 = vpop.trf.xlu0
        %v1950 = vpop.trf.xlu0
        %v1951 = vpop.trf.xlu0
        %v1952 = vpop.trf.xlu0
        %v1953 = vpop.trf.xlu0
        %v1954 = vpop.trf.xlu0
        %v1955 = vpop.trf.xlu0
        %vm1956 = vcmask 64512
        %v1958 = vsel %vm1956, %v1940, 0
        %v1961 = vsel %vm1956, %v1941, 0
        %v1964 = vsel %vm1956, %v1942, 0
        %v1967 = vsel %vm1956, %v1943, 0
        %1969 = vmatprep.subr.mxu0 0.0
        %v1970 = vand.u32 %v1923, 4294901760
        %1971 = vmatpush1.msra.mxu0 %v1970
        %1972 = vmatprep.subr.mxu0 0.0
        %1973 = vmatpush1.msra.mxu0 0.0
        %1974 = vmatprep.subr.mxu0 0.0
        %1975 = vmatpush1.msra.mxu0 0.0
        %1976 = vmatprep.subr.mxu0 0.0
        %1977 = vmatpush1.msra.mxu0 0.0
        %1978 = vmatprep.subr.mxu0 0.0
        %1979 = vmatpush1.msra.mxu0 0.0
        %1980 = vmatprep.subr.mxu0 0.0
        %1981 = vmatpush1.msra.mxu0 0.0
        %1982 = vmatprep.subr.mxu0 0.0
        %1983 = vmatpush1.msra.mxu0 0.0
        %1984 = vmatprep.subr.mxu0 0.0
        %1985 = vmatpush1.msra.mxu0 0.0
        %1986 = vmatprep.subr.mxu0 0.0
        %1987 = vmatpush1.msra.mxu0 0.0
        %1988 = vmatprep.subr.mxu0 0.0
        %1989 = vmatpush1.msra.mxu0 0.0
        %1990 = vmatprep.subr.mxu0 0.0
        %1991 = vmatpush1.msra.mxu0 0.0
        %1992 = vmatprep.subr.mxu0 0.0
        %1993 = vmatpush1.msra.mxu0 0.0
        %1994 = vmatprep.subr.mxu0 0.0
        %1995 = vmatpush1.msra.mxu0 0.0
        %1996 = vmatprep.subr.mxu0 0.0
        %1997 = vmatpush1.msra.mxu0 0.0
        %1998 = vmatprep.subr.mxu0 0.0
        %1999 = vmatpush1.msra.mxu0 0.0
        %2000 = vmatprep.subr.mxu0 0.0
        %2001 = vmatpush1.msra.mxu0 0.0
        %2002 = vmatprep.subr.mxu0 0.0
        %2003 = vmatpush1.msra.mxu0 0.0
        %2004 = vmatprep.subr.mxu0 0.0
        %2005 = vmatpush1.msra.mxu0 0.0
        %2006 = vmatprep.subr.mxu0 0.0
        %2007 = vmatpush1.msra.mxu0 0.0
        %2008 = vmatprep.subr.mxu0 0.0
        %2009 = vmatpush1.msra.mxu0 0.0
        %2010 = vmatprep.subr.mxu0 0.0
        %2011 = vmatpush1.msra.mxu0 0.0
        %2012 = vmatprep.subr.mxu0 0.0
        %2013 = vmatpush1.msra.mxu0 0.0
        %2014 = vmatprep.subr.mxu0 0.0
        %2015 = vmatpush1.msra.mxu0 0.0
        %2016 = vmatprep.subr.mxu0 0.0
        %2017 = vmatpush1.msra.mxu0 0.0
        %2018 = vmatprep.subr.mxu0 0.0
        %2019 = vmatpush1.msra.mxu0 0.0
        %2020 = vmatprep.subr.mxu0 0.0
        %2021 = vmatpush1.msra.mxu0 0.0
        %2022 = vmatprep.subr.mxu0 0.0
        %2023 = vmatpush1.msra.mxu0 0.0
        %2024 = vmatprep.subr.mxu0 0.0
        %2025 = vmatpush1.msra.mxu0 0.0
        %2026 = vmatprep.subr.mxu0 0.0
        %2027 = vmatpush1.msra.mxu0 0.0
        %2028 = vmatprep.subr.mxu0 0.0
        %2029 = vmatpush1.msra.mxu0 0.0
        %2030 = vmatprep.subr.mxu0 0.0
        %2031 = vmatpush1.msra.mxu0 0.0
        %2032 = vmatprep.subr.mxu0 0.0
        %2033 = vmatpush1.msra.mxu0 0.0
        %2034 = vmatprep.mubr.f32.mxu0 0.0
        %v2035 = vand.u32 %v1958, 4294901760
        %v2036 = vsub.f32 %v1958, %v2035
        %v2037 = vand.u32 %v2036, 4294901760
        %v2038 = vsub.f32 %v2036, %v2037
        %v2039 = vand.u32 %v2038, 4294901760
        %2040 = vmatmul.mubr.f32.gmra.mrb[0].mxu0 %v2039
        %v2041 = vpop.f32.mrb[0].mxu0
        %v2042 = vadd.f32 0.0, %v2041
        %v2043 = vpop.f32.mrb[0].mxu0
        %2044 = vmatprep.mubr.f32.mxu0 0.0
        %v2045 = vand.u32 %v1961, 4294901760
        %v2046 = vsub.f32 %v1961, %v2045
        %v2047 = vand.u32 %v2046, 4294901760
        %v2048 = vsub.f32 %v2046, %v2047
        %v2049 = vand.u32 %v2048, 4294901760
        %2050 = vmatmul.mubr.f32.gmra.mrb[0].mxu0 %v2049
        %v2051 = vpop.f32.mrb[0].mxu0
        %v2052 = vadd.f32 0.0, %v2051
        %v2053 = vpop.f32.mrb[0].mxu0
        %2054 = vmatprep.mubr.f32.mxu0 0.0
        %v2055 = vand.u32 %v1964, 4294901760
        %v2056 = vsub.f32 %v1964, %v2055
        %v2057 = vand.u32 %v2056, 4294901760
        %v2058 = vsub.f32 %v2056, %v2057
        %v2059 = vand.u32 %v2058, 4294901760
        %2060 = vmatmul.mubr.f32.gmra.mrb[0].mxu0 %v2059
        %v2061 = vpop.f32.mrb[0].mxu0
        %v2062 = vadd.f32 0.0, %v2061
        %v2063 = vpop.f32.mrb[0].mxu0
        %2064 = vmatprep.mubr.f32.mxu0 0.0
        %v2065 = vand.u32 %v1967, 4294901760
        %v2066 = vsub.f32 %v1967, %v2065
        %v2067 = vand.u32 %v2066, 4294901760
        %v2068 = vsub.f32 %v2066, %v2067
        %v2069 = vand.u32 %v2068, 4294901760
        %2070 = vmatmul.mubr.f32.gmra.mrb[0].mxu0 %v2069
        %v2071 = vpop.f32.mrb[0].mxu0
        %v2072 = vadd.f32 0.0, %v2071
        %v2073 = vpop.f32.mrb[0].mxu0
        %2074 = vdwg.mxu0
        %2075 = vmatprep.subr.mxu0 0.0
        %v2076 = vand.u32 %v1923, 4294901760
        %v2077 = vsub.f32 %v1923, %v2076
        %v2078 = vand.u32 %v2077, 4294901760
        %v2079 = vsub.f32 %v2077, %v2078
        %v2080 = vand.u32 %v2079, 4294901760
        %2081 = vmatpush1.msra.mxu0 %v2080
        %2082 = vmatprep.subr.mxu0 0.0
        %2083 = vmatpush1.msra.mxu0 0.0
        %2084 = vmatprep.subr.mxu0 0.0
        %2085 = vmatpush1.msra.mxu0 0.0
        %2086 = vmatprep.subr.mxu0 0.0
        %2087 = vmatpush1.msra.mxu0 0.0
        %2088 = vmatprep.subr.mxu0 0.0
        %2089 = vmatpush1.msra.mxu0 0.0
        %2090 = vmatprep.subr.mxu0 0.0
        %2091 = vmatpush1.msra.mxu0 0.0
        %2092 = vmatprep.subr.mxu0 0.0
        %2093 = vmatpush1.msra.mxu0 0.0
        %2094 = vmatprep.subr.mxu0 0.0
        %2095 = vmatpush1.msra.mxu0 0.0
        %2096 = vmatprep.subr.mxu0 0.0
        %2097 = vmatpush1.msra.mxu0 0.0
        %2098 = vmatprep.subr.mxu0 0.0
        %2099 = vmatpush1.msra.mxu0 0.0
        %2100 = vmatprep.subr.mxu0 0.0
        %2101 = vmatpush1.msra.mxu0 0.0
        %2102 = vmatprep.subr.mxu0 0.0
        %2103 = vmatpush1.msra.mxu0 0.0
        %2104 = vmatprep.subr.mxu0 0.0
        %2105 = vmatpush1.msra.mxu0 0.0
        %2106 = vmatprep.subr.mxu0 0.0
        %2107 = vmatpush1.msra.mxu0 0.0
        %2108 = vmatprep.subr.mxu0 0.0
        %2109 = vmatpush1.msra.mxu0 0.0
        %2110 = vmatprep.subr.mxu0 0.0
        %2111 = vmatpush1.msra.mxu0 0.0
        %2112 = vmatprep.subr.mxu0 0.0
        %2113 = vmatpush1.msra.mxu0 0.0
        %2114 = vmatprep.subr.mxu0 0.0
        %2115 = vmatpush1.msra.mxu0 0.0
        %2116 = vmatprep.subr.mxu0 0.0
        %2117 = vmatpush1.msra.mxu0 0.0
        %2118 = vmatprep.subr.mxu0 0.0
        %2119 = vmatpush1.msra.mxu0 0.0
        %2120 = vmatprep.subr.mxu0 0.0
        %2121 = vmatpush1.msra.mxu0 0.0
        %2122 = vmatprep.subr.mxu0 0.0
        %2123 = vmatpush1.msra.mxu0 0.0
        %2124 = vmatprep.subr.mxu0 0.0
        %2125 = vmatpush1.msra.mxu0 0.0
        %2126 = vmatprep.subr.mxu0 0.0
        %2127 = vmatpush1.msra.mxu0 0.0
        %2128 = vmatprep.subr.mxu0 0.0
        %2129 = vmatpush1.msra.mxu0 0.0
        %2130 = vmatprep.subr.mxu0 0.0
        %2131 = vmatpush1.msra.mxu0 0.0
        %2132 = vmatprep.subr.mxu0 0.0
        %2133 = vmatpush1.msra.mxu0 0.0
        %2134 = vmatprep.subr.mxu0 0.0
        %2135 = vmatpush1.msra.mxu0 0.0
        %2136 = vmatprep.subr.mxu0 0.0
        %2137 = vmatpush1.msra.mxu0 0.0
        %2138 = vmatprep.subr.mxu0 0.0
        %2139 = vmatpush1.msra.mxu0 0.0
        %2140 = vmatprep.subr.mxu0 0.0
        %2141 = vmatpush1.msra.mxu0 0.0
        %2142 = vmatprep.subr.mxu0 0.0
        %2143 = vmatpush1.msra.mxu0 0.0
        %2144 = vmatprep.mubr.f32.mxu0 0.0
        %v2145 = vand.u32 %v1958, 4294901760
        %2146 = vmatmul.mubr.f32.gmra.mrb[0].mxu0 %v2145
        %v2147 = vpop.f32.mrb[0].mxu0
        %v2148 = vadd.f32 %v2042, %v2147
        %v2149 = vpop.f32.mrb[0].mxu0
        %2150 = vmatprep.mubr.f32.mxu0 0.0
        %v2151 = vand.u32 %v1961, 4294901760
        %2152 = vmatmul.mubr.f32.gmra.mrb[0].mxu0 %v2151
        %v2153 = vpop.f32.mrb[0].mxu0
        %v2154 = vadd.f32 %v2052, %v2153
        %v2155 = vpop.f32.mrb[0].mxu0
        %2156 = vmatprep.mubr.f32.mxu0 0.0
        %v2157 = vand.u32 %v1964, 4294901760
        %2158 = vmatmul.mubr.f32.gmra.mrb[0].mxu0 %v2157
        %v2159 = vpop.f32.mrb[0].mxu0
        %v2160 = vadd.f32 %v2062, %v2159
        %v2161 = vpop.f32.mrb[0].mxu0
        %2162 = vmatprep.mubr.f32.mxu0 0.0
        %v2163 = vand.u32 %v1967, 4294901760
        %2164 = vmatmul.mubr.f32.gmra.mrb[0].mxu0 %v2163
        %v2165 = vpop.f32.mrb[0].mxu0
        %v2166 = vadd.f32 %v2072, %v2165
        %v2167 = vpop.f32.mrb[0].mxu0
        %2168 = vdwg.mxu0
        %2169 = vmatprep.subr.mxu0 0.0
        %v2170 = vand.u32 %v1923, 4294901760
        %v2171 = vsub.f32 %v1923, %v2170
        %2172 = vmatpush1.msra.mxu0 %v2171
        %2173 = vmatprep.subr.mxu0 0.0
        %2174 = vmatpush1.msra.mxu0 0.0
        %2175 = vmatprep.subr.mxu0 0.0
        %2176 = vmatpush1.msra.mxu0 0.0
        %2177 = vmatprep.subr.mxu0 0.0
        %2178 = vmatpush1.msra.mxu0 0.0
        %2179 = vmatprep.subr.mxu0 0.0
        %2180 = vmatpush1.msra.mxu0 0.0
        %2181 = vmatprep.subr.mxu0 0.0
        %2182 = vmatpush1.msra.mxu0 0.0
        %2183 = vmatprep.subr.mxu0 0.0
        %2184 = vmatpush1.msra.mxu0 0.0
        %2185 = vmatprep.subr.mxu0 0.0
        %2186 = vmatpush1.msra.mxu0 0.0
        %2187 = vmatprep.subr.mxu0 0.0
        %2188 = vmatpush1.msra.mxu0 0.0
        %2189 = vmatprep.subr.mxu0 0.0
        %2190 = vmatpush1.msra.mxu0 0.0
        %2191 = vmatprep.subr.mxu0 0.0
        %2192 = vmatpush1.msra.mxu0 0.0
        %2193 = vmatprep.subr.mxu0 0.0
        %2194 = vmatpush1.msra.mxu0 0.0
        %2195 = vmatprep.subr.mxu0 0.0
        %2196 = vmatpush1.msra.mxu0 0.0
        %2197 = vmatprep.subr.mxu0 0.0
        %2198 = vmatpush1.msra.mxu0 0.0
        %2199 = vmatprep.subr.mxu0 0.0
        %2200 = vmatpush1.msra.mxu0 0.0
        %2201 = vmatprep.subr.mxu0 0.0
        %2202 = vmatpush1.msra.mxu0 0.0
        %2203 = vmatprep.subr.mxu0 0.0
        %2204 = vmatpush1.msra.mxu0 0.0
        %2205 = vmatprep.subr.mxu0 0.0
        %2206 = vmatpush1.msra.mxu0 0.0
        %2207 = vmatprep.subr.mxu0 0.0
        %2208 = vmatpush1.msra.mxu0 0.0
        %2209 = vmatprep.subr.mxu0 0.0
        %2210 = vmatpush1.msra.mxu0 0.0
        %2211 = vmatprep.subr.mxu0 0.0
        %2212 = vmatpush1.msra.mxu0 0.0
        %2213 = vmatprep.subr.mxu0 0.0
        %2214 = vmatpush1.msra.mxu0 0.0
        %2215 = vmatprep.subr.mxu0 0.0
        %2216 = vmatpush1.msra.mxu0 0.0
        %2217 = vmatprep.subr.mxu0 0.0
        %2218 = vmatpush1.msra.mxu0 0.0
        %2219 = vmatprep.subr.mxu0 0.0
        %2220 = vmatpush1.msra.mxu0 0.0
        %2221 = vmatprep.subr.mxu0 0.0
        %2222 = vmatpush1.msra.mxu0 0.0
        %2223 = vmatprep.subr.mxu0 0.0
        %2224 = vmatpush1.msra.mxu0 0.0
        %2225 = vmatprep.subr.mxu0 0.0
        %2226 = vmatpush1.msra.mxu0 0.0
        %2227 = vmatprep.subr.mxu0 0.0
        %2228 = vmatpush1.msra.mxu0 0.0
        %2229 = vmatprep.subr.mxu0 0.0
        %2230 = vmatpush1.msra.mxu0 0.0
        %2231 = vmatprep.subr.mxu0 0.0
        %2232 = vmatpush1.msra.mxu0 0.0
        %2233 = vmatprep.subr.mxu0 0.0
        %2234 = vmatpush1.msra.mxu0 0.0
        %2235 = vmatprep.mubr.f32.mxu0 0.0
        %v2236 = vand.u32 %v1958, 4294901760
        %v2237 = vsub.f32 %v1958, %v2236
        %2238 = vmatmul.mubr.f32.gmra.mrb[0].mxu0 %v2237
        %v2239 = vpop.f32.mrb[0].mxu0
        %v2240 = vadd.f32 %v2148, %v2239
        %v2241 = vpop.f32.mrb[0].mxu0
        %2242 = vmatprep.mubr.f32.mxu0 0.0
        %v2243 = vand.u32 %v1961, 4294901760
        %v2244 = vsub.f32 %v1961, %v2243
        %2245 = vmatmul.mubr.f32.gmra.mrb[0].mxu0 %v2244
        %v2246 = vpop.f32.mrb[0].mxu0
        %v2247 = vadd.f32 %v2154, %v2246
        %v2248 = vpop.f32.mrb[0].mxu0
        %2249 = vmatprep.mubr.f32.mxu0 0.0
        %v2250 = vand.u32 %v1964, 4294901760
        %v2251 = vsub.f32 %v1964, %v2250
        %2252 = vmatmul.mubr.f32.gmra.mrb[0].mxu0 %v2251
        %v2253 = vpop.f32.mrb[0].mxu0
        %v2254 = vadd.f32 %v2160, %v2253
        %v2255 = vpop.f32.mrb[0].mxu0
        %2256 = vmatprep.mubr.f32.mxu0 0.0
        %v2257 = vand.u32 %v1967, 4294901760
        %v2258 = vsub.f32 %v1967, %v2257
        %2259 = vmatmul.mubr.f32.gmra.mrb[0].mxu0 %v2258
        %v2260 = vpop.f32.mrb[0].mxu0
        %v2261 = vadd.f32 %v2166, %v2260
        %v2262 = vpop.f32.mrb[0].mxu0
        %2263 = vdwg.mxu0
        %2264 = vmatprep.subr.mxu0 0.0
        %v2265 = vand.u32 %v1923, 4294901760
        %2266 = vmatpush1.msra.mxu0 %v2265
        %2267 = vmatprep.subr.mxu0 0.0
        %2268 = vmatpush1.msra.mxu0 0.0
        %2269 = vmatprep.subr.mxu0 0.0
        %2270 = vmatpush1.msra.mxu0 0.0
        %2271 = vmatprep.subr.mxu0 0.0
        %2272 = vmatpush1.msra.mxu0 0.0
        %2273 = vmatprep.subr.mxu0 0.0
        %2274 = vmatpush1.msra.mxu0 0.0
        %2275 = vmatprep.subr.mxu0 0.0
        %2276 = vmatpush1.msra.mxu0 0.0
        %2277 = vmatprep.subr.mxu0 0.0
        %2278 = vmatpush1.msra.mxu0 0.0
        %2279 = vmatprep.subr.mxu0 0.0
        %2280 = vmatpush1.msra.mxu0 0.0
        %2281 = vmatprep.subr.mxu0 0.0
        %2282 = vmatpush1.msra.mxu0 0.0
        %2283 = vmatprep.subr.mxu0 0.0
        %2284 = vmatpush1.msra.mxu0 0.0
        %2285 = vmatprep.subr.mxu0 0.0
        %2286 = vmatpush1.msra.mxu0 0.0
        %2287 = vmatprep.subr.mxu0 0.0
        %2288 = vmatpush1.msra.mxu0 0.0
        %2289 = vmatprep.subr.mxu0 0.0
        %2290 = vmatpush1.msra.mxu0 0.0
        %2291 = vmatprep.subr.mxu0 0.0
        %2292 = vmatpush1.msra.mxu0 0.0
        %2293 = vmatprep.subr.mxu0 0.0
        %2294 = vmatpush1.msra.mxu0 0.0
        %2295 = vmatprep.subr.mxu0 0.0
        %2296 = vmatpush1.msra.mxu0 0.0
        %2297 = vmatprep.subr.mxu0 0.0
        %2298 = vmatpush1.msra.mxu0 0.0
        %2299 = vmatprep.subr.mxu0 0.0
        %2300 = vmatpush1.msra.mxu0 0.0
        %2301 = vmatprep.subr.mxu0 0.0
        %2302 = vmatpush1.msra.mxu0 0.0
        %2303 = vmatprep.subr.mxu0 0.0
        %2304 = vmatpush1.msra.mxu0 0.0
        %2305 = vmatprep.subr.mxu0 0.0
        %2306 = vmatpush1.msra.mxu0 0.0
        %2307 = vmatprep.subr.mxu0 0.0
        %2308 = vmatpush1.msra.mxu0 0.0
        %2309 = vmatprep.subr.mxu0 0.0
        %2310 = vmatpush1.msra.mxu0 0.0
        %2311 = vmatprep.subr.mxu0 0.0
        %2312 = vmatpush1.msra.mxu0 0.0
        %2313 = vmatprep.subr.mxu0 0.0
        %2314 = vmatpush1.msra.mxu0 0.0
        %2315 = vmatprep.subr.mxu0 0.0
        %2316 = vmatpush1.msra.mxu0 0.0
        %2317 = vmatprep.subr.mxu0 0.0
        %2318 = vmatpush1.msra.mxu0 0.0
        %2319 = vmatprep.subr.mxu0 0.0
        %2320 = vmatpush1.msra.mxu0 0.0
        %2321 = vmatprep.subr.mxu0 0.0
        %2322 = vmatpush1.msra.mxu0 0.0
        %2323 = vmatprep.subr.mxu0 0.0
        %2324 = vmatpush1.msra.mxu0 0.0
        %2325 = vmatprep.subr.mxu0 0.0
        %2326 = vmatpush1.msra.mxu0 0.0
        %2327 = vmatprep.subr.mxu0 0.0
        %2328 = vmatpush1.msra.mxu0 0.0
        %2329 = vmatprep.mubr.f32.mxu0 0.0
        %v2330 = vand.u32 %v1958, 4294901760
        %v2331 = vsub.f32 %v1958, %v2330
        %v2332 = vand.u32 %v2331, 4294901760
        %2333 = vmatmul.mubr.f32.gmra.mrb[0].mxu0 %v2332
        %v2334 = vpop.f32.mrb[0].mxu0
        %v2335 = vadd.f32 %v2240, %v2334
        %v2336 = vpop.f32.mrb[0].mxu0
        %2337 = vmatprep.mubr.f32.mxu0 0.0
        %v2338 = vand.u32 %v1961, 4294901760
        %v2339 = vsub.f32 %v1961, %v2338
        %v2340 = vand.u32 %v2339, 4294901760
        %2341 = vmatmul.mubr.f32.gmra.mrb[0].mxu0 %v2340
        %v2342 = vpop.f32.mrb[0].mxu0
        %v2343 = vadd.f32 %v2247, %v2342
        %v2344 = vpop.f32.mrb[0].mxu0
        %2345 = vmatprep.mubr.f32.mxu0 0.0
        %v2346 = vand.u32 %v1964, 4294901760
        %v2347 = vsub.f32 %v1964, %v2346
        %v2348 = vand.u32 %v2347, 4294901760
        %2349 = vmatmul.mubr.f32.gmra.mrb[0].mxu0 %v2348
        %v2350 = vpop.f32.mrb[0].mxu0
        %v2351 = vadd.f32 %v2254, %v2350
        %v2352 = vpop.f32.mrb[0].mxu0
        %2353 = vmatprep.mubr.f32.mxu0 0.0
        %v2354 = vand.u32 %v1967, 4294901760
        %v2355 = vsub.f32 %v1967, %v2354
        %v2356 = vand.u32 %v2355, 4294901760
        %2357 = vmatmul.mubr.f32.gmra.mrb[0].mxu0 %v2356
        %v2358 = vpop.f32.mrb[0].mxu0
        %v2359 = vadd.f32 %v2261, %v2358
        %v2360 = vpop.f32.mrb[0].mxu0
        %2361 = vdwg.mxu0
        %2362 = vmatprep.subr.mxu0 0.0
        %v2363 = vand.u32 %v1923, 4294901760
        %v2364 = vsub.f32 %v1923, %v2363
        %v2365 = vand.u32 %v2364, 4294901760
        %2366 = vmatpush1.msra.mxu0 %v2365
        %2367 = vmatprep.subr.mxu0 0.0
        %2368 = vmatpush1.msra.mxu0 0.0
        %2369 = vmatprep.subr.mxu0 0.0
        %2370 = vmatpush1.msra.mxu0 0.0
        %2371 = vmatprep.subr.mxu0 0.0
        %2372 = vmatpush1.msra.mxu0 0.0
        %2373 = vmatprep.subr.mxu0 0.0
        %2374 = vmatpush1.msra.mxu0 0.0
        %2375 = vmatprep.subr.mxu0 0.0
        %2376 = vmatpush1.msra.mxu0 0.0
        %2377 = vmatprep.subr.mxu0 0.0
        %2378 = vmatpush1.msra.mxu0 0.0
        %2379 = vmatprep.subr.mxu0 0.0
        %2380 = vmatpush1.msra.mxu0 0.0
        %2381 = vmatprep.subr.mxu0 0.0
        %2382 = vmatpush1.msra.mxu0 0.0
        %2383 = vmatprep.subr.mxu0 0.0
        %2384 = vmatpush1.msra.mxu0 0.0
        %2385 = vmatprep.subr.mxu0 0.0
        %2386 = vmatpush1.msra.mxu0 0.0
        %2387 = vmatprep.subr.mxu0 0.0
        %2388 = vmatpush1.msra.mxu0 0.0
        %2389 = vmatprep.subr.mxu0 0.0
        %2390 = vmatpush1.msra.mxu0 0.0
        %2391 = vmatprep.subr.mxu0 0.0
        %2392 = vmatpush1.msra.mxu0 0.0
        %2393 = vmatprep.subr.mxu0 0.0
        %2394 = vmatpush1.msra.mxu0 0.0
        %2395 = vmatprep.subr.mxu0 0.0
        %2396 = vmatpush1.msra.mxu0 0.0
        %2397 = vmatprep.subr.mxu0 0.0
        %2398 = vmatpush1.msra.mxu0 0.0
        %2399 = vmatprep.subr.mxu0 0.0
        %2400 = vmatpush1.msra.mxu0 0.0
        %2401 = vmatprep.subr.mxu0 0.0
        %2402 = vmatpush1.msra.mxu0 0.0
        %2403 = vmatprep.subr.mxu0 0.0
        %2404 = vmatpush1.msra.mxu0 0.0
        %2405 = vmatprep.subr.mxu0 0.0
        %2406 = vmatpush1.msra.mxu0 0.0
        %2407 = vmatprep.subr.mxu0 0.0
        %2408 = vmatpush1.msra.mxu0 0.0
        %2409 = vmatprep.subr.mxu0 0.0
        %2410 = vmatpush1.msra.mxu0 0.0
        %2411 = vmatprep.subr.mxu0 0.0
        %2412 = vmatpush1.msra.mxu0 0.0
        %2413 = vmatprep.subr.mxu0 0.0
        %2414 = vmatpush1.msra.mxu0 0.0
        %2415 = vmatprep.subr.mxu0 0.0
        %2416 = vmatpush1.msra.mxu0 0.0
        %2417 = vmatprep.subr.mxu0 0.0
        %2418 = vmatpush1.msra.mxu0 0.0
        %2419 = vmatprep.subr.mxu0 0.0
        %2420 = vmatpush1.msra.mxu0 0.0
        %2421 = vmatprep.subr.mxu0 0.0
        %2422 = vmatpush1.msra.mxu0 0.0
        %2423 = vmatprep.subr.mxu0 0.0
        %2424 = vmatpush1.msra.mxu0 0.0
        %2425 = vmatprep.subr.mxu0 0.0
        %2426 = vmatpush1.msra.mxu0 0.0
        %2427 = vmatprep.subr.mxu0 0.0
        %2428 = vmatpush1.msra.mxu0 0.0
        %2429 = vmatprep.mubr.f32.mxu0 0.0
        %v2430 = vand.u32 %v1958, 4294901760
        %2431 = vmatmul.mubr.f32.gmra.mrb[0].mxu0 %v2430
        %v2432 = vpop.f32.mrb[0].mxu0
        %v2433 = vadd.f32 %v2335, %v2432
        %v2434 = vpop.f32.mrb[0].mxu0
        %2435 = vmatprep.mubr.f32.mxu0 0.0
        %v2436 = vand.u32 %v1961, 4294901760
        %2437 = vmatmul.mubr.f32.gmra.mrb[0].mxu0 %v2436
        %v2438 = vpop.f32.mrb[0].mxu0
        %v2439 = vadd.f32 %v2343, %v2438
        %v2440 = vpop.f32.mrb[0].mxu0
        %2441 = vmatprep.mubr.f32.mxu0 0.0
        %v2442 = vand.u32 %v1964, 4294901760
        %2443 = vmatmul.mubr.f32.gmra.mrb[0].mxu0 %v2442
        %v2444 = vpop.f32.mrb[0].mxu0
        %v2445 = vadd.f32 %v2351, %v2444
        %v2446 = vpop.f32.mrb[0].mxu0
        %2447 = vmatprep.mubr.f32.mxu0 0.0
        %v2448 = vand.u32 %v1967, 4294901760
        %2449 = vmatmul.mubr.f32.gmra.mrb[0].mxu0 %v2448
        %v2450 = vpop.f32.mrb[0].mxu0
        %v2451 = vadd.f32 %v2359, %v2450
        %v2452 = vpop.f32.mrb[0].mxu0
        %2453 = vdwg.mxu0
        %2454 = vmatprep.subr.mxu0 0.0
        %v2455 = vand.u32 %v1923, 4294901760
        %2456 = vmatpush1.msra.mxu0 %v2455
        %2457 = vmatprep.subr.mxu0 0.0
        %2458 = vmatpush1.msra.mxu0 0.0
        %2459 = vmatprep.subr.mxu0 0.0
        %2460 = vmatpush1.msra.mxu0 0.0
        %2461 = vmatprep.subr.mxu0 0.0
        %2462 = vmatpush1.msra.mxu0 0.0
        %2463 = vmatprep.subr.mxu0 0.0
        %2464 = vmatpush1.msra.mxu0 0.0
        %2465 = vmatprep.subr.mxu0 0.0
        %2466 = vmatpush1.msra.mxu0 0.0
        %2467 = vmatprep.subr.mxu0 0.0
        %2468 = vmatpush1.msra.mxu0 0.0
        %2469 = vmatprep.subr.mxu0 0.0
        %2470 = vmatpush1.msra.mxu0 0.0
        %2471 = vmatprep.subr.mxu0 0.0
        %2472 = vmatpush1.msra.mxu0 0.0
        %2473 = vmatprep.subr.mxu0 0.0
        %2474 = vmatpush1.msra.mxu0 0.0
        %2475 = vmatprep.subr.mxu0 0.0
        %2476 = vmatpush1.msra.mxu0 0.0
        %2477 = vmatprep.subr.mxu0 0.0
        %2478 = vmatpush1.msra.mxu0 0.0
        %2479 = vmatprep.subr.mxu0 0.0
        %2480 = vmatpush1.msra.mxu0 0.0
        %2481 = vmatprep.subr.mxu0 0.0
        %2482 = vmatpush1.msra.mxu0 0.0
        %2483 = vmatprep.subr.mxu0 0.0
        %2484 = vmatpush1.msra.mxu0 0.0
        %2485 = vmatprep.subr.mxu0 0.0
        %2486 = vmatpush1.msra.mxu0 0.0
        %2487 = vmatprep.subr.mxu0 0.0
        %2488 = vmatpush1.msra.mxu0 0.0
        %2489 = vmatprep.subr.mxu0 0.0
        %2490 = vmatpush1.msra.mxu0 0.0
        %2491 = vmatprep.subr.mxu0 0.0
        %2492 = vmatpush1.msra.mxu0 0.0
        %2493 = vmatprep.subr.mxu0 0.0
        %2494 = vmatpush1.msra.mxu0 0.0
        %2495 = vmatprep.subr.mxu0 0.0
        %2496 = vmatpush1.msra.mxu0 0.0
        %2497 = vmatprep.subr.mxu0 0.0
        %2498 = vmatpush1.msra.mxu0 0.0
        %2499 = vmatprep.subr.mxu0 0.0
        %2500 = vmatpush1.msra.mxu0 0.0
        %2501 = vmatprep.subr.mxu0 0.0
        %2502 = vmatpush1.msra.mxu0 0.0
        %2503 = vmatprep.subr.mxu0 0.0
        %2504 = vmatpush1.msra.mxu0 0.0
        %2505 = vmatprep.subr.mxu0 0.0
        %2506 = vmatpush1.msra.mxu0 0.0
        %2507 = vmatprep.subr.mxu0 0.0
        %2508 = vmatpush1.msra.mxu0 0.0
        %2509 = vmatprep.subr.mxu0 0.0
        %2510 = vmatpush1.msra.mxu0 0.0
        %2511 = vmatprep.subr.mxu0 0.0
        %2512 = vmatpush1.msra.mxu0 0.0
        %2513 = vmatprep.subr.mxu0 0.0
        %2514 = vmatpush1.msra.mxu0 0.0
        %2515 = vmatprep.subr.mxu0 0.0
        %2516 = vmatpush1.msra.mxu0 0.0
        %2517 = vmatprep.subr.mxu0 0.0
        %2518 = vmatpush1.msra.mxu0 0.0
        %2519 = vmatprep.mubr.f32.mxu0 0.0
        %v2520 = vand.u32 %v1958, 4294901760
        %2521 = vmatmul.mubr.f32.gmra.mrb[0].mxu0 %v2520
        %v2522 = vpop.f32.mrb[0].mxu0
        %v2523 = vadd.f32 %v2433, %v2522
        %v2524 = vpop.f32.mrb[0].mxu0
        %2525 = vmatprep.mubr.f32.mxu0 0.0
        %v2526 = vand.u32 %v1961, 4294901760
        %2527 = vmatmul.mubr.f32.gmra.mrb[0].mxu0 %v2526
        %v2528 = vpop.f32.mrb[0].mxu0
        %v2529 = vadd.f32 %v2439, %v2528
        %v2530 = vpop.f32.mrb[0].mxu0
        %2531 = vmatprep.mubr.f32.mxu0 0.0
        %v2532 = vand.u32 %v1964, 4294901760
        %2533 = vmatmul.mubr.f32.gmra.mrb[0].mxu0 %v2532
        %v2534 = vpop.f32.mrb[0].mxu0
        %v2535 = vadd.f32 %v2445, %v2534
        %v2536 = vpop.f32.mrb[0].mxu0
        %2537 = vmatprep.mubr.f32.mxu0 0.0
        %v2538 = vand.u32 %v1967, 4294901760
        %2539 = vmatmul.mubr.f32.gmra.mrb[0].mxu0 %v2538
        %v2540 = vpop.f32.mrb[0].mxu0
        %v2541 = vadd.f32 %v2451, %v2540
        %v2542 = vpop.f32.mrb[0].mxu0
        %2543 = vdwg.mxu0
        %v2544 = vmul.f32 %v2523, 0.1
        %v2545 = vmul.f32 %v2529, 0.1
        %v2546 = vmul.f32 %v2535, 0.1
        %v2547 = vmul.f32 %v2541, 0.1
        %v2548 = vadd.f32 %v1918, %v2544
        %v2549 = vadd.f32 %v1919, %v2545
        %v2550 = vadd.f32 %v1920, %v2546
        %v2551 = vadd.f32 %v1921, %v2547
        %2552 = vst.msk [vmem:[%s313] sm:$0xff] %vm378, %v2548
        %2553 = vst.msk [vmem:[%s313 + $0x8] sm:$0xff] %vm378, %v2549
        %2554 = vst.msk [vmem:[%s313 + $0x10] sm:$0xff] %vm378, %v2550
        %2555 = vst.msk [vmem:[%s313 + $0x18] sm:$0xff] %vm378, %v2551
        %s2556 = sand.u32 %s145, 1
        %s2557 = scalar_lea.sflag [#allocation14], %s2556
        %s2558 = sand.u32 %s145, 1
        %s2559 = smul.addr %s2558, 32
        %s2560 = scalar_lea.vmem [#allocation15], %s2559
        %s2561 = sand.u32 %s27, 1
        %s2562 = scalar_lea.sflag [#allocation17], %s2561
        %s2563 = sand.u32 %s173, 1
        %s2564 = smul.addr %s2563, 8
        %s2565 = scalar_lea.vmem [#allocation16], %s2564
        %s2566 = sand.u32 %s27, 1
        %s2567 = scalar_lea.sflag [#allocation17], %s2566
        %s2568 = sand.u32 %s201, 1
        %s2569 = smul.addr %s2568, 8
        %s2570 = scalar_lea.vmem [#allocation18], %s2569
        // Predicated region
        $region59: #{tpu_custom_call.1} parent=35 // pred_check
          %p2571 = pneg %p155
        $region60: #{tpu_custom_call.1} parent=35 // pred_check_branch
          %2573 = sbr.rel (%p2571) target = $region62
        $region61: #{tpu_custom_call.1} parent=35 // pred_region
          %s2575 = ssub.s32 512, 512
          %2576 = vsyncadd %s2557, %s2575
          %s2577 = smul.addr %s31, 4
          %s2578 = smul.addr %s2577, 128
          %s2579 = scalar_lea.hbm %s4, %s2578
          %s2580 = sshll.u32 %s2560, 4
          %s2581 = int_to_ptr.vmem [resolvable:$true] %s2580
          %2586 = dma.vmem_to_hbm [thread:$0]  %s2581, 512, %s2579, %s2557, 128, 128, 8
        $region62: #{tpu_custom_call.1} parent=35 // pred_fallthru
          _
        // Predicated region
        $region63: #{tpu_custom_call.1} parent=35 // pred_check
          %p2587 = pneg %p183
        $region64: #{tpu_custom_call.1} parent=35 // pred_check_branch
          %2589 = sbr.rel (%p2587) target = $region66
        $region65: #{tpu_custom_call.1} parent=35 // pred_region
          %s2591 = ssub.s32 128, 128
          %2592 = vsyncadd %s2562, %s2591
          %s2593 = smul.addr %s31, 2
          %s2594 = sadd.s32 %s32, %s2593
          %s2595 = smul.addr %s2594, 128
          %s2596 = scalar_lea.hbm %s5, %s2595
          %s2598 = sshll.u32 %s2565, 4
          %s2599 = int_to_ptr.vmem [resolvable:$true] %s2598
          %2601 = dma.vmem_to_hbm [thread:$0]  %s2599, 128, %s2596, %s2562
        $region66: #{tpu_custom_call.1} parent=35 // pred_fallthru
          _
        // Predicated region
        $region67: #{tpu_custom_call.1} parent=35 // pred_check
          %p2602 = pneg %p211
        $region68: #{tpu_custom_call.1} parent=35 // pred_check_branch
          %2604 = sbr.rel (%p2602) target = $region70
        $region69: #{tpu_custom_call.1} parent=35 // pred_region
          %s2606 = ssub.s32 128, 128
          %2607 = vsyncadd %s2567, %s2606
          %s2608 = smul.addr %s31, 2
          %s2609 = sadd.s32 %s32, %s2608
          %s2610 = smul.addr %s2609, 128
          %s2611 = scalar_lea.hbm %s6, %s2610
          %s2613 = sshll.u32 %s2570, 4
          %s2614 = int_to_ptr.vmem [resolvable:$true] %s2613
          %2616 = dma.vmem_to_hbm [thread:$0]  %s2614, 128, %s2611, %s2567
        $region70: #{tpu_custom_call.1} parent=35 // pred_fallthru
          _
      $region36: #{tpu_custom_call.1} parent=5 // pred_fallthru
        _
      %p2617 = scmp.le.s32.totalorder 2, %s22
      // Predicated region
      $region71: #{tpu_custom_call.1} parent=5 // pred_check
        %p2618 = pneg %p2617
      $region72: #{tpu_custom_call.1} parent=5 // pred_check_branch
        %2620 = sbr.rel (%p2618) target = $region74
      $region73: #{tpu_custom_call.1} parent=5 // pred_region
        %s2621 = ssub.s32 %s22, 2
        // Predicated region
        $region75: #{tpu_custom_call.1} parent=73 // pred_check
          %p2622 = pneg %p161
        $region76: #{tpu_custom_call.1} parent=73 // pred_check_branch
          %2624 = sbr.rel (%p2622) target = $region78
        $region77: #{tpu_custom_call.1} parent=73 // pred_region
          %s2625 = sand.u32 %s146, 1
          %s2626 = scalar_lea.sflag [#allocation14], %s2625
          %s2627 = sand.u32 %s146, 1
          %s2628 = smul.addr %s2627, 32
          %s2629 = scalar_lea.vmem [#allocation15], %s2628
          %2630 = dma.done %s2626, 512
        $region78: #{tpu_custom_call.1} parent=73 // pred_fallthru
          _
        // Predicated region
        $region79: #{tpu_custom_call.1} parent=73 // pred_check
          %p2631 = pneg %p189
        $region80: #{tpu_custom_call.1} parent=73 // pred_check_branch
          %2633 = sbr.rel (%p2631) target = $region82
        $region81: #{tpu_custom_call.1} parent=73 // pred_region
          %s2634 = sand.u32 %s28, 1
          %s2635 = scalar_lea.sflag [#allocation17], %s2634
          %s2636 = sand.u32 %s174, 1
          %s2637 = smul.addr %s2636, 8
          %s2638 = scalar_lea.vmem [#allocation16], %s2637
          %2639 = dma.done %s2635, 128
        $region82: #{tpu_custom_call.1} parent=73 // pred_fallthru
          _
        // Predicated region
        $region83: #{tpu_custom_call.1} parent=73 // pred_check
          %p2640 = pneg %p217
        $region84: #{tpu_custom_call.1} parent=73 // pred_check_branch
          %2642 = sbr.rel (%p2640) target = $region86
        $region85: #{tpu_custom_call.1} parent=73 // pred_region
          %s2643 = sand.u32 %s28, 1
          %s2644 = scalar_lea.sflag [#allocation17], %s2643
          %s2645 = sand.u32 %s202, 1
          %s2646 = smul.addr %s2645, 8
          %s2647 = scalar_lea.vmem [#allocation18], %s2646
          %2648 = dma.done %s2644, 128
        $region86: #{tpu_custom_call.1} parent=73 // pred_fallthru
          _
      $region74: #{tpu_custom_call.1} parent=5 // pred_fallthru
        _
    $region6: #{tpu_custom_call.1} parent=1 // loop_footer
      %s26 = sadd.s32 1, %s22
    $region7: #{tpu_custom_call.1} parent=1 // loop_footer_branch
      %21 = sbr.rel target = $region3
    $region8: #{tpu_custom_call.1} parent=1 // loop_exit
      _
    %2649 = vsyncpa [#allocation13], 1
    %s2650 = scalar_lea.sflag [#allocation13], 1
    %2651 = vsyncpa %s2650, 1
    %2652 = vsyncpa [#allocation14], 1
    %s2653 = scalar_lea.sflag [#allocation14], 1
    %2654 = vsyncpa %s2653, 1
    %2655 = vsyncpa [#allocation17], 1
    %s2656 = scalar_lea.sflag [#allocation17], 1
    %2657 = vsyncpa %s2656, 1

</llo_original>
